<compile_context>
chip_gen: v7x
topology: tpu7x:2x2x1
jax: 0.10.0
libtpu: 0.0.40
codegen_flags: <defaults>
</compile_context>

<pallas_src>
import math

import jax
import jax.numpy as jnp
from jax.experimental import pallas as pl
from jax.experimental.pallas import tpu as pltpu


# layer geometry: name -> (kernel_size, dilation, padding)
_GEOM = {
    "h1": (7, 1, 3), "h2": (5, 1, 2),
    "r1": (15, 2, 7), "r2": (11, 3, 5),
    "t1": (3, 1, 1), "t2": (3, 1, 1),
}
_P = 7  # max conv padding over all layers == left halo width in the workspaces


def _offsets(name):
    k, d, p = _GEOM[name]
    s0 = _P - p
    return [s0 + i * d for i in range(k)]


# union of the first-layer tap offsets (h1 | r1 | t1) -> 18 shifts
_OFFS1 = sorted(set(_offsets("h1")) | set(_offsets("r1")) | set(_offsets("t1")))


def _make_fused_kernel(ci, cf, length, num_groups, a_dtype, eps=1e-5):
    cg = cf // num_groups
    LW = ((length + 127) // 128) * 128       # lane-dense compute width
    WSW = LW + 40                            # workspace width (max tap offset 32)
    inv_sqrt2 = 1.0 / math.sqrt(2.0)

    l_same = length          # output length of the "same"-padded layers
    l_r1 = length - 14       # rhythmic conv1 output length
    l_min = length - 34      # rhythmic conv2 output length == final length

    offs1 = _OFFS1
    offs_h2 = _offsets("h2")
    offs_r2 = _offsets("r2")
    offs_t2 = _offsets("t2")

    def gelu(y):
        return 0.5 * y * (1.0 + jax.lax.erf(y * jnp.float32(inv_sqrt2)))

    def kernel(x_ref, w1_ref, wh2_ref, wr2_ref, wt2_ref, wfu_ref,
               aff1_ref, aff2_ref, gm3_ref, o_ref, ws_x, ws_a):
        aff1 = aff1_ref[...]                 # (3cf, 3) f32: stage-1 bias/gamma/beta
        aff2 = aff2_ref[...]                 # (cf, 10) f32: h2|r2|t2 (b,g,beta) + fuse b
        gm3 = gm3_ref[...]                   # (3cf, 3cf) same-group mask (f32)
        gm = gm3[0:cf, 0:cf]                 # per-branch mask for the stage-2 GNs
        wfu = wfu_ref[...]                   # (cf, 3cf) bf16 fusion weight

        # --- refresh the zero halos only; interiors are fully overwritten below
        ws_x[:, 0:_P] = jnp.zeros((ci, _P), jnp.float32)
        ws_x[:, _P + length:] = jnp.zeros((ci, WSW - _P - length), jnp.float32)
        ws_a[:, 0:_P] = jnp.zeros((3 * cf, _P), a_dtype)
        ws_a[:, _P + LW:] = jnp.zeros((3 * cf, WSW - _P - LW), a_dtype)

        ws_x[:, _P:_P + length] = x_ref[0]

        # per-row valid length / normalizer for the merged stage-1 GroupNorm
        lane1 = jax.lax.broadcasted_iota(jnp.int32, (3 * cf, LW), 1)
        row1 = jax.lax.broadcasted_iota(jnp.int32, (3 * cf, 1), 0)
        is_r = jnp.logical_and(row1 >= cf, row1 < 2 * cf)
        lout1 = jnp.where(is_r, l_r1, l_same)                          # (3cf, 1)
        ninv1 = jnp.where(is_r, jnp.float32(1.0 / (cg * l_r1)),
                          jnp.float32(1.0 / (cg * l_same)))            # (3cf, 1)

        # --- stage 1: h1 + r1 + t1 as ONE matmul over the union of tap offsets
        xs1 = jnp.concatenate([ws_x[:, o:o + LW] for o in offs1], axis=0)
        xs1 = xs1.astype(jnp.bfloat16)                                 # (18*ci, LW)
        acc1 = jnp.dot(w1_ref[...], xs1, preferred_element_type=jnp.float32)
        acc1 = acc1 + aff1[:, 0:1]                                     # (3cf, LW)

        # GroupNorm (one group-mask matmul on stacked [sum, sum of squares])
        valid1 = lane1 < lout1
        m1 = jnp.where(valid1, acc1, 0.0)
        s1 = jnp.concatenate([jnp.sum(m1, axis=1, keepdims=True),
                              jnp.sum(m1 * m1, axis=1, keepdims=True)], axis=1)
        g1 = jnp.dot(gm3, s1, preferred_element_type=jnp.float32) * ninv1
        mean1 = g1[:, 0:1]
        var1 = g1[:, 1:2] - mean1 * mean1
        y1 = (acc1 - mean1) * jax.lax.rsqrt(var1 + eps)
        y1 = y1 * aff1[:, 1:2] + aff1[:, 2:3]
        y1 = jnp.where(valid1, gelu(y1), 0.0)          # keep tails zero for layer-2 pads
        ws_a[:, _P:_P + LW] = y1.astype(a_dtype)

        lane2 = jax.lax.broadcasted_iota(jnp.int32, (cf, LW), 1)

        def branch_tail(bidx, w2_ref, offs, l_out):
            r0 = bidx * cf
            xs = jnp.concatenate([ws_a[r0:r0 + cf, o:o + LW] for o in offs],
                                 axis=0).astype(jnp.bfloat16)          # (K*cf, LW)
            acc = jnp.dot(w2_ref[...], xs, preferred_element_type=jnp.float32)
            acc = acc + aff2[:, 3 * bidx:3 * bidx + 1]
            valid = lane2 < l_out
            m = jnp.where(valid, acc, 0.0)
            s = jnp.concatenate([jnp.sum(m, axis=1, keepdims=True),
                                 jnp.sum(m * m, axis=1, keepdims=True)], axis=1)
            g = jnp.dot(gm, s, preferred_element_type=jnp.float32)
            g = g * jnp.float32(1.0 / (cg * l_out))
            mean = g[:, 0:1]
            var = g[:, 1:2] - mean * mean
            y = (acc - mean) * jax.lax.rsqrt(var + eps)
            y = y * aff2[:, 3 * bidx + 1:3 * bidx + 2] + aff2[:, 3 * bidx + 2:3 * bidx + 3]
            y = gelu(y)   # lanes >= final length are sliced off by the wrapper
            # fold the 1x1 fusion into the branch tail (f32 accumulation, no br_ref)
            return jnp.dot(wfu[:, r0:r0 + cf], y.astype(jnp.bfloat16),
                           preferred_element_type=jnp.float32)

        res = branch_tail(0, wh2_ref, offs_h2, l_same)        # harmonic
        res = res + branch_tail(1, wr2_ref, offs_r2, l_min)   # rhythmic
        res = res + branch_tail(2, wt2_ref, offs_t2, l_same)  # timbral
        o_ref[0, :, :] = (res + aff2[:, 9:10]).astype(o_ref.dtype)

    return kernel, LW, WSW


def music_feature_extractor(x, p, *, num_groups=8):
    batch, ci, length = x.shape
    cf = p["h1_w"].shape[0]
    assert length > 34, "rhythmic branch requires length > 34"
    assert cf % num_groups == 0

    # --- stage-1 merged weight: (3cf, n_off1*ci), zero columns for unused taps
    noff1 = len(_OFFS1)
    off_idx = {o: j for j, o in enumerate(_OFFS1)}
    w1 = jnp.zeros((3 * cf, noff1, ci), jnp.float32)
    for b, name in enumerate(("h1", "r1", "t1")):
        w = p[name + "_w"].astype(jnp.float32)              # (cf, ci, K)
        for k, off in enumerate(_offsets(name)):
            w1 = w1.at[b * cf:(b + 1) * cf, off_idx[off], :].set(w[:, :, k])
    w1 = w1.reshape(3 * cf, noff1 * ci).astype(jnp.bfloat16)

    # --- stage-2 conv weights stacked over taps: (cf, K*cf), bf16 MXU operands
    def stack_taps(w):
        co, wci, k = w.shape
        return jnp.transpose(w, (0, 2, 1)).reshape(co, k * wci).astype(jnp.bfloat16)

    wh2 = stack_taps(p["h2_w"])
    wr2 = stack_taps(p["r2_w"])
    wt2 = stack_taps(p["t2_w"])
    wfu = p["fuse_w"].reshape(cf, 3 * cf).astype(jnp.bfloat16)

    # --- packed affine params
    aff1 = jnp.stack(
        [jnp.concatenate([p["h1" + s], p["r1" + s], p["t1" + s]])
         for s in ("_b", "_g", "_beta")], axis=1).astype(jnp.float32)     # (3cf, 3)
    aff2_cols = [p[n + s] for n in ("h2", "r2", "t2") for s in ("_b", "_g", "_beta")]
    aff2_cols.append(p["fuse_b"])
    aff2 = jnp.stack(aff2_cols, axis=1).astype(jnp.float32)               # (cf, 10)

    # same-group indicator (groups never span branches since cg | cf)
    gidx3 = jnp.arange(3 * cf) // (cf // num_groups)
    gm3 = (gidx3[:, None] == gidx3[None, :]).astype(jnp.float32)

    a_dtype = jnp.bfloat16 if cf % 16 == 0 else jnp.float32
    kernel, lw, wsw = _make_fused_kernel(ci, cf, length, num_groups, a_dtype)

    const2d = lambda bb: (0, 0)
    out_full = pl.pallas_call(
        kernel,
        out_shape=jax.ShapeDtypeStruct((batch, cf, lw), jnp.float32),
        grid_spec=pltpu.PrefetchScalarGridSpec(
            num_scalar_prefetch=0,
            grid=(batch,),
            in_specs=[pl.BlockSpec((1, ci, length), lambda bb: (bb, 0, 0)),
                      pl.BlockSpec(w1.shape, const2d),
                      pl.BlockSpec(wh2.shape, const2d),
                      pl.BlockSpec(wr2.shape, const2d),
                      pl.BlockSpec(wt2.shape, const2d),
                      pl.BlockSpec(wfu.shape, const2d),
                      pl.BlockSpec(aff1.shape, const2d),
                      pl.BlockSpec(aff2.shape, const2d),
                      pl.BlockSpec(gm3.shape, const2d)],
            out_specs=pl.BlockSpec((1, cf, lw), lambda bb: (bb, 0, 0)),
            scratch_shapes=[
                pltpu.VMEM((ci, wsw), jnp.float32),   # zero-halo padded input
                pltpu.VMEM((3 * cf, wsw), a_dtype),   # all three layer-1 activations
            ],
        ),
        compiler_params=pltpu.CompilerParams(dimension_semantics=("parallel",)),
    )(x.astype(jnp.float32), w1, wh2, wr2, wt2, wfu, aff1, aff2, gm3)

    # drop the lane padding -> (B, cf, L - 34), matching the PyTorch module
    return out_full[:, :, :length - 34]


def init_params(key, input_dim, feature_dim):
    specs = {
        "h1": (feature_dim, input_dim, 7),
        "h2": (feature_dim, feature_dim, 5),
        "r1": (feature_dim, input_dim, 15),
        "r2": (feature_dim, feature_dim, 11),
        "t1": (feature_dim, input_dim, 3),
        "t2": (feature_dim, feature_dim, 3),
        "fuse": (feature_dim, 3 * feature_dim, 1),
    }
    params = {}
    for name, (co, ci, k) in specs.items():
        key, k1, k2, k3, k4 = jax.random.split(key, 5)
        scale = 1.0 / math.sqrt(ci * k)
        params[name + "_w"] = scale * jax.random.normal(k1, (co, ci, k), jnp.float32)
        params[name + "_b"] = 0.1 * jax.random.normal(k2, (co,), jnp.float32)
        params[name + "_g"] = 1.0 + 0.1 * jax.random.normal(k3, (co,), jnp.float32)
        params[name + "_beta"] = 0.1 * jax.random.normal(k4, (co,), jnp.float32)
    return params


# ---------------- pure-JAX reference (for correctness check) ----------------
def _ref_conv(x, w, b, pad, dil):
    y = jax.lax.conv_general_dilated(
        x, w, window_strides=(1,), padding=[(pad, pad)], rhs_dilation=(dil,),
        dimension_numbers=("NCH", "OIH", "NCH"), precision=jax.lax.Precision.HIGHEST)
    return y + b[None, :, None]


def _ref_gn_gelu(y, gamma, beta, groups=8, eps=1e-5):
    bsz, c, length = y.shape
    yg = y.reshape(bsz, groups, c // groups, length)
    mean = yg.mean(axis=(2, 3), keepdims=True)
    var = ((yg - mean) ** 2).mean(axis=(2, 3), keepdims=True)
    yn = ((yg - mean) * jax.lax.rsqrt(var + eps)).reshape(bsz, c, length)
    out = yn * gamma[None, :, None] + beta[None, :, None]
    return 0.5 * out * (1.0 + jax.lax.erf(out / jnp.sqrt(jnp.float32(2.0))))


def reference_forward(x, p):
    def branch(xx, n1, p1, d1, n2, p2, d2):
        y = _ref_gn_gelu(_ref_conv(xx, p[n1 + "_w"], p[n1 + "_b"], p1, d1),
                         p[n1 + "_g"], p[n1 + "_beta"])
        return _ref_gn_gelu(_ref_conv(y, p[n2 + "_w"], p[n2 + "_b"], p2, d2),
                            p[n2 + "_g"], p[n2 + "_beta"])

    h = branch(x, "h1", 3, 1, "h2", 2, 1)
    r = branch(x, "r1", 7, 2, "r2", 5, 3)
    t = branch(x, "t1", 1, 1, "t2", 1, 1)
    ml = min(h.shape[-1], r.shape[-1], t.shape[-1])
    comb = jnp.concatenate([h[..., :ml], r[..., :ml], t[..., :ml]], axis=1)
    return _ref_conv(comb, p["fuse_w"], p["fuse_b"], 0, 1)


if __name__ == "__main__":
    B, input_dim, L, feature_dim = 2, 8, 64, 32
    key = jax.random.PRNGKey(0)
    kx, kp = jax.random.split(key)
    x = jax.random.normal(kx, (B, input_dim, L), jnp.float32)
    params = init_params(kp, input_dim, feature_dim)

    forward = jax.jit(music_feature_extractor)
    out = jax.block_until_ready(forward(x, params))
    assert out.shape == (B, feature_dim, L - 34), out.shape

    ref = jax.block_until_ready(reference_forward(x, params))
    err = float(jnp.max(jnp.abs(out - ref)))
    if not (err < 5e-2):   # bf16 MXU operands -> slightly looser than pure-f32
        raise AssertionError(f"mismatch vs reference: max abs err {err}")

    print("KERNEL_OK")
</pallas_src>

<mosaic_0001>
module attributes {stable_mosaic.version = 11 : i64} {
  func.func @kernel(%arg0: i32, %arg1: memref<1x8x64xf32, #tpu.memory_space<vmem>>, %arg2: memref<96x144xbf16, #tpu.memory_space<vmem>>, %arg3: memref<32x160xbf16, #tpu.memory_space<vmem>>, %arg4: memref<32x352xbf16, #tpu.memory_space<vmem>>, %arg5: memref<32x96xbf16, #tpu.memory_space<vmem>>, %arg6: memref<32x96xbf16, #tpu.memory_space<vmem>>, %arg7: memref<96x3xf32, #tpu.memory_space<vmem>>, %arg8: memref<32x10xf32, #tpu.memory_space<vmem>>, %arg9: memref<96x96xf32, #tpu.memory_space<vmem>>, %arg10: memref<1x32x128xf32, #tpu.memory_space<vmem>>, %arg11: memref<8x168xf32, #tpu.memory_space<vmem>>, %arg12: memref<96x168xbf16, #tpu.memory_space<vmem>>) attributes {dimension_semantics = [#tpu.dimension_semantics<parallel>], iteration_bounds = array<i64: 2>, scalar_prefetch = 0 : i64, scratch_operands = 2 : i64, tpu.core_type = #tpu.core_type<tc>, window_params = [{transform_indices = @transform_0, window_bounds = array<i64: 1, 8, 64>}, {pipeline_mode = #tpu.pipeline_mode<synchronous>, transform_indices = @transform_1, window_bounds = array<i64: 96, 144>}, {pipeline_mode = #tpu.pipeline_mode<synchronous>, transform_indices = @transform_2, window_bounds = array<i64: 32, 160>}, {pipeline_mode = #tpu.pipeline_mode<synchronous>, transform_indices = @transform_3, window_bounds = array<i64: 32, 352>}, {pipeline_mode = #tpu.pipeline_mode<synchronous>, transform_indices = @transform_4, window_bounds = array<i64: 32, 96>}, {pipeline_mode = #tpu.pipeline_mode<synchronous>, transform_indices = @transform_5, window_bounds = array<i64: 32, 96>}, {pipeline_mode = #tpu.pipeline_mode<synchronous>, transform_indices = @transform_6, window_bounds = array<i64: 96, 3>}, {pipeline_mode = #tpu.pipeline_mode<synchronous>, transform_indices = @transform_7, window_bounds = array<i64: 32, 10>}, {pipeline_mode = #tpu.pipeline_mode<synchronous>, transform_indices = @transform_8, window_bounds = array<i64: 96, 96>}, {transform_indices = @transform_9, window_bounds = array<i64: 1, 32, 128>}]} {
    %c0 = arith.constant 0 : index
    %c0_0 = arith.constant 0 : index
    %0 = vector.load %arg7[%c0, %c0_0] : memref<96x3xf32, #tpu.memory_space<vmem>>, vector<96x3xf32>
    %c0_1 = arith.constant 0 : index
    %c0_2 = arith.constant 0 : index
    %1 = vector.load %arg8[%c0_1, %c0_2] : memref<32x10xf32, #tpu.memory_space<vmem>>, vector<32x10xf32>
    %c0_3 = arith.constant 0 : index
    %c0_4 = arith.constant 0 : index
    %2 = vector.load %arg9[%c0_3, %c0_4] : memref<96x96xf32, #tpu.memory_space<vmem>>, vector<96x96xf32>
    %3 = vector.extract_strided_slice %2 {offsets = [0, 0], sizes = [32, 32], strides = [1, 1]} : vector<96x96xf32> to vector<32x32xf32>
    %c0_5 = arith.constant 0 : index
    %c0_6 = arith.constant 0 : index
    %4 = vector.load %arg6[%c0_5, %c0_6] : memref<32x96xbf16, #tpu.memory_space<vmem>>, vector<32x96xbf16>
    %cst = arith.constant 0.000000e+00 : f32
    %5 = vector.broadcast %cst : f32 to vector<8x7xf32>
    %c0_7 = arith.constant 0 : index
    %c0_8 = arith.constant 0 : index
    %6 = vector.load %arg11[%c0_7, %c0_8] : memref<8x168xf32, #tpu.memory_space<vmem>>, vector<8x7xf32>
    tpu.vector_store %arg11[%c0_7, %c0_8], %5 {strides = array<i32>} : memref<8x168xf32, #tpu.memory_space<vmem>>, vector<8x7xf32>,
    %cst_9 = arith.constant 0.000000e+00 : f32
    %7 = vector.broadcast %cst_9 : f32 to vector<8x97xf32>
    %c0_10 = arith.constant 0 : index
    %c71 = arith.constant 71 : index
    %8 = vector.load %arg11[%c0_10, %c71] : memref<8x168xf32, #tpu.memory_space<vmem>>, vector<8x97xf32>
    tpu.vector_store %arg11[%c0_10, %c71], %7 {strides = array<i32>} : memref<8x168xf32, #tpu.memory_space<vmem>>, vector<8x97xf32>,
    %cst_11 = arith.constant 0.000000e+00 : bf16
    %9 = vector.broadcast %cst_11 : bf16 to vector<96x7xbf16>
    %c0_12 = arith.constant 0 : index
    %c0_13 = arith.constant 0 : index
    %10 = vector.load %arg12[%c0_12, %c0_13] : memref<96x168xbf16, #tpu.memory_space<vmem>>, vector<96x7xbf16>
    tpu.vector_store %arg12[%c0_12, %c0_13], %9 {strides = array<i32>} : memref<96x168xbf16, #tpu.memory_space<vmem>>, vector<96x7xbf16>,
    %cst_14 = arith.constant 0.000000e+00 : bf16
    %11 = vector.broadcast %cst_14 : bf16 to vector<96x33xbf16>
    %c0_15 = arith.constant 0 : index
    %c135 = arith.constant 135 : index
    %12 = vector.load %arg12[%c0_15, %c135] : memref<96x168xbf16, #tpu.memory_space<vmem>>, vector<96x33xbf16>
    tpu.vector_store %arg12[%c0_15, %c135], %11 {strides = array<i32>} : memref<96x168xbf16, #tpu.memory_space<vmem>>, vector<96x33xbf16>,
    %c0_16 = arith.constant 0 : index
    %c0_17 = arith.constant 0 : index
    %c0_18 = arith.constant 0 : index
    %13 = vector.load %arg1[%c0_16, %c0_17, %c0_18] : memref<1x8x64xf32, #tpu.memory_space<vmem>>, vector<1x8x64xf32>
    %14 = vector.shape_cast %13 : vector<1x8x64xf32> to vector<8x64xf32>
    %c0_19 = arith.constant 0 : index
    %c7 = arith.constant 7 : index
    %15 = vector.load %arg11[%c0_19, %c7] : memref<8x168xf32, #tpu.memory_space<vmem>>, vector<8x64xf32>
    tpu.vector_store %arg11[%c0_19, %c7], %14 {strides = array<i32>} : memref<8x168xf32, #tpu.memory_space<vmem>>, vector<8x64xf32>,
    %16 = tpu.iota {dimensions = array<i32: 1>} : vector<96x128xi32>
    %17 = tpu.iota {dimensions = array<i32: 0>} : vector<96x1xi32>
    %c32_i32 = arith.constant 32 : i32
    %18 = vector.broadcast %c32_i32 : i32 to vector<96x1xi32>
    %19 = arith.cmpi sge, %17, %18 : vector<96x1xi32>
    %c64_i32 = arith.constant 64 : i32
    %20 = vector.broadcast %c64_i32 : i32 to vector<96x1xi32>
    %21 = arith.cmpi slt, %17, %20 : vector<96x1xi32>
    %22 = arith.andi %19, %21 : vector<96x1xi1>
    %c50_i32 = arith.constant 50 : i32
    %c64_i32_20 = arith.constant 64 : i32
    %23 = vector.broadcast %c50_i32 : i32 to vector<96x1xi32>
    %24 = vector.broadcast %c64_i32_20 : i32 to vector<96x1xi32>
    %25 = arith.select %22, %23, %24 : vector<96x1xi1>, vector<96x1xi32>
    %cst_21 = arith.constant 5.000000e-03 : f32
    %cst_22 = arith.constant 3.906250e-03 : f32
    %26 = vector.broadcast %cst_21 : f32 to vector<96x1xf32>
    %27 = vector.broadcast %cst_22 : f32 to vector<96x1xf32>
    %28 = arith.select %22, %26, %27 : vector<96x1xi1>, vector<96x1xf32>
    %c0_23 = arith.constant 0 : index
    %c0_24 = arith.constant 0 : index
    %29 = vector.load %arg11[%c0_23, %c0_24] : memref<8x168xf32, #tpu.memory_space<vmem>>, vector<8x128xf32>
    %c0_25 = arith.constant 0 : index
    %c2 = arith.constant 2 : index
    %30 = vector.load %arg11[%c0_25, %c2] : memref<8x168xf32, #tpu.memory_space<vmem>>, vector<8x128xf32>
    %c0_26 = arith.constant 0 : index
    %c4 = arith.constant 4 : index
    %31 = vector.load %arg11[%c0_26, %c4] : memref<8x168xf32, #tpu.memory_space<vmem>>, vector<8x128xf32>
    %c0_27 = arith.constant 0 : index
    %c5 = arith.constant 5 : index
    %32 = vector.load %arg11[%c0_27, %c5] : memref<8x168xf32, #tpu.memory_space<vmem>>, vector<8x128xf32>
    %c0_28 = arith.constant 0 : index
    %c6 = arith.constant 6 : index
    %33 = vector.load %arg11[%c0_28, %c6] : memref<8x168xf32, #tpu.memory_space<vmem>>, vector<8x128xf32>
    %c0_29 = arith.constant 0 : index
    %c7_30 = arith.constant 7 : index
    %34 = vector.load %arg11[%c0_29, %c7_30] : memref<8x168xf32, #tpu.memory_space<vmem>>, vector<8x128xf32>
    %c0_31 = arith.constant 0 : index
    %c8 = arith.constant 8 : index
    %35 = vector.load %arg11[%c0_31, %c8] : memref<8x168xf32, #tpu.memory_space<vmem>>, vector<8x128xf32>
    %c0_32 = arith.constant 0 : index
    %c9 = arith.constant 9 : index
    %36 = vector.load %arg11[%c0_32, %c9] : memref<8x168xf32, #tpu.memory_space<vmem>>, vector<8x128xf32>
    %c0_33 = arith.constant 0 : index
    %c10 = arith.constant 10 : index
    %37 = vector.load %arg11[%c0_33, %c10] : memref<8x168xf32, #tpu.memory_space<vmem>>, vector<8x128xf32>
    %c0_34 = arith.constant 0 : index
    %c12 = arith.constant 12 : index
    %38 = vector.load %arg11[%c0_34, %c12] : memref<8x168xf32, #tpu.memory_space<vmem>>, vector<8x128xf32>
    %c0_35 = arith.constant 0 : index
    %c14 = arith.constant 14 : index
    %39 = vector.load %arg11[%c0_35, %c14] : memref<8x168xf32, #tpu.memory_space<vmem>>, vector<8x128xf32>
    %c0_36 = arith.constant 0 : index
    %c16 = arith.constant 16 : index
    %40 = vector.load %arg11[%c0_36, %c16] : memref<8x168xf32, #tpu.memory_space<vmem>>, vector<8x128xf32>
    %c0_37 = arith.constant 0 : index
    %c18 = arith.constant 18 : index
    %41 = vector.load %arg11[%c0_37, %c18] : memref<8x168xf32, #tpu.memory_space<vmem>>, vector<8x128xf32>
    %c0_38 = arith.constant 0 : index
    %c20 = arith.constant 20 : index
    %42 = vector.load %arg11[%c0_38, %c20] : memref<8x168xf32, #tpu.memory_space<vmem>>, vector<8x128xf32>
    %c0_39 = arith.constant 0 : index
    %c22 = arith.constant 22 : index
    %43 = vector.load %arg11[%c0_39, %c22] : memref<8x168xf32, #tpu.memory_space<vmem>>, vector<8x128xf32>
    %c0_40 = arith.constant 0 : index
    %c24 = arith.constant 24 : index
    %44 = vector.load %arg11[%c0_40, %c24] : memref<8x168xf32, #tpu.memory_space<vmem>>, vector<8x128xf32>
    %c0_41 = arith.constant 0 : index
    %c26 = arith.constant 26 : index
    %45 = vector.load %arg11[%c0_41, %c26] : memref<8x168xf32, #tpu.memory_space<vmem>>, vector<8x128xf32>
    %c0_42 = arith.constant 0 : index
    %c28 = arith.constant 28 : index
    %46 = vector.load %arg11[%c0_42, %c28] : memref<8x168xf32, #tpu.memory_space<vmem>>, vector<8x128xf32>
    %47 = tpu.concatenate %29, %30, %31, %32, %33, %34, %35, %36, %37, %38, %39, %40, %41, %42, %43, %44 in 0 : vector<8x128xf32>, vector<8x128xf32>, vector<8x128xf32>, vector<8x128xf32>, vector<8x128xf32>, vector<8x128xf32>, vector<8x128xf32>, vector<8x128xf32>, vector<8x128xf32>, vector<8x128xf32>, vector<8x128xf32>, vector<8x128xf32>, vector<8x128xf32>, vector<8x128xf32>, vector<8x128xf32>, vector<8x128xf32> -> vector<128x128xf32>
    %48 = tpu.concatenate %45, %46 in 0 : vector<8x128xf32>, vector<8x128xf32> -> vector<16x128xf32>
    %49 = tpu.concatenate %47, %48 in 0 : vector<128x128xf32>, vector<16x128xf32> -> vector<144x128xf32>
    %50 = arith.truncf %49 : vector<144x128xf32> to vector<144x128xbf16>
    %c0_43 = arith.constant 0 : index
    %c0_44 = arith.constant 0 : index
    %51 = vector.load %arg2[%c0_43, %c0_44] : memref<96x144xbf16, #tpu.memory_space<vmem>>, vector<96x144xbf16>
    %cst_45 = arith.constant dense<0.000000e+00> : vector<96x128xf32>
    %52 = tpu.matmul %51, %50, %cst_45 {dimension_numbers = #tpu.dot_dimension_numbers<[1], [0], [0], [1], [0, 0, 1, 1], [], []>} : vector<96x144xbf16>, vector<144x128xbf16>, vector<96x128xf32> -> vector<96x128xf32>
    %53 = vector.extract_strided_slice %0 {offsets = [0, 0], sizes = [96, 1], strides = [1, 1]} : vector<96x3xf32> to vector<96x1xf32>
    %54 = vector.broadcast %53 : vector<96x1xf32> to vector<96x128xf32>
    %55 = arith.addf %52, %54 : vector<96x128xf32>
    %56 = vector.broadcast %25 : vector<96x1xi32> to vector<96x128xi32>
    %57 = arith.cmpi slt, %16, %56 : vector<96x128xi32>
    %cst_46 = arith.constant 0.000000e+00 : f32
    %58 = vector.broadcast %cst_46 : f32 to vector<96x128xf32>
    %59 = arith.select %57, %55, %58 : vector<96x128xi1>, vector<96x128xf32>
    %cst_47 = arith.constant dense<0.000000e+00> : vector<96xf32>
    %60 = vector.multi_reduction <add>, %59, %cst_47 [1] : vector<96x128xf32> to vector<96xf32>
    %61 = vector.shape_cast %60 : vector<96xf32> to vector<96x1xf32>
    %62 = arith.mulf %59, %59 : vector<96x128xf32>
    %cst_48 = arith.constant dense<0.000000e+00> : vector<96xf32>
    %63 = vector.multi_reduction <add>, %62, %cst_48 [1] : vector<96x128xf32> to vector<96xf32>
    %64 = vector.shape_cast %63 : vector<96xf32> to vector<96x1xf32>
    %65 = tpu.concatenate %61, %64 in 1 : vector<96x1xf32>, vector<96x1xf32> -> vector<96x2xf32>
    %cst_49 = arith.constant dense<0.000000e+00> : vector<96x2xf32>
    %66 = tpu.matmul %2, %65, %cst_49 {dimension_numbers = #tpu.dot_dimension_numbers<[1], [0], [0], [1], [0, 0, 1, 1], [], []>} : vector<96x96xf32>, vector<96x2xf32>, vector<96x2xf32> -> vector<96x2xf32>
    %67 = vector.broadcast %28 : vector<96x1xf32> to vector<96x2xf32>
    %68 = arith.mulf %66, %67 : vector<96x2xf32>
    %69 = vector.extract_strided_slice %68 {offsets = [0, 0], sizes = [96, 1], strides = [1, 1]} : vector<96x2xf32> to vector<96x1xf32>
    %70 = vector.extract_strided_slice %68 {offsets = [0, 1], sizes = [96, 1], strides = [1, 1]} : vector<96x2xf32> to vector<96x1xf32>
    %71 = arith.mulf %69, %69 : vector<96x1xf32>
    %72 = arith.subf %70, %71 : vector<96x1xf32>
    %73 = vector.broadcast %69 : vector<96x1xf32> to vector<96x128xf32>
    %74 = arith.subf %55, %73 : vector<96x128xf32>
    %cst_50 = arith.constant 9.99999974E-6 : f32
    %75 = vector.broadcast %cst_50 : f32 to vector<96x1xf32>
    %76 = arith.addf %72, %75 : vector<96x1xf32>
    %77 = math.rsqrt %76 : vector<96x1xf32>
    %78 = vector.broadcast %77 : vector<96x1xf32> to vector<96x128xf32>
    %79 = arith.mulf %74, %78 : vector<96x128xf32>
    %80 = vector.extract_strided_slice %0 {offsets = [0, 1], sizes = [96, 1], strides = [1, 1]} : vector<96x3xf32> to vector<96x1xf32>
    %81 = vector.broadcast %80 : vector<96x1xf32> to vector<96x128xf32>
    %82 = arith.mulf %79, %81 : vector<96x128xf32>
    %83 = vector.extract_strided_slice %0 {offsets = [0, 2], sizes = [96, 1], strides = [1, 1]} : vector<96x3xf32> to vector<96x1xf32>
    %84 = vector.broadcast %83 : vector<96x1xf32> to vector<96x128xf32>
    %85 = arith.addf %82, %84 : vector<96x128xf32>
    %cst_51 = arith.constant 5.000000e-01 : f32
    %86 = vector.broadcast %cst_51 : f32 to vector<96x128xf32>
    %87 = arith.mulf %86, %85 : vector<96x128xf32>
    %cst_52 = arith.constant 0.707106769 : f32
    %88 = vector.broadcast %cst_52 : f32 to vector<96x128xf32>
    %89 = arith.mulf %85, %88 : vector<96x128xf32>
    %90 = math.erf %89 : vector<96x128xf32>
    %cst_53 = arith.constant 1.000000e+00 : f32
    %91 = vector.broadcast %cst_53 : f32 to vector<96x128xf32>
    %92 = arith.addf %91, %90 : vector<96x128xf32>
    %93 = arith.mulf %87, %92 : vector<96x128xf32>
    %cst_54 = arith.constant 0.000000e+00 : f32
    %94 = vector.broadcast %cst_54 : f32 to vector<96x128xf32>
    %95 = arith.select %57, %93, %94 : vector<96x128xi1>, vector<96x128xf32>
    %96 = arith.truncf %95 : vector<96x128xf32> to vector<96x128xbf16>
    %c0_55 = arith.constant 0 : index
    %c7_56 = arith.constant 7 : index
    %97 = vector.load %arg12[%c0_55, %c7_56] : memref<96x168xbf16, #tpu.memory_space<vmem>>, vector<96x128xbf16>
    tpu.vector_store %arg12[%c0_55, %c7_56], %96 {strides = array<i32>} : memref<96x168xbf16, #tpu.memory_space<vmem>>, vector<96x128xbf16>,
    %98 = tpu.iota {dimensions = array<i32: 1>} : vector<32x128xi32>
    %c0_57 = arith.constant 0 : index
    %c5_58 = arith.constant 5 : index
    %99 = vector.load %arg12[%c0_57, %c5_58] : memref<96x168xbf16, #tpu.memory_space<vmem>>, vector<32x128xbf16>
    %c0_59 = arith.constant 0 : index
    %c6_60 = arith.constant 6 : index
    %100 = vector.load %arg12[%c0_59, %c6_60] : memref<96x168xbf16, #tpu.memory_space<vmem>>, vector<32x128xbf16>
    %c0_61 = arith.constant 0 : index
    %c7_62 = arith.constant 7 : index
    %101 = vector.load %arg12[%c0_61, %c7_62] : memref<96x168xbf16, #tpu.memory_space<vmem>>, vector<32x128xbf16>
    %c0_63 = arith.constant 0 : index
    %c8_64 = arith.constant 8 : index
    %102 = vector.load %arg12[%c0_63, %c8_64] : memref<96x168xbf16, #tpu.memory_space<vmem>>, vector<32x128xbf16>
    %c0_65 = arith.constant 0 : index
    %c9_66 = arith.constant 9 : index
    %103 = vector.load %arg12[%c0_65, %c9_66] : memref<96x168xbf16, #tpu.memory_space<vmem>>, vector<32x128xbf16>
    %104 = tpu.concatenate %99, %100, %101, %102, %103 in 0 : vector<32x128xbf16>, vector<32x128xbf16>, vector<32x128xbf16>, vector<32x128xbf16>, vector<32x128xbf16> -> vector<160x128xbf16>
    %c0_67 = arith.constant 0 : index
    %c0_68 = arith.constant 0 : index
    %105 = vector.load %arg3[%c0_67, %c0_68] : memref<32x160xbf16, #tpu.memory_space<vmem>>, vector<32x160xbf16>
    %cst_69 = arith.constant dense<0.000000e+00> : vector<32x128xf32>
    %106 = tpu.matmul %105, %104, %cst_69 {dimension_numbers = #tpu.dot_dimension_numbers<[1], [0], [0], [1], [0, 0, 1, 1], [], []>} : vector<32x160xbf16>, vector<160x128xbf16>, vector<32x128xf32> -> vector<32x128xf32>
    %107 = vector.extract_strided_slice %1 {offsets = [0, 0], sizes = [32, 1], strides = [1, 1]} : vector<32x10xf32> to vector<32x1xf32>
    %108 = vector.broadcast %107 : vector<32x1xf32> to vector<32x128xf32>
    %109 = arith.addf %106, %108 : vector<32x128xf32>
    %c64_i32_70 = arith.constant 64 : i32
    %110 = vector.broadcast %c64_i32_70 : i32 to vector<32x128xi32>
    %111 = arith.cmpi slt, %98, %110 : vector<32x128xi32>
    %cst_71 = arith.constant 0.000000e+00 : f32
    %112 = vector.broadcast %cst_71 : f32 to vector<32x128xf32>
    %113 = arith.select %111, %109, %112 : vector<32x128xi1>, vector<32x128xf32>
    %cst_72 = arith.constant dense<0.000000e+00> : vector<32xf32>
    %114 = vector.multi_reduction <add>, %113, %cst_72 [1] : vector<32x128xf32> to vector<32xf32>
    %115 = vector.shape_cast %114 : vector<32xf32> to vector<32x1xf32>
    %116 = arith.mulf %113, %113 : vector<32x128xf32>
    %cst_73 = arith.constant dense<0.000000e+00> : vector<32xf32>
    %117 = vector.multi_reduction <add>, %116, %cst_73 [1] : vector<32x128xf32> to vector<32xf32>
    %118 = vector.shape_cast %117 : vector<32xf32> to vector<32x1xf32>
    %119 = tpu.concatenate %115, %118 in 1 : vector<32x1xf32>, vector<32x1xf32> -> vector<32x2xf32>
    %cst_74 = arith.constant dense<0.000000e+00> : vector<32x2xf32>
    %120 = tpu.matmul %3, %119, %cst_74 {dimension_numbers = #tpu.dot_dimension_numbers<[1], [0], [0], [1], [0, 0, 1, 1], [], []>} : vector<32x32xf32>, vector<32x2xf32>, vector<32x2xf32> -> vector<32x2xf32>
    %cst_75 = arith.constant 3.906250e-03 : f32
    %121 = vector.broadcast %cst_75 : f32 to vector<32x2xf32>
    %122 = arith.mulf %120, %121 : vector<32x2xf32>
    %123 = vector.extract_strided_slice %122 {offsets = [0, 0], sizes = [32, 1], strides = [1, 1]} : vector<32x2xf32> to vector<32x1xf32>
    %124 = vector.extract_strided_slice %122 {offsets = [0, 1], sizes = [32, 1], strides = [1, 1]} : vector<32x2xf32> to vector<32x1xf32>
    %125 = arith.mulf %123, %123 : vector<32x1xf32>
    %126 = arith.subf %124, %125 : vector<32x1xf32>
    %127 = vector.broadcast %123 : vector<32x1xf32> to vector<32x128xf32>
    %128 = arith.subf %109, %127 : vector<32x128xf32>
    %cst_76 = arith.constant 9.99999974E-6 : f32
    %129 = vector.broadcast %cst_76 : f32 to vector<32x1xf32>
    %130 = arith.addf %126, %129 : vector<32x1xf32>
    %131 = math.rsqrt %130 : vector<32x1xf32>
    %132 = vector.broadcast %131 : vector<32x1xf32> to vector<32x128xf32>
    %133 = arith.mulf %128, %132 : vector<32x128xf32>
    %134 = vector.extract_strided_slice %1 {offsets = [0, 1], sizes = [32, 1], strides = [1, 1]} : vector<32x10xf32> to vector<32x1xf32>
    %135 = vector.broadcast %134 : vector<32x1xf32> to vector<32x128xf32>
    %136 = arith.mulf %133, %135 : vector<32x128xf32>
    %137 = vector.extract_strided_slice %1 {offsets = [0, 2], sizes = [32, 1], strides = [1, 1]} : vector<32x10xf32> to vector<32x1xf32>
    %138 = vector.broadcast %137 : vector<32x1xf32> to vector<32x128xf32>
    %139 = arith.addf %136, %138 : vector<32x128xf32>
    %cst_77 = arith.constant 5.000000e-01 : f32
    %140 = vector.broadcast %cst_77 : f32 to vector<32x128xf32>
    %141 = arith.mulf %140, %139 : vector<32x128xf32>
    %cst_78 = arith.constant 0.707106769 : f32
    %142 = vector.broadcast %cst_78 : f32 to vector<32x128xf32>
    %143 = arith.mulf %139, %142 : vector<32x128xf32>
    %144 = math.erf %143 : vector<32x128xf32>
    %cst_79 = arith.constant 1.000000e+00 : f32
    %145 = vector.broadcast %cst_79 : f32 to vector<32x128xf32>
    %146 = arith.addf %145, %144 : vector<32x128xf32>
    %147 = arith.mulf %141, %146 : vector<32x128xf32>
    %148 = vector.extract_strided_slice %4 {offsets = [0, 0], sizes = [32, 32], strides = [1, 1]} : vector<32x96xbf16> to vector<32x32xbf16>
    %149 = arith.truncf %147 : vector<32x128xf32> to vector<32x128xbf16>
    %cst_80 = arith.constant dense<0.000000e+00> : vector<32x128xf32>
    %150 = tpu.matmul %148, %149, %cst_80 {dimension_numbers = #tpu.dot_dimension_numbers<[1], [0], [0], [1], [0, 0, 1, 1], [], []>} : vector<32x32xbf16>, vector<32x128xbf16>, vector<32x128xf32> -> vector<32x128xf32>
    %c32 = arith.constant 32 : index
    %c2_81 = arith.constant 2 : index
    %151 = vector.load %arg12[%c32, %c2_81] : memref<96x168xbf16, #tpu.memory_space<vmem>>, vector<32x128xbf16>
    %c32_82 = arith.constant 32 : index
    %c5_83 = arith.constant 5 : index
    %152 = vector.load %arg12[%c32_82, %c5_83] : memref<96x168xbf16, #tpu.memory_space<vmem>>, vector<32x128xbf16>
    %c32_84 = arith.constant 32 : index
    %c8_85 = arith.constant 8 : index
    %153 = vector.load %arg12[%c32_84, %c8_85] : memref<96x168xbf16, #tpu.memory_space<vmem>>, vector<32x128xbf16>
    %c32_86 = arith.constant 32 : index
    %c11 = arith.constant 11 : index
    %154 = vector.load %arg12[%c32_86, %c11] : memref<96x168xbf16, #tpu.memory_space<vmem>>, vector<32x128xbf16>
    %c32_87 = arith.constant 32 : index
    %c14_88 = arith.constant 14 : index
    %155 = vector.load %arg12[%c32_87, %c14_88] : memref<96x168xbf16, #tpu.memory_space<vmem>>, vector<32x128xbf16>
    %c32_89 = arith.constant 32 : index
    %c17 = arith.constant 17 : index
    %156 = vector.load %arg12[%c32_89, %c17] : memref<96x168xbf16, #tpu.memory_space<vmem>>, vector<32x128xbf16>
    %c32_90 = arith.constant 32 : index
    %c20_91 = arith.constant 20 : index
    %157 = vector.load %arg12[%c32_90, %c20_91] : memref<96x168xbf16, #tpu.memory_space<vmem>>, vector<32x128xbf16>
    %c32_92 = arith.constant 32 : index
    %c23 = arith.constant 23 : index
    %158 = vector.load %arg12[%c32_92, %c23] : memref<96x168xbf16, #tpu.memory_space<vmem>>, vector<32x128xbf16>
    %c32_93 = arith.constant 32 : index
    %c26_94 = arith.constant 26 : index
    %159 = vector.load %arg12[%c32_93, %c26_94] : memref<96x168xbf16, #tpu.memory_space<vmem>>, vector<32x128xbf16>
    %c32_95 = arith.constant 32 : index
    %c29 = arith.constant 29 : index
    %160 = vector.load %arg12[%c32_95, %c29] : memref<96x168xbf16, #tpu.memory_space<vmem>>, vector<32x128xbf16>
    %c32_96 = arith.constant 32 : index
    %c32_97 = arith.constant 32 : index
    %161 = vector.load %arg12[%c32_96, %c32_97] : memref<96x168xbf16, #tpu.memory_space<vmem>>, vector<32x128xbf16>
    %162 = tpu.concatenate %151, %152, %153, %154, %155, %156, %157, %158, %159, %160, %161 in 0 : vector<32x128xbf16>, vector<32x128xbf16>, vector<32x128xbf16>, vector<32x128xbf16>, vector<32x128xbf16>, vector<32x128xbf16>, vector<32x128xbf16>, vector<32x128xbf16>, vector<32x128xbf16>, vector<32x128xbf16>, vector<32x128xbf16> -> vector<352x128xbf16>
    %c0_98 = arith.constant 0 : index
    %c0_99 = arith.constant 0 : index
    %163 = vector.load %arg4[%c0_98, %c0_99] : memref<32x352xbf16, #tpu.memory_space<vmem>>, vector<32x352xbf16>
    %cst_100 = arith.constant dense<0.000000e+00> : vector<32x128xf32>
    %164 = tpu.matmul %163, %162, %cst_100 {dimension_numbers = #tpu.dot_dimension_numbers<[1], [0], [0], [1], [0, 0, 1, 1], [], []>} : vector<32x352xbf16>, vector<352x128xbf16>, vector<32x128xf32> -> vector<32x128xf32>
    %165 = vector.extract_strided_slice %1 {offsets = [0, 3], sizes = [32, 1], strides = [1, 1]} : vector<32x10xf32> to vector<32x1xf32>
    %166 = vector.broadcast %165 : vector<32x1xf32> to vector<32x128xf32>
    %167 = arith.addf %164, %166 : vector<32x128xf32>
    %c30_i32 = arith.constant 30 : i32
    %168 = vector.broadcast %c30_i32 : i32 to vector<32x128xi32>
    %169 = arith.cmpi slt, %98, %168 : vector<32x128xi32>
    %cst_101 = arith.constant 0.000000e+00 : f32
    %170 = vector.broadcast %cst_101 : f32 to vector<32x128xf32>
    %171 = arith.select %169, %167, %170 : vector<32x128xi1>, vector<32x128xf32>
    %cst_102 = arith.constant dense<0.000000e+00> : vector<32xf32>
    %172 = vector.multi_reduction <add>, %171, %cst_102 [1] : vector<32x128xf32> to vector<32xf32>
    %173 = vector.shape_cast %172 : vector<32xf32> to vector<32x1xf32>
    %174 = arith.mulf %171, %171 : vector<32x128xf32>
    %cst_103 = arith.constant dense<0.000000e+00> : vector<32xf32>
    %175 = vector.multi_reduction <add>, %174, %cst_103 [1] : vector<32x128xf32> to vector<32xf32>
    %176 = vector.shape_cast %175 : vector<32xf32> to vector<32x1xf32>
    %177 = tpu.concatenate %173, %176 in 1 : vector<32x1xf32>, vector<32x1xf32> -> vector<32x2xf32>
    %cst_104 = arith.constant dense<0.000000e+00> : vector<32x2xf32>
    %178 = tpu.matmul %3, %177, %cst_104 {dimension_numbers = #tpu.dot_dimension_numbers<[1], [0], [0], [1], [0, 0, 1, 1], [], []>} : vector<32x32xf32>, vector<32x2xf32>, vector<32x2xf32> -> vector<32x2xf32>
    %cst_105 = arith.constant 0.00833333377 : f32
    %179 = vector.broadcast %cst_105 : f32 to vector<32x2xf32>
    %180 = arith.mulf %178, %179 : vector<32x2xf32>
    %181 = vector.extract_strided_slice %180 {offsets = [0, 0], sizes = [32, 1], strides = [1, 1]} : vector<32x2xf32> to vector<32x1xf32>
    %182 = vector.extract_strided_slice %180 {offsets = [0, 1], sizes = [32, 1], strides = [1, 1]} : vector<32x2xf32> to vector<32x1xf32>
    %183 = arith.mulf %181, %181 : vector<32x1xf32>
    %184 = arith.subf %182, %183 : vector<32x1xf32>
    %185 = vector.broadcast %181 : vector<32x1xf32> to vector<32x128xf32>
    %186 = arith.subf %167, %185 : vector<32x128xf32>
    %cst_106 = arith.constant 9.99999974E-6 : f32
    %187 = vector.broadcast %cst_106 : f32 to vector<32x1xf32>
    %188 = arith.addf %184, %187 : vector<32x1xf32>
    %189 = math.rsqrt %188 : vector<32x1xf32>
    %190 = vector.broadcast %189 : vector<32x1xf32> to vector<32x128xf32>
    %191 = arith.mulf %186, %190 : vector<32x128xf32>
    %192 = vector.extract_strided_slice %1 {offsets = [0, 4], sizes = [32, 1], strides = [1, 1]} : vector<32x10xf32> to vector<32x1xf32>
    %193 = vector.broadcast %192 : vector<32x1xf32> to vector<32x128xf32>
    %194 = arith.mulf %191, %193 : vector<32x128xf32>
    %195 = vector.extract_strided_slice %1 {offsets = [0, 5], sizes = [32, 1], strides = [1, 1]} : vector<32x10xf32> to vector<32x1xf32>
    %196 = vector.broadcast %195 : vector<32x1xf32> to vector<32x128xf32>
    %197 = arith.addf %194, %196 : vector<32x128xf32>
    %cst_107 = arith.constant 5.000000e-01 : f32
    %198 = vector.broadcast %cst_107 : f32 to vector<32x128xf32>
    %199 = arith.mulf %198, %197 : vector<32x128xf32>
    %cst_108 = arith.constant 0.707106769 : f32
    %200 = vector.broadcast %cst_108 : f32 to vector<32x128xf32>
    %201 = arith.mulf %197, %200 : vector<32x128xf32>
    %202 = math.erf %201 : vector<32x128xf32>
    %cst_109 = arith.constant 1.000000e+00 : f32
    %203 = vector.broadcast %cst_109 : f32 to vector<32x128xf32>
    %204 = arith.addf %203, %202 : vector<32x128xf32>
    %205 = arith.mulf %199, %204 : vector<32x128xf32>
    %206 = vector.extract_strided_slice %4 {offsets = [0, 32], sizes = [32, 32], strides = [1, 1]} : vector<32x96xbf16> to vector<32x32xbf16>
    %207 = arith.truncf %205 : vector<32x128xf32> to vector<32x128xbf16>
    %cst_110 = arith.constant dense<0.000000e+00> : vector<32x128xf32>
    %208 = tpu.matmul %206, %207, %cst_110 {dimension_numbers = #tpu.dot_dimension_numbers<[1], [0], [0], [1], [0, 0, 1, 1], [], []>} : vector<32x32xbf16>, vector<32x128xbf16>, vector<32x128xf32> -> vector<32x128xf32>
    %209 = arith.addf %150, %208 : vector<32x128xf32>
    %c64 = arith.constant 64 : index
    %c6_111 = arith.constant 6 : index
    %210 = vector.load %arg12[%c64, %c6_111] : memref<96x168xbf16, #tpu.memory_space<vmem>>, vector<32x128xbf16>
    %c64_112 = arith.constant 64 : index
    %c7_113 = arith.constant 7 : index
    %211 = vector.load %arg12[%c64_112, %c7_113] : memref<96x168xbf16, #tpu.memory_space<vmem>>, vector<32x128xbf16>
    %c64_114 = arith.constant 64 : index
    %c8_115 = arith.constant 8 : index
    %212 = vector.load %arg12[%c64_114, %c8_115] : memref<96x168xbf16, #tpu.memory_space<vmem>>, vector<32x128xbf16>
    %213 = tpu.concatenate %210, %211, %212 in 0 : vector<32x128xbf16>, vector<32x128xbf16>, vector<32x128xbf16> -> vector<96x128xbf16>
    %c0_116 = arith.constant 0 : index
    %c0_117 = arith.constant 0 : index
    %214 = vector.load %arg5[%c0_116, %c0_117] : memref<32x96xbf16, #tpu.memory_space<vmem>>, vector<32x96xbf16>
    %cst_118 = arith.constant dense<0.000000e+00> : vector<32x128xf32>
    %215 = tpu.matmul %214, %213, %cst_118 {dimension_numbers = #tpu.dot_dimension_numbers<[1], [0], [0], [1], [0, 0, 1, 1], [], []>} : vector<32x96xbf16>, vector<96x128xbf16>, vector<32x128xf32> -> vector<32x128xf32>
    %216 = vector.extract_strided_slice %1 {offsets = [0, 6], sizes = [32, 1], strides = [1, 1]} : vector<32x10xf32> to vector<32x1xf32>
    %217 = vector.broadcast %216 : vector<32x1xf32> to vector<32x128xf32>
    %218 = arith.addf %215, %217 : vector<32x128xf32>
    %c64_i32_119 = arith.constant 64 : i32
    %219 = vector.broadcast %c64_i32_119 : i32 to vector<32x128xi32>
    %220 = arith.cmpi slt, %98, %219 : vector<32x128xi32>
    %cst_120 = arith.constant 0.000000e+00 : f32
    %221 = vector.broadcast %cst_120 : f32 to vector<32x128xf32>
    %222 = arith.select %220, %218, %221 : vector<32x128xi1>, vector<32x128xf32>
    %cst_121 = arith.constant dense<0.000000e+00> : vector<32xf32>
    %223 = vector.multi_reduction <add>, %222, %cst_121 [1] : vector<32x128xf32> to vector<32xf32>
    %224 = vector.shape_cast %223 : vector<32xf32> to vector<32x1xf32>
    %225 = arith.mulf %222, %222 : vector<32x128xf32>
    %cst_122 = arith.constant dense<0.000000e+00> : vector<32xf32>
    %226 = vector.multi_reduction <add>, %225, %cst_122 [1] : vector<32x128xf32> to vector<32xf32>
    %227 = vector.shape_cast %226 : vector<32xf32> to vector<32x1xf32>
    %228 = tpu.concatenate %224, %227 in 1 : vector<32x1xf32>, vector<32x1xf32> -> vector<32x2xf32>
    %cst_123 = arith.constant dense<0.000000e+00> : vector<32x2xf32>
    %229 = tpu.matmul %3, %228, %cst_123 {dimension_numbers = #tpu.dot_dimension_numbers<[1], [0], [0], [1], [0, 0, 1, 1], [], []>} : vector<32x32xf32>, vector<32x2xf32>, vector<32x2xf32> -> vector<32x2xf32>
    %cst_124 = arith.constant 3.906250e-03 : f32
    %230 = vector.broadcast %cst_124 : f32 to vector<32x2xf32>
    %231 = arith.mulf %229, %230 : vector<32x2xf32>
    %232 = vector.extract_strided_slice %231 {offsets = [0, 0], sizes = [32, 1], strides = [1, 1]} : vector<32x2xf32> to vector<32x1xf32>
    %233 = vector.extract_strided_slice %231 {offsets = [0, 1], sizes = [32, 1], strides = [1, 1]} : vector<32x2xf32> to vector<32x1xf32>
    %234 = arith.mulf %232, %232 : vector<32x1xf32>
    %235 = arith.subf %233, %234 : vector<32x1xf32>
    %236 = vector.broadcast %232 : vector<32x1xf32> to vector<32x128xf32>
    %237 = arith.subf %218, %236 : vector<32x128xf32>
    %cst_125 = arith.constant 9.99999974E-6 : f32
    %238 = vector.broadcast %cst_125 : f32 to vector<32x1xf32>
    %239 = arith.addf %235, %238 : vector<32x1xf32>
    %240 = math.rsqrt %239 : vector<32x1xf32>
    %241 = vector.broadcast %240 : vector<32x1xf32> to vector<32x128xf32>
    %242 = arith.mulf %237, %241 : vector<32x128xf32>
    %243 = vector.extract_strided_slice %1 {offsets = [0, 7], sizes = [32, 1], strides = [1, 1]} : vector<32x10xf32> to vector<32x1xf32>
    %244 = vector.broadcast %243 : vector<32x1xf32> to vector<32x128xf32>
    %245 = arith.mulf %242, %244 : vector<32x128xf32>
    %246 = vector.extract_strided_slice %1 {offsets = [0, 8], sizes = [32, 1], strides = [1, 1]} : vector<32x10xf32> to vector<32x1xf32>
    %247 = vector.broadcast %246 : vector<32x1xf32> to vector<32x128xf32>
    %248 = arith.addf %245, %247 : vector<32x128xf32>
    %cst_126 = arith.constant 5.000000e-01 : f32
    %249 = vector.broadcast %cst_126 : f32 to vector<32x128xf32>
    %250 = arith.mulf %249, %248 : vector<32x128xf32>
    %cst_127 = arith.constant 0.707106769 : f32
    %251 = vector.broadcast %cst_127 : f32 to vector<32x128xf32>
    %252 = arith.mulf %248, %251 : vector<32x128xf32>
    %253 = math.erf %252 : vector<32x128xf32>
    %cst_128 = arith.constant 1.000000e+00 : f32
    %254 = vector.broadcast %cst_128 : f32 to vector<32x128xf32>
    %255 = arith.addf %254, %253 : vector<32x128xf32>
    %256 = arith.mulf %250, %255 : vector<32x128xf32>
    %257 = vector.extract_strided_slice %4 {offsets = [0, 64], sizes = [32, 32], strides = [1, 1]} : vector<32x96xbf16> to vector<32x32xbf16>
    %258 = arith.truncf %256 : vector<32x128xf32> to vector<32x128xbf16>
    %cst_129 = arith.constant dense<0.000000e+00> : vector<32x128xf32>
    %259 = tpu.matmul %257, %258, %cst_129 {dimension_numbers = #tpu.dot_dimension_numbers<[1], [0], [0], [1], [0, 0, 1, 1], [], []>} : vector<32x32xbf16>, vector<32x128xbf16>, vector<32x128xf32> -> vector<32x128xf32>
    %260 = arith.addf %209, %259 : vector<32x128xf32>
    %261 = vector.extract_strided_slice %1 {offsets = [0, 9], sizes = [32, 1], strides = [1, 1]} : vector<32x10xf32> to vector<32x1xf32>
    %262 = vector.broadcast %261 : vector<32x1xf32> to vector<32x128xf32>
    %263 = arith.addf %260, %262 : vector<32x128xf32>
    %c0_130 = arith.constant 0 : index
    %c0_131 = arith.constant 0 : index
    %c0_132 = arith.constant 0 : index
    %264 = vector.load %arg10[%c0_130, %c0_131, %c0_132] : memref<1x32x128xf32, #tpu.memory_space<vmem>>, vector<1x32x128xf32>
    %265 = vector.shape_cast %264 : vector<1x32x128xf32> to vector<32x128xf32>
    %266 = vector.shape_cast %263 : vector<32x128xf32> to vector<1x32x128xf32>
    tpu.vector_store %arg10[%c0_130, %c0_131, %c0_132], %266 {strides = array<i32>} : memref<1x32x128xf32, #tpu.memory_space<vmem>>, vector<1x32x128xf32>,
    return
  }
  func.func @transform_0(%arg0: i32) -> (i32, i32, i32) {
    %c0_i32 = arith.constant 0 : i32
    %c0_i32_0 = arith.constant 0 : i32
    %c0_i32_1 = arith.constant 0 : i32
    return %arg0, %c0_i32, %c0_i32_0 : i32, i32, i32
  }
  func.func @transform_1(%arg0: i32) -> (i32, i32) {
    %c0_i32 = arith.constant 0 : i32
    %c0_i32_0 = arith.constant 0 : i32
    %c0_i32_1 = arith.constant 0 : i32
    return %c0_i32, %c0_i32_0 : i32, i32
  }
  func.func @transform_2(%arg0: i32) -> (i32, i32) {
    %c0_i32 = arith.constant 0 : i32
    %c0_i32_0 = arith.constant 0 : i32
    %c0_i32_1 = arith.constant 0 : i32
    return %c0_i32, %c0_i32_0 : i32, i32
  }
  func.func @transform_3(%arg0: i32) -> (i32, i32) {
    %c0_i32 = arith.constant 0 : i32
    %c0_i32_0 = arith.constant 0 : i32
    %c0_i32_1 = arith.constant 0 : i32
    return %c0_i32, %c0_i32_0 : i32, i32
  }
  func.func @transform_4(%arg0: i32) -> (i32, i32) {
    %c0_i32 = arith.constant 0 : i32
    %c0_i32_0 = arith.constant 0 : i32
    %c0_i32_1 = arith.constant 0 : i32
    return %c0_i32, %c0_i32_0 : i32, i32
  }
  func.func @transform_5(%arg0: i32) -> (i32, i32) {
    %c0_i32 = arith.constant 0 : i32
    %c0_i32_0 = arith.constant 0 : i32
    %c0_i32_1 = arith.constant 0 : i32
    return %c0_i32, %c0_i32_0 : i32, i32
  }
  func.func @transform_6(%arg0: i32) -> (i32, i32) {
    %c0_i32 = arith.constant 0 : i32
    %c0_i32_0 = arith.constant 0 : i32
    %c0_i32_1 = arith.constant 0 : i32
    return %c0_i32, %c0_i32_0 : i32, i32
  }
  func.func @transform_7(%arg0: i32) -> (i32, i32) {
    %c0_i32 = arith.constant 0 : i32
    %c0_i32_0 = arith.constant 0 : i32
    %c0_i32_1 = arith.constant 0 : i32
    return %c0_i32, %c0_i32_0 : i32, i32
  }
  func.func @transform_8(%arg0: i32) -> (i32, i32) {
    %c0_i32 = arith.constant 0 : i32
    %c0_i32_0 = arith.constant 0 : i32
    %c0_i32_1 = arith.constant 0 : i32
    return %c0_i32, %c0_i32_0 : i32, i32
  }
  func.func @transform_9(%arg0: i32) -> (i32, i32, i32) {
    %c0_i32 = arith.constant 0 : i32
    %c0_i32_0 = arith.constant 0 : i32
    %c0_i32_1 = arith.constant 0 : i32
    return %arg0, %c0_i32, %c0_i32_0 : i32, i32, i32
  }
}

</mosaic_0001>

<llo_original>
// kernel: music_feature_extractor.1
$region0: #{music_feature_extractor.1}
  #allocation0 [shape = 'u32[]', space=smem, size = 0x4, offset = 0x4, fixed_abs, tag = 'smem constant byte address 0x4 - core index']
  #allocation1 [shape = 'u32[144,128]{1,0:T(1,128)}', space=vmem, size = 0x12000, scoped, tag = 'internal scratch']
  #allocation2 [shape = 'f32[8,168]{1,0:T(8,128)}', space=vmem, size = 0x2000, scoped, tag = 'scratch operand']
  #allocation3 [shape = 'bf16[96,168]{1,0:T(16,128)(2,1)}', space=vmem, size = 0xc000, scoped, tag = 'scratch operand']
  %s0 = inlined_call_operand.vmem [shape: f32[2,8,64], index: 0, kind: input, shape index: {}]
  %s1 = inlined_call_operand.vmem [shape: bf16[96,144], index: 1, kind: input, shape index: {}]
  %s2 = inlined_call_operand.vmem [shape: bf16[32,160], index: 2, kind: input, shape index: {}]
  %s3 = inlined_call_operand.vmem [shape: bf16[32,352], index: 3, kind: input, shape index: {}]
  %s4 = inlined_call_operand.vmem [shape: bf16[32,96], index: 4, kind: input, shape index: {}]
  %s5 = inlined_call_operand.vmem [shape: bf16[32,96], index: 5, kind: input, shape index: {}]
  %s6 = inlined_call_operand.vmem [shape: f32[96,3], index: 6, kind: input, shape index: {}]
  %s7 = inlined_call_operand.vmem [shape: f32[32,10], index: 7, kind: input, shape index: {}]
  %s8 = inlined_call_operand.vmem [shape: f32[96,96], index: 8, kind: input, shape index: {}]
  %s9 = inlined_call_operand.vmem [shape: f32[2,32,128], index: 9, kind: output, shape index: {}]
  %s10 = sld [smem:[#allocation0]]
  $region69: #{music_feature_extractor.1} parent=0
    _
  %s12 = ssub.s32 1, %s10
  %s13 = scalar_select 0, %s12, %s10
  loop: start=0, step=1, limit=4
  $region2: #{music_feature_extractor.1} parent=0 // loop_pre_header
    _
  $region3: #{music_feature_extractor.1} parent=0 // loop_header
    %s15 = sphi 0, %s19
    %p16 = scmp.ge.s32.totalorder %s15, 4
    %s25 = sphi 0, %s27
    %s28 = sphi 0, %s25
    %s29 = sphi 0, %s28
    %s45 = sphi 0, %s29
    %s49 = sphi 0, %s49
    %s51 = sphi 0, %s49
    %s52 = sphi 0, %s51
    %s66 = sphi 0, %s52
    %s70 = sphi 0, %s70
    %s72 = sphi 0, %s70
    %s73 = sphi 0, %s72
    %s87 = sphi 0, %s73
    %s91 = sphi 0, %s91
    %s93 = sphi 0, %s91
    %s94 = sphi 0, %s93
    %s108 = sphi 0, %s94
    %s112 = sphi 0, %s112
    %s114 = sphi 0, %s112
    %s115 = sphi 0, %s114
    %s129 = sphi 0, %s115
    %s133 = sphi 0, %s133
    %s135 = sphi 0, %s133
    %s136 = sphi 0, %s135
    %s150 = sphi 0, %s136
    %s154 = sphi 0, %s154
    %s156 = sphi 0, %s154
    %s157 = sphi 0, %s156
    %s171 = sphi 0, %s157
    %s175 = sphi 0, %s175
    %s177 = sphi 0, %s175
    %s178 = sphi 0, %s177
    %s192 = sphi 0, %s178
    %s196 = sphi 0, %s196
    %s198 = sphi 0, %s196
    %s199 = sphi 0, %s198
    %s213 = sphi 0, %s199
    %s219 = sphi 0, %s221
    %s222 = sphi 0, %s219
    %s223 = sphi 0, %s222
    %s239 = sphi 0, %s223
  $region4: #{music_feature_extractor.1} parent=0 // loop_header_branch
    %18 = sbr.rel (%p16) target = $region8
  $region5: #{music_feature_extractor.1} parent=0 // loop_body
    %s20 = ssub.s32 %s15, 1
    %s21 = ssub.s32 %s15, 2
    %s22 = sadd.s32 %s15, 1
    %s23 = ssub.s32 %s15, %s22
    %p24 = scmp.eq.s32.totalorder %s23, 0
    %s26 = sadd.s32 %s25, 1
    %s27 = scalar_select %p24, %s25, %s26
    %p30 = pneg %p24
    %p31 = scmp.eq.s32.totalorder %s15, 1
    %p32 = por %p30, %p31
    %p33 = scmp.ne.s32.totalorder %s25, %s28
    %p34 = scmp.eq.s32.totalorder %s15, 0
    %p35 = por %p33, %p34
    %p36 = scmp.ne.s32.totalorder %s25, %s28
    %p37 = scmp.eq.s32.totalorder %s20, 1
    %p38 = por %p36, %p37
    %p39 = scmp.ne.s32.totalorder %s28, %s29
    %p40 = scmp.eq.s32.totalorder %s20, 0
    %p41 = por %p39, %p40
    %p42 = scmp.ne.s32.totalorder %s28, %s29
    %p43 = scmp.eq.s32.totalorder %s21, 1
    %p44 = por %p42, %p43
    %p46 = scmp.ne.s32.totalorder %s29, %s45
    %p47 = scmp.eq.s32.totalorder %s21, 0
    %p48 = por %p46, %p47
    %s50 = sadd.s32 %s49, 1
    %p53 = scmp.eq.s32.totalorder %s15, 1
    %p54 = scmp.ne.s32.totalorder %s49, %s51
    %p55 = scmp.eq.s32.totalorder %s15, 0
    %p56 = por %p54, %p55
    %p57 = scmp.ne.s32.totalorder %s49, %s51
    %p58 = scmp.eq.s32.totalorder %s20, 1
    %p59 = por %p57, %p58
    %p60 = scmp.ne.s32.totalorder %s51, %s52
    %p61 = scmp.eq.s32.totalorder %s20, 0
    %p62 = por %p60, %p61
    %p63 = scmp.ne.s32.totalorder %s51, %s52
    %p64 = scmp.eq.s32.totalorder %s21, 1
    %p65 = por %p63, %p64
    %p67 = scmp.ne.s32.totalorder %s52, %s66
    %p68 = scmp.eq.s32.totalorder %s21, 0
    %p69 = por %p67, %p68
    %s71 = sadd.s32 %s70, 1
    %p74 = scmp.eq.s32.totalorder %s15, 1
    %p75 = scmp.ne.s32.totalorder %s70, %s72
    %p76 = scmp.eq.s32.totalorder %s15, 0
    %p77 = por %p75, %p76
    %p78 = scmp.ne.s32.totalorder %s70, %s72
    %p79 = scmp.eq.s32.totalorder %s20, 1
    %p80 = por %p78, %p79
    %p81 = scmp.ne.s32.totalorder %s72, %s73
    %p82 = scmp.eq.s32.totalorder %s20, 0
    %p83 = por %p81, %p82
    %p84 = scmp.ne.s32.totalorder %s72, %s73
    %p85 = scmp.eq.s32.totalorder %s21, 1
    %p86 = por %p84, %p85
    %p88 = scmp.ne.s32.totalorder %s73, %s87
    %p89 = scmp.eq.s32.totalorder %s21, 0
    %p90 = por %p88, %p89
    %s92 = sadd.s32 %s91, 1
    %p95 = scmp.eq.s32.totalorder %s15, 1
    %p96 = scmp.ne.s32.totalorder %s91, %s93
    %p97 = scmp.eq.s32.totalorder %s15, 0
    %p98 = por %p96, %p97
    %p99 = scmp.ne.s32.totalorder %s91, %s93
    %p100 = scmp.eq.s32.totalorder %s20, 1
    %p101 = por %p99, %p100
    %p102 = scmp.ne.s32.totalorder %s93, %s94
    %p103 = scmp.eq.s32.totalorder %s20, 0
    %p104 = por %p102, %p103
    %p105 = scmp.ne.s32.totalorder %s93, %s94
    %p106 = scmp.eq.s32.totalorder %s21, 1
    %p107 = por %p105, %p106
    %p109 = scmp.ne.s32.totalorder %s94, %s108
    %p110 = scmp.eq.s32.totalorder %s21, 0
    %p111 = por %p109, %p110
    %s113 = sadd.s32 %s112, 1
    %p116 = scmp.eq.s32.totalorder %s15, 1
    %p117 = scmp.ne.s32.totalorder %s112, %s114
    %p118 = scmp.eq.s32.totalorder %s15, 0
    %p119 = por %p117, %p118
    %p120 = scmp.ne.s32.totalorder %s112, %s114
    %p121 = scmp.eq.s32.totalorder %s20, 1
    %p122 = por %p120, %p121
    %p123 = scmp.ne.s32.totalorder %s114, %s115
    %p124 = scmp.eq.s32.totalorder %s20, 0
    %p125 = por %p123, %p124
    %p126 = scmp.ne.s32.totalorder %s114, %s115
    %p127 = scmp.eq.s32.totalorder %s21, 1
    %p128 = por %p126, %p127
    %p130 = scmp.ne.s32.totalorder %s115, %s129
    %p131 = scmp.eq.s32.totalorder %s21, 0
    %p132 = por %p130, %p131
    %s134 = sadd.s32 %s133, 1
    %p137 = scmp.eq.s32.totalorder %s15, 1
    %p138 = scmp.ne.s32.totalorder %s133, %s135
    %p139 = scmp.eq.s32.totalorder %s15, 0
    %p140 = por %p138, %p139
    %p141 = scmp.ne.s32.totalorder %s133, %s135
    %p142 = scmp.eq.s32.totalorder %s20, 1
    %p143 = por %p141, %p142
    %p144 = scmp.ne.s32.totalorder %s135, %s136
    %p145 = scmp.eq.s32.totalorder %s20, 0
    %p146 = por %p144, %p145
    %p147 = scmp.ne.s32.totalorder %s135, %s136
    %p148 = scmp.eq.s32.totalorder %s21, 1
    %p149 = por %p147, %p148
    %p151 = scmp.ne.s32.totalorder %s136, %s150
    %p152 = scmp.eq.s32.totalorder %s21, 0
    %p153 = por %p151, %p152
    %s155 = sadd.s32 %s154, 1
    %p158 = scmp.eq.s32.totalorder %s15, 1
    %p159 = scmp.ne.s32.totalorder %s154, %s156
    %p160 = scmp.eq.s32.totalorder %s15, 0
    %p161 = por %p159, %p160
    %p162 = scmp.ne.s32.totalorder %s154, %s156
    %p163 = scmp.eq.s32.totalorder %s20, 1
    %p164 = por %p162, %p163
    %p165 = scmp.ne.s32.totalorder %s156, %s157
    %p166 = scmp.eq.s32.totalorder %s20, 0
    %p167 = por %p165, %p166
    %p168 = scmp.ne.s32.totalorder %s156, %s157
    %p169 = scmp.eq.s32.totalorder %s21, 1
    %p170 = por %p168, %p169
    %p172 = scmp.ne.s32.totalorder %s157, %s171
    %p173 = scmp.eq.s32.totalorder %s21, 0
    %p174 = por %p172, %p173
    %s176 = sadd.s32 %s175, 1
    %p179 = scmp.eq.s32.totalorder %s15, 1
    %p180 = scmp.ne.s32.totalorder %s175, %s177
    %p181 = scmp.eq.s32.totalorder %s15, 0
    %p182 = por %p180, %p181
    %p183 = scmp.ne.s32.totalorder %s175, %s177
    %p184 = scmp.eq.s32.totalorder %s20, 1
    %p185 = por %p183, %p184
    %p186 = scmp.ne.s32.totalorder %s177, %s178
    %p187 = scmp.eq.s32.totalorder %s20, 0
    %p188 = por %p186, %p187
    %p189 = scmp.ne.s32.totalorder %s177, %s178
    %p190 = scmp.eq.s32.totalorder %s21, 1
    %p191 = por %p189, %p190
    %p193 = scmp.ne.s32.totalorder %s178, %s192
    %p194 = scmp.eq.s32.totalorder %s21, 0
    %p195 = por %p193, %p194
    %s197 = sadd.s32 %s196, 1
    %p200 = scmp.eq.s32.totalorder %s15, 1
    %p201 = scmp.ne.s32.totalorder %s196, %s198
    %p202 = scmp.eq.s32.totalorder %s15, 0
    %p203 = por %p201, %p202
    %p204 = scmp.ne.s32.totalorder %s196, %s198
    %p205 = scmp.eq.s32.totalorder %s20, 1
    %p206 = por %p204, %p205
    %p207 = scmp.ne.s32.totalorder %s198, %s199
    %p208 = scmp.eq.s32.totalorder %s20, 0
    %p209 = por %p207, %p208
    %p210 = scmp.ne.s32.totalorder %s198, %s199
    %p211 = scmp.eq.s32.totalorder %s21, 1
    %p212 = por %p210, %p211
    %p214 = scmp.ne.s32.totalorder %s199, %s213
    %p215 = scmp.eq.s32.totalorder %s21, 0
    %p216 = por %p214, %p215
    %s217 = ssub.s32 %s15, %s22
    %p218 = scmp.eq.s32.totalorder %s217, 0
    %s220 = sadd.s32 %s219, 1
    %s221 = scalar_select %p218, %s219, %s220
    %p224 = pneg %p218
    %p225 = scmp.eq.s32.totalorder %s15, 1
    %p226 = por %p224, %p225
    %p227 = scmp.ne.s32.totalorder %s219, %s222
    %p228 = scmp.eq.s32.totalorder %s15, 0
    %p229 = por %p227, %p228
    %p230 = scmp.ne.s32.totalorder %s219, %s222
    %p231 = scmp.eq.s32.totalorder %s20, 1
    %p232 = por %p230, %p231
    %p233 = scmp.ne.s32.totalorder %s222, %s223
    %p234 = scmp.eq.s32.totalorder %s20, 0
    %p235 = por %p233, %p234
    %p236 = scmp.ne.s32.totalorder %s222, %s223
    %p237 = scmp.eq.s32.totalorder %s21, 1
    %p238 = por %p236, %p237
    %p240 = scmp.ne.s32.totalorder %s223, %s239
    %p241 = scmp.eq.s32.totalorder %s21, 0
    %p242 = por %p240, %p241
    %p243 = scmp.le.s32.totalorder 1, %s15
    %p244 = scmp.lt.s32.totalorder %s15, 3
    %p245 = pnand %p243, %p244
    %p246 = pneg %p245
    // Predicated region
    $region9: #{music_feature_extractor.1} parent=5 // pred_check
      _
    $region10: #{music_feature_extractor.1} parent=5 // pred_check_branch
      %248 = sbr.rel (%p245) target = $region12
    $region11: #{music_feature_extractor.1} parent=5 // pred_region
      %s249 = ssub.s32 %s15, 1
      // Predicated region
      $region13: #{music_feature_extractor.1} parent=11 // pred_check
        %p250 = pneg %p62
      $region14: #{music_feature_extractor.1} parent=11 // pred_check_branch
        %252 = sbr.rel (%p250) target = $region16
      $region15: #{music_feature_extractor.1} parent=11 // pred_region
        _
      $region16: #{music_feature_extractor.1} parent=11 // pred_fallthru
        _
      // Predicated region
      $region17: #{music_feature_extractor.1} parent=11 // pred_check
        %p253 = pneg %p83
      $region18: #{music_feature_extractor.1} parent=11 // pred_check_branch
        %255 = sbr.rel (%p253) target = $region20
      $region19: #{music_feature_extractor.1} parent=11 // pred_region
        _
      $region20: #{music_feature_extractor.1} parent=11 // pred_fallthru
        _
      // Predicated region
      $region21: #{music_feature_extractor.1} parent=11 // pred_check
        %p256 = pneg %p104
      $region22: #{music_feature_extractor.1} parent=11 // pred_check_branch
        %258 = sbr.rel (%p256) target = $region24
      $region23: #{music_feature_extractor.1} parent=11 // pred_region
        _
      $region24: #{music_feature_extractor.1} parent=11 // pred_fallthru
        _
      // Predicated region
      $region25: #{music_feature_extractor.1} parent=11 // pred_check
        %p259 = pneg %p125
      $region26: #{music_feature_extractor.1} parent=11 // pred_check_branch
        %261 = sbr.rel (%p259) target = $region28
      $region27: #{music_feature_extractor.1} parent=11 // pred_region
        _
      $region28: #{music_feature_extractor.1} parent=11 // pred_fallthru
        _
      // Predicated region
      $region29: #{music_feature_extractor.1} parent=11 // pred_check
        %p262 = pneg %p146
      $region30: #{music_feature_extractor.1} parent=11 // pred_check_branch
        %264 = sbr.rel (%p262) target = $region32
      $region31: #{music_feature_extractor.1} parent=11 // pred_region
        _
      $region32: #{music_feature_extractor.1} parent=11 // pred_fallthru
        _
      // Predicated region
      $region33: #{music_feature_extractor.1} parent=11 // pred_check
        %p265 = pneg %p167
      $region34: #{music_feature_extractor.1} parent=11 // pred_check_branch
        %267 = sbr.rel (%p265) target = $region36
      $region35: #{music_feature_extractor.1} parent=11 // pred_region
        _
      $region36: #{music_feature_extractor.1} parent=11 // pred_fallthru
        _
      // Predicated region
      $region37: #{music_feature_extractor.1} parent=11 // pred_check
        %p268 = pneg %p188
      $region38: #{music_feature_extractor.1} parent=11 // pred_check_branch
        %270 = sbr.rel (%p268) target = $region40
      $region39: #{music_feature_extractor.1} parent=11 // pred_region
        _
      $region40: #{music_feature_extractor.1} parent=11 // pred_fallthru
        _
      // Predicated region
      $region41: #{music_feature_extractor.1} parent=11 // pred_check
        %p271 = pneg %p209
      $region42: #{music_feature_extractor.1} parent=11 // pred_check_branch
        %273 = sbr.rel (%p271) target = $region44
      $region43: #{music_feature_extractor.1} parent=11 // pred_region
        _
      $region44: #{music_feature_extractor.1} parent=11 // pred_fallthru
        _
    $region12: #{music_feature_extractor.1} parent=5 // pred_fallthru
      _
    %p274 = scmp.lt.s32.totalorder %s15, 2
    // Predicated region
    $region45: #{music_feature_extractor.1} parent=5 // pred_check
      %p275 = pneg %p274
    $region46: #{music_feature_extractor.1} parent=5 // pred_check_branch
      %277 = sbr.rel (%p275) target = $region48
    $region47: #{music_feature_extractor.1} parent=5 // pred_region
      // Predicated region
      $region49: #{music_feature_extractor.1} parent=47 // pred_check
        %p278 = pneg %p35
      $region50: #{music_feature_extractor.1} parent=47 // pred_check_branch
        %280 = sbr.rel (%p278) target = $region52
      $region51: #{music_feature_extractor.1} parent=47 // pred_region
        %p281 = scmp.lt.s32.totalorder %s15, 1
        %s282 = scalar_select %p281, %s15, 1
        %s283 = smul.addr %s282, 8
        %s284 = scalar_lea.vmem %s0, %s283
      $region52: #{music_feature_extractor.1} parent=47 // pred_fallthru
        _
    $region48: #{music_feature_extractor.1} parent=5 // pred_fallthru
      _
    %p285 = scmp.le.s32.totalorder 1, %s15
    %p286 = scmp.lt.s32.totalorder %s15, 3
    %p287 = pnand %p285, %p286
    %p288 = pneg %p287
    // Predicated region
    $region53: #{music_feature_extractor.1} parent=5 // pred_check
      _
    $region54: #{music_feature_extractor.1} parent=5 // pred_check_branch
      %290 = sbr.rel (%p287) target = $region56
    $region55: #{music_feature_extractor.1} parent=5 // pred_region
      %s291 = ssub.s32 %s15, 1
      %p292 = scmp.lt.s32.totalorder %s20, 1
      %s293 = scalar_select %p292, %s20, 1
      %s294 = smul.addr %s293, 8
      %s295 = scalar_lea.vmem %s0, %s294
      %p296 = pneg %p41
      %p297 = pneg %p38
      %p298 = pneg %p62
      %p299 = pneg %p59
      %p300 = pneg %p83
      %p301 = pneg %p80
      %p302 = pneg %p104
      %p303 = pneg %p101
      %p304 = pneg %p125
      %p305 = pneg %p122
      %p306 = pneg %p146
      %p307 = pneg %p143
      %p308 = pneg %p167
      %p309 = pneg %p164
      %p310 = pneg %p188
      %p311 = pneg %p185
      %p312 = pneg %p209
      %p313 = pneg %p206
      %p314 = pneg %p235
      %p315 = pneg %p232
      %p316 = scmp.lt.s32.totalorder %s20, 1
      %s317 = scalar_select %p316, %s20, 1
      %s318 = smul.addr %s317, 4
      %s319 = smul.addr %s318, 8
      %s320 = scalar_lea.vmem %s9, %s319
      %p321 = scmp.lt.s32.totalorder %s20, 1
      %s322 = scalar_select %p321, %s20, 1
      %s323 = smul.addr %s322, 8
      %s324 = scalar_lea.vmem %s0, %s323
      %p325 = scmp.lt.s32.totalorder %s20, 1
      %s326 = scalar_select %p325, %s20, 1
      %s327 = smul.addr %s326, 4
      %s328 = smul.addr %s327, 8
      %s329 = scalar_lea.vmem %s9, %s328
      %v331 = vld [vmem:[%s6] sm:$0xff]
      %v332 = vld [vmem:[%s6 + $0x8] sm:$0xff]
      %v333 = vld [vmem:[%s6 + $0x10] sm:$0xff]
      %v334 = vld [vmem:[%s6 + $0x18] sm:$0xff]
      %v335 = vld [vmem:[%s6 + $0x20] sm:$0xff]
      %v336 = vld [vmem:[%s6 + $0x28] sm:$0xff]
      %v337 = vld [vmem:[%s6 + $0x30] sm:$0xff]
      %v338 = vld [vmem:[%s6 + $0x38] sm:$0xff]
      %v339 = vld [vmem:[%s6 + $0x40] sm:$0xff]
      %v340 = vld [vmem:[%s6 + $0x48] sm:$0xff]
      %v341 = vld [vmem:[%s6 + $0x50] sm:$0xff]
      %v342 = vld [vmem:[%s6 + $0x58] sm:$0xff]
      %v343 = vld [vmem:[%s7] sm:$0xff]
      %v344 = vld [vmem:[%s7 + $0x8] sm:$0xff]
      %v345 = vld [vmem:[%s7 + $0x10] sm:$0xff]
      %v346 = vld [vmem:[%s7 + $0x18] sm:$0xff]
      %v347 = vld [vmem:[%s8] sm:$0xff]
      %v348 = vld [vmem:[%s8 + $0x8] sm:$0xff]
      %v349 = vld [vmem:[%s8 + $0x10] sm:$0xff]
      %v350 = vld [vmem:[%s8 + $0x18] sm:$0xff]
      %v351 = vld [vmem:[%s8 + $0x20] sm:$0xff]
      %v352 = vld [vmem:[%s8 + $0x28] sm:$0xff]
      %v353 = vld [vmem:[%s8 + $0x30] sm:$0xff]
      %v354 = vld [vmem:[%s8 + $0x38] sm:$0xff]
      %v355 = vld [vmem:[%s8 + $0x40] sm:$0xff]
      %v356 = vld [vmem:[%s8 + $0x48] sm:$0xff]
      %v357 = vld [vmem:[%s8 + $0x50] sm:$0xff]
      %v358 = vld [vmem:[%s8 + $0x58] sm:$0xff]
      %v359 = vld [vmem:[%s5] sm:$0xf]
      %v360 = vld [vmem:[%s5 + $0x4] sm:$0xf]
      %v361 = vld [vmem:[%s5 + $0x8] sm:$0xf]
      %v362 = vld [vmem:[%s5 + $0xc] sm:$0xf]
      %vm363 = vcmask 56320
      %364 = vst.msk [vmem:[#allocation2] sm:$0xff] %vm363, 0.0
      %vm365 = vcmask 1048120
      %366 = vst.msk [vmem:[#allocation2] sm:$0xff] %vm365, 0.0
      %vm367 = vcmask 326656
      %368 = vst.msk [vmem:[#allocation2 + $0x8] sm:$0xff] %vm367, 0.0
      %369 = vst.msk [vmem:[#allocation3] sm:$0xff] %vm363, 0
      %370 = vst.msk [vmem:[#allocation3 + $0x10] sm:$0xff] %vm363, 0
      %371 = vst.msk [vmem:[#allocation3 + $0x20] sm:$0xff] %vm363, 0
      %372 = vst.msk [vmem:[#allocation3 + $0x30] sm:$0xff] %vm363, 0
      %373 = vst.msk [vmem:[#allocation3 + $0x40] sm:$0xff] %vm363, 0
      %374 = vst.msk [vmem:[#allocation3 + $0x50] sm:$0xff] %vm363, 0
      %vm375 = vcmask 326712
      %376 = vst.msk [vmem:[#allocation3 + $0x8] sm:$0xff] %vm375, 0
      %377 = vst.msk [vmem:[#allocation3 + $0x18] sm:$0xff] %vm375, 0
      %378 = vst.msk [vmem:[#allocation3 + $0x28] sm:$0xff] %vm375, 0
      %379 = vst.msk [vmem:[#allocation3 + $0x38] sm:$0xff] %vm375, 0
      %380 = vst.msk [vmem:[#allocation3 + $0x48] sm:$0xff] %vm375, 0
      %381 = vst.msk [vmem:[#allocation3 + $0x58] sm:$0xff] %vm375, 0
      %v382 = vld [vmem:[%s324] sm:$0xff]
      %384 = vrot.lane.b32.xlu0 %v382, 7
      %v385 = vpop.permute.xlu0 %384
      %vm387 = vcmask 580664
      %388 = vst.msk [vmem:[#allocation2] sm:$0xff] %vm387, %v385
      %v389 = vlaneseq
      %v390 = vand.u32 %v389, 127
      %v391 = vlaneseq
      %v392 = vshrl.u32 %v391, 7
      %v393 = vadd.s32 %v392, 8
      %v394 = vadd.s32 %v392, 16
      %v395 = vadd.s32 %v392, 24
      %v396 = vadd.s32 %v392, 32
      %v397 = vadd.s32 %v392, 40
      %v398 = vadd.s32 %v392, 48
      %v399 = vadd.s32 %v392, 56
      %v400 = vadd.s32 %v392, 64
      %v401 = vadd.s32 %v392, 72
      %v402 = vadd.s32 %v392, 80
      %v403 = vadd.s32 %v392, 88
      %vm404 = vcmp.ge.s32.totalorder %v392, 32
      %vm405 = vcmp.ge.s32.totalorder %v393, 32
      %vm406 = vcmp.ge.s32.totalorder %v394, 32
      %vm407 = vcmp.ge.s32.totalorder %v395, 32
      %vm408 = vcmp.ge.s32.totalorder %v396, 32
      %vm409 = vcmp.ge.s32.totalorder %v397, 32
      %vm410 = vcmp.ge.s32.totalorder %v398, 32
      %vm411 = vcmp.ge.s32.totalorder %v399, 32
      %vm412 = vcmp.ge.s32.totalorder %v400, 32
      %vm413 = vcmp.ge.s32.totalorder %v401, 32
      %vm414 = vcmp.ge.s32.totalorder %v402, 32
      %vm415 = vcmp.ge.s32.totalorder %v403, 32
      %vm416 = vcmp.lt.s32.totalorder %v392, 64
      %vm417 = vcmp.lt.s32.totalorder %v393, 64
      %vm418 = vcmp.lt.s32.totalorder %v394, 64
      %vm419 = vcmp.lt.s32.totalorder %v395, 64
      %vm420 = vcmp.lt.s32.totalorder %v396, 64
      %vm421 = vcmp.lt.s32.totalorder %v397, 64
      %vm422 = vcmp.lt.s32.totalorder %v398, 64
      %vm423 = vcmp.lt.s32.totalorder %v399, 64
      %vm424 = vcmp.lt.s32.totalorder %v400, 64
      %vm425 = vcmp.lt.s32.totalorder %v401, 64
      %vm426 = vcmp.lt.s32.totalorder %v402, 64
      %vm427 = vcmp.lt.s32.totalorder %v403, 64
      %vm428 = vmand %vm404, %vm416
      %vm429 = vmand %vm405, %vm417
      %vm430 = vmand %vm406, %vm418
      %vm431 = vmand %vm407, %vm419
      %vm432 = vmand %vm408, %vm420
      %vm433 = vmand %vm409, %vm421
      %vm434 = vmand %vm410, %vm422
      %vm435 = vmand %vm411, %vm423
      %vm436 = vmand %vm412, %vm424
      %vm437 = vmand %vm413, %vm425
      %vm438 = vmand %vm414, %vm426
      %vm439 = vmand %vm415, %vm427
      %v440 = vsel %vm428, 50, 64
      %v441 = vsel %vm429, 50, 64
      %v442 = vsel %vm430, 50, 64
      %v443 = vsel %vm431, 50, 64
      %v444 = vsel %vm432, 50, 64
      %v445 = vsel %vm433, 50, 64
      %v446 = vsel %vm434, 50, 64
      %v447 = vsel %vm435, 50, 64
      %v448 = vsel %vm436, 50, 64
      %v449 = vsel %vm437, 50, 64
      %v450 = vsel %vm438, 50, 64
      %v451 = vsel %vm439, 50, 64
      %v452 = vsel %vm428, 0.005, 0.00390625
      %v453 = vsel %vm429, 0.005, 0.00390625
      %v454 = vsel %vm430, 0.005, 0.00390625
      %v455 = vsel %vm431, 0.005, 0.00390625
      %v456 = vsel %vm432, 0.005, 0.00390625
      %v457 = vsel %vm433, 0.005, 0.00390625
      %v458 = vsel %vm434, 0.005, 0.00390625
      %v459 = vsel %vm435, 0.005, 0.00390625
      %v460 = vsel %vm436, 0.005, 0.00390625
      %v461 = vsel %vm437, 0.005, 0.00390625
      %v462 = vsel %vm438, 0.005, 0.00390625
      %v463 = vsel %vm439, 0.005, 0.00390625
      %v464 = vld [vmem:[#allocation2] sm:$0xff]
      %v465 = vld [vmem:[#allocation2 + $0x8] sm:$0xff]
      %468 = vrot.lane.b32.xlu0 %v464, 126
      %v469 = vpop.permute.xlu0 %468
      %470 = vrot.lane.b32.xlu0 %v465, 126
      %v471 = vpop.permute.xlu0 %470
      %vm472 = vcmask 1031168
      %v473 = vsel %vm472, %v469, %v471
      %475 = vrot.lane.b32.xlu0 %v464, 124
      %v476 = vpop.permute.xlu0 %475
      %477 = vrot.lane.b32.xlu0 %v465, 124
      %v478 = vpop.permute.xlu0 %477
      %vm479 = vcmask 1014784
      %v480 = vsel %vm479, %v476, %v478
      %482 = vrot.lane.b32.xlu0 %v464, 123
      %v483 = vpop.permute.xlu0 %482
      %484 = vrot.lane.b32.xlu0 %v465, 123
      %v485 = vpop.permute.xlu0 %484
      %vm486 = vcmask 1006592
      %v487 = vsel %vm486, %v483, %v485
      %489 = vrot.lane.b32.xlu0 %v464, 122
      %v490 = vpop.permute.xlu0 %489
      %491 = vrot.lane.b32.xlu0 %v465, 122
      %v492 = vpop.permute.xlu0 %491
      %vm493 = vcmask 998400
      %v494 = vsel %vm493, %v490, %v492
      %496 = vrot.lane.b32.xlu0 %v464, 121
      %v497 = vpop.permute.xlu0 %496
      %498 = vrot.lane.b32.xlu0 %v465, 121
      %v499 = vpop.permute.xlu0 %498
      %vm500 = vcmask 990208
      %v501 = vsel %vm500, %v497, %v499
      %503 = vrot.lane.b32.xlu0 %v464, 120
      %v504 = vpop.permute.xlu0 %503
      %505 = vrot.lane.b32.xlu0 %v465, 120
      %v506 = vpop.permute.xlu0 %505
      %vm507 = vcmask 982016
      %v508 = vsel %vm507, %v504, %v506
      %510 = vrot.lane.b32.xlu0 %v464, 119
      %v511 = vpop.permute.xlu0 %510
      %512 = vrot.lane.b32.xlu0 %v465, 119
      %v513 = vpop.permute.xlu0 %512
      %vm514 = vcmask 973824
      %v515 = vsel %vm514, %v511, %v513
      %517 = vrot.lane.b32.xlu0 %v464, 118
      %v518 = vpop.permute.xlu0 %517
      %519 = vrot.lane.b32.xlu0 %v465, 118
      %v520 = vpop.permute.xlu0 %519
      %vm521 = vcmask 965632
      %v522 = vsel %vm521, %v518, %v520
      %524 = vrot.lane.b32.xlu0 %v464, 116
      %v525 = vpop.permute.xlu0 %524
      %526 = vrot.lane.b32.xlu0 %v465, 116
      %v527 = vpop.permute.xlu0 %526
      %vm528 = vcmask 949248
      %v529 = vsel %vm528, %v525, %v527
      %531 = vrot.lane.b32.xlu0 %v464, 114
      %v532 = vpop.permute.xlu0 %531
      %533 = vrot.lane.b32.xlu0 %v465, 114
      %v534 = vpop.permute.xlu0 %533
      %vm535 = vcmask 932864
      %v536 = vsel %vm535, %v532, %v534
      %538 = vrot.lane.b32.xlu0 %v464, 112
      %v539 = vpop.permute.xlu0 %538
      %540 = vrot.lane.b32.xlu0 %v465, 112
      %v541 = vpop.permute.xlu0 %540
      %vm542 = vcmask 916480
      %v543 = vsel %vm542, %v539, %v541
      %545 = vrot.lane.b32.xlu0 %v464, 110
      %v546 = vpop.permute.xlu0 %545
      %547 = vrot.lane.b32.xlu0 %v465, 110
      %v548 = vpop.permute.xlu0 %547
      %vm549 = vcmask 900096
      %v550 = vsel %vm549, %v546, %v548
      %552 = vrot.lane.b32.xlu0 %v464, 108
      %v553 = vpop.permute.xlu0 %552
      %554 = vrot.lane.b32.xlu0 %v465, 108
      %v555 = vpop.permute.xlu0 %554
      %vm556 = vcmask 883712
      %v557 = vsel %vm556, %v553, %v555
      %559 = vrot.lane.b32.xlu0 %v464, 106
      %v560 = vpop.permute.xlu0 %559
      %561 = vrot.lane.b32.xlu0 %v465, 106
      %v562 = vpop.permute.xlu0 %561
      %vm563 = vcmask 867328
      %v564 = vsel %vm563, %v560, %v562
      %566 = vrot.lane.b32.xlu0 %v464, 104
      %v567 = vpop.permute.xlu0 %566
      %568 = vrot.lane.b32.xlu0 %v465, 104
      %v569 = vpop.permute.xlu0 %568
      %vm570 = vcmask 850944
      %v571 = vsel %vm570, %v567, %v569
      %573 = vrot.lane.b32.xlu0 %v464, 102
      %v574 = vpop.permute.xlu0 %573
      %575 = vrot.lane.b32.xlu0 %v465, 102
      %v576 = vpop.permute.xlu0 %575
      %577 = vrot.lane.b32.xlu0 %v473, 102
      %v578 = vpop.permute.xlu0 %577
      %579 = vrot.lane.b32.xlu0 %v471, 102
      %v580 = vpop.permute.xlu0 %579
      %vm581 = vcmask 834560
      %v582 = vsel %vm581, %v574, %v576
      %v583 = vsel %vm581, %v578, %v580
      %v586 = vpack.c.bf16 %v473, %v464
      %v587 = vpack.c.bf16 %v487, %v480
      %v588 = vpack.c.bf16 %v501, %v494
      %v589 = vpack.c.bf16 %v515, %v508
      %v590 = vpack.c.bf16 %v529, %v522
      %v591 = vpack.c.bf16 %v543, %v536
      %v592 = vpack.c.bf16 %v557, %v550
      %v593 = vpack.c.bf16 %v571, %v564
      %v594 = vpack.c.bf16 %v583, %v582
      %v595 = vld [vmem:[%s1] sm:$0xff]
      %v596 = vld [vmem:[%s1 + $0x8] sm:$0xff]
      %v597 = vld [vmem:[%s1 + $0x10] sm:$0xff]
      %v598 = vld [vmem:[%s1 + $0x18] sm:$0xff]
      %v599 = vld [vmem:[%s1 + $0x20] sm:$0xff]
      %v600 = vld [vmem:[%s1 + $0x28] sm:$0xff]
      %v601 = vld [vmem:[%s1 + $0x30] sm:$0xff]
      %v602 = vld [vmem:[%s1 + $0x38] sm:$0xff]
      %v603 = vld [vmem:[%s1 + $0x40] sm:$0xff]
      %v604 = vld [vmem:[%s1 + $0x48] sm:$0xff]
      %v605 = vld [vmem:[%s1 + $0x50] sm:$0xff]
      %v606 = vld [vmem:[%s1 + $0x58] sm:$0xff]
      %608 = vset.pattern.permute.xlu0 0
      %609 = vperm.xlu0 %608, %v331
      %v610 = vpop.permute.xlu0 %609
      %613 = vset.pattern.permute.xlu0 0
      %614 = vperm.xlu0 %613, %v332
      %v615 = vpop.permute.xlu0 %614
      %618 = vset.pattern.permute.xlu0 0
      %619 = vperm.xlu0 %618, %v333
      %v620 = vpop.permute.xlu0 %619
      %623 = vset.pattern.permute.xlu0 0
      %624 = vperm.xlu0 %623, %v334
      %v625 = vpop.permute.xlu0 %624
      %628 = vset.pattern.permute.xlu0 0
      %629 = vperm.xlu0 %628, %v335
      %v630 = vpop.permute.xlu0 %629
      %633 = vset.pattern.permute.xlu0 0
      %634 = vperm.xlu0 %633, %v336
      %v635 = vpop.permute.xlu0 %634
      %638 = vset.pattern.permute.xlu0 0
      %639 = vperm.xlu0 %638, %v337
      %v640 = vpop.permute.xlu0 %639
      %643 = vset.pattern.permute.xlu0 0
      %644 = vperm.xlu0 %643, %v338
      %v645 = vpop.permute.xlu0 %644
      %648 = vset.pattern.permute.xlu0 0
      %649 = vperm.xlu0 %648, %v339
      %v650 = vpop.permute.xlu0 %649
      %653 = vset.pattern.permute.xlu0 0
      %654 = vperm.xlu0 %653, %v340
      %v655 = vpop.permute.xlu0 %654
      %658 = vset.pattern.permute.xlu0 0
      %659 = vperm.xlu0 %658, %v341
      %v660 = vpop.permute.xlu0 %659
      %663 = vset.pattern.permute.xlu0 0
      %664 = vperm.xlu0 %663, %v342
      %v665 = vpop.permute.xlu0 %664
      %v679 = vunpack.c.l.b16 %v595
      %v680 = vunpack.c.h.b16 %v595
      %v681 = vunpack.c.l.b16 %v596
      %v682 = vunpack.c.h.b16 %v596
      %v683 = vunpack.c.l.b16 %v597
      %v684 = vunpack.c.h.b16 %v597
      %v685 = vunpack.c.l.b16 %v598
      %v686 = vunpack.c.h.b16 %v598
      %v687 = vunpack.c.l.b16 %v599
      %v688 = vunpack.c.h.b16 %v599
      %v689 = vunpack.c.l.b16 %v600
      %v690 = vunpack.c.h.b16 %v600
      %v691 = vunpack.c.l.b16 %v601
      %v692 = vunpack.c.h.b16 %v601
      %v693 = vunpack.c.l.b16 %v602
      %v694 = vunpack.c.h.b16 %v602
      %v695 = vunpack.c.l.b16 %v603
      %v696 = vunpack.c.h.b16 %v603
      %v697 = vunpack.c.l.b16 %v604
      %v698 = vunpack.c.h.b16 %v604
      %v699 = vunpack.c.l.b16 %v605
      %v700 = vunpack.c.h.b16 %v605
      %v701 = vunpack.c.l.b16 %v606
      %v702 = vunpack.c.h.b16 %v606
      %v703 = vpack.c.b16 %v681, %v679
      %v704 = vpack.c.b16 %v682, %v680
      %v705 = vpack.c.b16 %v685, %v683
      %v706 = vpack.c.b16 %v686, %v684
      %v707 = vpack.c.b16 %v689, %v687
      %v708 = vpack.c.b16 %v690, %v688
      %v709 = vpack.c.b16 %v693, %v691
      %v710 = vpack.c.b16 %v694, %v692
      %v711 = vpack.c.b16 %v697, %v695
      %v712 = vpack.c.b16 %v698, %v696
      %v713 = vpack.c.b16 %v701, %v699
      %v714 = vpack.c.b16 %v702, %v700
      %vm721 = vcmask 130048
      %v723 = vsel %vm721, %v704, 0
      %v726 = vsel %vm721, %v706, 0
      %v729 = vsel %vm721, %v708, 0
      %v732 = vsel %vm721, %v710, 0
      %v735 = vsel %vm721, %v712, 0
      %v738 = vsel %vm721, %v714, 0
      %740 = vmatprep.subr.bf16.mxu0 0
      %741 = vmatpush1.bf16.msra.mxu0 %v586
      %742 = vmatprep.subr.bf16.mxu0 0
      %743 = vmatpush1.bf16.msra.mxu0 %v587
      %744 = vmatprep.subr.bf16.mxu0 0
      %745 = vmatpush1.bf16.msra.mxu0 %v588
      %746 = vmatprep.subr.bf16.mxu0 0
      %747 = vmatpush1.bf16.msra.mxu0 %v589
      %748 = vmatprep.subr.bf16.mxu0 0
      %749 = vmatpush1.bf16.msra.mxu0 %v590
      %750 = vmatprep.subr.bf16.mxu0 0
      %751 = vmatpush1.bf16.msra.mxu0 %v591
      %752 = vmatprep.subr.bf16.mxu0 0
      %753 = vmatpush1.bf16.msra.mxu0 %v592
      %754 = vmatprep.subr.bf16.mxu0 0
      %755 = vmatpush1.bf16.msra.mxu0 %v593
      %756 = vmatprep.subr.bf16.mxu0 0
      %757 = vmatpush1.bf16.msra.mxu0 %v594
      %758 = vmatprep.subr.bf16.mxu0 0
      %759 = vmatpush1.bf16.msra.mxu0 0
      %760 = vmatprep.subr.bf16.mxu0 0
      %761 = vmatpush1.bf16.msra.mxu0 0
      %762 = vmatprep.subr.bf16.mxu0 0
      %763 = vmatpush1.bf16.msra.mxu0 0
      %764 = vmatprep.subr.bf16.mxu0 0
      %765 = vmatpush1.bf16.msra.mxu0 0
      %766 = vmatprep.subr.bf16.mxu0 0
      %767 = vmatpush1.bf16.msra.mxu0 0
      %768 = vmatprep.subr.bf16.mxu0 0
      %769 = vmatpush1.bf16.msra.mxu0 0
      %770 = vmatprep.subr.bf16.mxu0 0
      %771 = vmatpush1.bf16.msra.mxu0 0
      %772 = vmatprep.mubr.bf16.mxu0 %v723
      %773 = vmatmul.mubr.bf16.gmra.mrb[0].mxu0 %v703
      %v774 = vpop.f32.mrb[0].mxu0
      %v775 = vadd.f32 %v610, %v774
      %v776 = vpop.f32.mrb[0].mxu0
      %v777 = vpop.f32.mrb[0].mxu0
      %v778 = vadd.f32 %v615, %v777
      %v779 = vpop.f32.mrb[0].mxu0
      %780 = vmatprep.mubr.bf16.mxu0 %v726
      %781 = vmatmul.mubr.bf16.gmra.mrb[0].mxu0 %v705
      %v782 = vpop.f32.mrb[0].mxu0
      %v783 = vadd.f32 %v620, %v782
      %v784 = vpop.f32.mrb[0].mxu0
      %v785 = vpop.f32.mrb[0].mxu0
      %v786 = vadd.f32 %v625, %v785
      %v787 = vpop.f32.mrb[0].mxu0
      %788 = vmatprep.mubr.bf16.mxu0 %v729
      %789 = vmatmul.mubr.bf16.gmra.mrb[0].mxu0 %v707
      %v790 = vpop.f32.mrb[0].mxu0
      %v791 = vadd.f32 %v630, %v790
      %v792 = vpop.f32.mrb[0].mxu0
      %v793 = vpop.f32.mrb[0].mxu0
      %v794 = vadd.f32 %v635, %v793
      %v795 = vpop.f32.mrb[0].mxu0
      %796 = vmatprep.mubr.bf16.mxu0 %v732
      %797 = vmatmul.mubr.bf16.gmra.mrb[0].mxu0 %v709
      %v798 = vpop.f32.mrb[0].mxu0
      %v799 = vadd.f32 %v640, %v798
      %v800 = vpop.f32.mrb[0].mxu0
      %v801 = vpop.f32.mrb[0].mxu0
      %v802 = vadd.f32 %v645, %v801
      %v803 = vpop.f32.mrb[0].mxu0
      %804 = vmatprep.mubr.bf16.mxu0 %v735
      %805 = vmatmul.mubr.bf16.gmra.mrb[0].mxu0 %v711
      %v806 = vpop.f32.mrb[0].mxu0
      %v807 = vadd.f32 %v650, %v806
      %v808 = vpop.f32.mrb[0].mxu0
      %v809 = vpop.f32.mrb[0].mxu0
      %v810 = vadd.f32 %v655, %v809
      %v811 = vpop.f32.mrb[0].mxu0
      %812 = vmatprep.mubr.bf16.mxu0 %v738
      %813 = vmatmul.mubr.bf16.gmra.mrb[0].mxu0 %v713
      %v814 = vpop.f32.mrb[0].mxu0
      %v815 = vadd.f32 %v660, %v814
      %v816 = vpop.f32.mrb[0].mxu0
      %v817 = vpop.f32.mrb[0].mxu0
      %v818 = vadd.f32 %v665, %v817
      %v819 = vpop.f32.mrb[0].mxu0
      %820 = vdwg.mxu0
      %vm821 = vcmp.lt.s32.totalorder %v390, %v440
      %vm822 = vcmp.lt.s32.totalorder %v390, %v441
      %vm823 = vcmp.lt.s32.totalorder %v390, %v442
      %vm824 = vcmp.lt.s32.totalorder %v390, %v443
      %vm825 = vcmp.lt.s32.totalorder %v390, %v444
      %vm826 = vcmp.lt.s32.totalorder %v390, %v445
      %vm827 = vcmp.lt.s32.totalorder %v390, %v446
      %vm828 = vcmp.lt.s32.totalorder %v390, %v447
      %vm829 = vcmp.lt.s32.totalorder %v390, %v448
      %vm830 = vcmp.lt.s32.totalorder %v390, %v449
      %vm831 = vcmp.lt.s32.totalorder %v390, %v450
      %vm832 = vcmp.lt.s32.totalorder %v390, %v451
      %v833 = vsel %vm821, %v775, 0.0
      %v834 = vsel %vm822, %v778, 0.0
      %v835 = vsel %vm823, %v783, 0.0
      %v836 = vsel %vm824, %v786, 0.0
      %v837 = vsel %vm825, %v791, 0.0
      %v838 = vsel %vm826, %v794, 0.0
      %v839 = vsel %vm827, %v799, 0.0
      %v840 = vsel %vm828, %v802, 0.0
      %v841 = vsel %vm829, %v807, 0.0
      %v842 = vsel %vm830, %v810, 0.0
      %v843 = vsel %vm831, %v815, 0.0
      %v844 = vsel %vm832, %v818, 0.0
      %845 = vadd.xlane.f32.xlu0 %v833
      %v846 = vpop.xlane.xlu0 %845
      %847 = vadd.xlane.f32.xlu0 %v834
      %v848 = vpop.xlane.xlu0 %847
      %849 = vadd.xlane.f32.xlu0 %v835
      %v850 = vpop.xlane.xlu0 %849
      %851 = vadd.xlane.f32.xlu0 %v836
      %v852 = vpop.xlane.xlu0 %851
      %853 = vadd.xlane.f32.xlu0 %v837
      %v854 = vpop.xlane.xlu0 %853
      %855 = vadd.xlane.f32.xlu0 %v838
      %v856 = vpop.xlane.xlu0 %855
      %857 = vadd.xlane.f32.xlu0 %v839
      %v858 = vpop.xlane.xlu0 %857
      %859 = vadd.xlane.f32.xlu0 %v840
      %v860 = vpop.xlane.xlu0 %859
      %861 = vadd.xlane.f32.xlu0 %v841
      %v862 = vpop.xlane.xlu0 %861
      %863 = vadd.xlane.f32.xlu0 %v842
      %v864 = vpop.xlane.xlu0 %863
      %865 = vadd.xlane.f32.xlu0 %v843
      %v866 = vpop.xlane.xlu0 %865
      %867 = vadd.xlane.f32.xlu0 %v844
      %v868 = vpop.xlane.xlu0 %867
      %v869 = vmul.f32 %v833, %v833
      %v870 = vmul.f32 %v834, %v834
      %v871 = vmul.f32 %v835, %v835
      %v872 = vmul.f32 %v836, %v836
      %v873 = vmul.f32 %v837, %v837
      %v874 = vmul.f32 %v838, %v838
      %v875 = vmul.f32 %v839, %v839
      %v876 = vmul.f32 %v840, %v840
      %v877 = vmul.f32 %v841, %v841
      %v878 = vmul.f32 %v842, %v842
      %v879 = vmul.f32 %v843, %v843
      %v880 = vmul.f32 %v844, %v844
      %881 = vadd.xlane.f32.xlu0 %v869
      %v882 = vpop.xlane.xlu0 %881
      %883 = vadd.xlane.f32.xlu0 %v870
      %v884 = vpop.xlane.xlu0 %883
      %885 = vadd.xlane.f32.xlu0 %v871
      %v886 = vpop.xlane.xlu0 %885
      %887 = vadd.xlane.f32.xlu0 %v872
      %v888 = vpop.xlane.xlu0 %887
      %889 = vadd.xlane.f32.xlu0 %v873
      %v890 = vpop.xlane.xlu0 %889
      %891 = vadd.xlane.f32.xlu0 %v874
      %v892 = vpop.xlane.xlu0 %891
      %893 = vadd.xlane.f32.xlu0 %v875
      %v894 = vpop.xlane.xlu0 %893
      %895 = vadd.xlane.f32.xlu0 %v876
      %v896 = vpop.xlane.xlu0 %895
      %897 = vadd.xlane.f32.xlu0 %v877
      %v898 = vpop.xlane.xlu0 %897
      %899 = vadd.xlane.f32.xlu0 %v878
      %v900 = vpop.xlane.xlu0 %899
      %901 = vadd.xlane.f32.xlu0 %v879
      %v902 = vpop.xlane.xlu0 %901
      %903 = vadd.xlane.f32.xlu0 %v880
      %v904 = vpop.xlane.xlu0 %903
      %vm905 = vcmask 7168
      %v906 = vsel %vm905, %v846, %v882
      %v907 = vsel %vm905, %v848, %v884
      %v908 = vsel %vm905, %v850, %v886
      %v909 = vsel %vm905, %v852, %v888
      %v910 = vsel %vm905, %v854, %v890
      %v911 = vsel %vm905, %v856, %v892
      %v912 = vsel %vm905, %v858, %v894
      %v913 = vsel %vm905, %v860, %v896
      %v914 = vsel %vm905, %v862, %v898
      %v915 = vsel %vm905, %v864, %v900
      %v916 = vsel %vm905, %v866, %v902
      %v917 = vsel %vm905, %v868, %v904
      %vm918 = vcmask 785408
      %v920 = vsel %vm918, %v347, 0
      %v923 = vsel %vm918, %v348, 0
      %v926 = vsel %vm918, %v349, 0
      %v929 = vsel %vm918, %v350, 0
      %v932 = vsel %vm918, %v351, 0
      %v935 = vsel %vm918, %v352, 0
      %v938 = vsel %vm918, %v353, 0
      %v941 = vsel %vm918, %v354, 0
      %v944 = vsel %vm918, %v355, 0
      %v947 = vsel %vm918, %v356, 0
      %v950 = vsel %vm918, %v357, 0
      %v953 = vsel %vm918, %v358, 0
      %955 = vmatprep.subr.mxu0 0.0
      %956 = vmatpush1.msra.mxu0 %v906
      %957 = vmatprep.subr.mxu0 0.0
      %958 = vmatpush1.msra.mxu0 %v907
      %959 = vmatprep.subr.mxu0 0.0
      %960 = vmatpush1.msra.mxu0 %v908
      %961 = vmatprep.subr.mxu0 0.0
      %962 = vmatpush1.msra.mxu0 %v909
      %963 = vmatprep.subr.mxu0 0.0
      %964 = vmatpush1.msra.mxu0 %v910
      %965 = vmatprep.subr.mxu0 0.0
      %966 = vmatpush1.msra.mxu0 %v911
      %967 = vmatprep.subr.mxu0 0.0
      %968 = vmatpush1.msra.mxu0 %v912
      %969 = vmatprep.subr.mxu0 0.0
      %970 = vmatpush1.msra.mxu0 %v913
      %971 = vmatprep.subr.mxu0 0.0
      %972 = vmatpush1.msra.mxu0 %v914
      %973 = vmatprep.subr.mxu0 0.0
      %974 = vmatpush1.msra.mxu0 %v915
      %975 = vmatprep.subr.mxu0 0.0
      %976 = vmatpush1.msra.mxu0 %v916
      %977 = vmatprep.subr.mxu0 0.0
      %978 = vmatpush1.msra.mxu0 %v917
      %979 = vmatprep.subr.mxu0 0.0
      %980 = vmatpush1.msra.mxu0 0.0
      %981 = vmatprep.subr.mxu0 0.0
      %982 = vmatpush1.msra.mxu0 0.0
      %983 = vmatprep.subr.mxu0 0.0
      %984 = vmatpush1.msra.mxu0 0.0
      %985 = vmatprep.subr.mxu0 0.0
      %986 = vmatpush1.msra.mxu0 0.0
      %987 = vmatprep.subr.mxu0 0.0
      %988 = vmatpush1.msra.mxu0 0.0
      %989 = vmatprep.subr.mxu0 0.0
      %990 = vmatpush1.msra.mxu0 0.0
      %991 = vmatprep.subr.mxu0 0.0
      %992 = vmatpush1.msra.mxu0 0.0
      %993 = vmatprep.subr.mxu0 0.0
      %994 = vmatpush1.msra.mxu0 0.0
      %995 = vmatprep.subr.mxu0 0.0
      %996 = vmatpush1.msra.mxu0 0.0
      %997 = vmatprep.subr.mxu0 0.0
      %998 = vmatpush1.msra.mxu0 0.0
      %999 = vmatprep.subr.mxu0 0.0
      %1000 = vmatpush1.msra.mxu0 0.0
      %1001 = vmatprep.subr.mxu0 0.0
      %1002 = vmatpush1.msra.mxu0 0.0
      %1003 = vmatprep.subr.mxu0 0.0
      %1004 = vmatpush1.msra.mxu0 0.0
      %1005 = vmatprep.subr.mxu0 0.0
      %1006 = vmatpush1.msra.mxu0 0.0
      %1007 = vmatprep.subr.mxu0 0.0
      %1008 = vmatpush1.msra.mxu0 0.0
      %1009 = vmatprep.subr.mxu0 0.0
      %1010 = vmatpush1.msra.mxu0 0.0
      %1011 = vmatprep.subr.mxu0 0.0
      %1012 = vmatpush1.msra.mxu0 0.0
      %1013 = vmatprep.subr.mxu0 0.0
      %1014 = vmatpush1.msra.mxu0 0.0
      %1015 = vmatprep.subr.mxu0 0.0
      %1016 = vmatpush1.msra.mxu0 0.0
      %1017 = vmatprep.subr.mxu0 0.0
      %1018 = vmatpush1.msra.mxu0 0.0
      %1019 = vmatprep.mubr.f32.mxu0 0.0
      %1020 = vmatmul.mubr.f32.gmra.mrb[0].mxu0 %v920
      %v1021 = vpop.f32.mrb[0].mxu0
      %v1022 = vadd.f32 0.0, %v1021
      %v1023 = vpop.f32.mrb[0].mxu0
      %1024 = vmatprep.mubr.f32.mxu0 0.0
      %1025 = vmatmul.mubr.f32.gmra.mrb[0].mxu0 %v923
      %v1026 = vpop.f32.mrb[0].mxu0
      %v1027 = vadd.f32 0.0, %v1026
      %v1028 = vpop.f32.mrb[0].mxu0
      %1029 = vmatprep.mubr.f32.mxu0 0.0
      %1030 = vmatmul.mubr.f32.gmra.mrb[0].mxu0 %v926
      %v1031 = vpop.f32.mrb[0].mxu0
      %v1032 = vadd.f32 0.0, %v1031
      %v1033 = vpop.f32.mrb[0].mxu0
      %1034 = vmatprep.mubr.f32.mxu0 0.0
      %1035 = vmatmul.mubr.f32.gmra.mrb[0].mxu0 %v929
      %v1036 = vpop.f32.mrb[0].mxu0
      %v1037 = vadd.f32 0.0, %v1036
      %v1038 = vpop.f32.mrb[0].mxu0
      %1039 = vmatprep.mubr.f32.mxu0 0.0
      %1040 = vmatmul.mubr.f32.gmra.mrb[0].mxu0 %v932
      %v1041 = vpop.f32.mrb[0].mxu0
      %v1042 = vadd.f32 0.0, %v1041
      %v1043 = vpop.f32.mrb[0].mxu0
      %1044 = vmatprep.mubr.f32.mxu0 0.0
      %1045 = vmatmul.mubr.f32.gmra.mrb[0].mxu0 %v935
      %v1046 = vpop.f32.mrb[0].mxu0
      %v1047 = vadd.f32 0.0, %v1046
      %v1048 = vpop.f32.mrb[0].mxu0
      %1049 = vmatprep.mubr.f32.mxu0 0.0
      %1050 = vmatmul.mubr.f32.gmra.mrb[0].mxu0 %v938
      %v1051 = vpop.f32.mrb[0].mxu0
      %v1052 = vadd.f32 0.0, %v1051
      %v1053 = vpop.f32.mrb[0].mxu0
      %1054 = vmatprep.mubr.f32.mxu0 0.0
      %1055 = vmatmul.mubr.f32.gmra.mrb[0].mxu0 %v941
      %v1056 = vpop.f32.mrb[0].mxu0
      %v1057 = vadd.f32 0.0, %v1056
      %v1058 = vpop.f32.mrb[0].mxu0
      %1059 = vmatprep.mubr.f32.mxu0 0.0
      %1060 = vmatmul.mubr.f32.gmra.mrb[0].mxu0 %v944
      %v1061 = vpop.f32.mrb[0].mxu0
      %v1062 = vadd.f32 0.0, %v1061
      %v1063 = vpop.f32.mrb[0].mxu0
      %1064 = vmatprep.mubr.f32.mxu0 0.0
      %1065 = vmatmul.mubr.f32.gmra.mrb[0].mxu0 %v947
      %v1066 = vpop.f32.mrb[0].mxu0
      %v1067 = vadd.f32 0.0, %v1066
      %v1068 = vpop.f32.mrb[0].mxu0
      %1069 = vmatprep.mubr.f32.mxu0 0.0
      %1070 = vmatmul.mubr.f32.gmra.mrb[0].mxu0 %v950
      %v1071 = vpop.f32.mrb[0].mxu0
      %v1072 = vadd.f32 0.0, %v1071
      %v1073 = vpop.f32.mrb[0].mxu0
      %1074 = vmatprep.mubr.f32.mxu0 0.0
      %1075 = vmatmul.mubr.f32.gmra.mrb[0].mxu0 %v953
      %v1076 = vpop.f32.mrb[0].mxu0
      %v1077 = vadd.f32 0.0, %v1076
      %v1078 = vpop.f32.mrb[0].mxu0
      %1079 = vdwg.mxu0
      %v1080 = vmul.f32 %v1022, %v452
      %v1081 = vmul.f32 %v1027, %v453
      %v1082 = vmul.f32 %v1032, %v454
      %v1083 = vmul.f32 %v1037, %v455
      %v1084 = vmul.f32 %v1042, %v456
      %v1085 = vmul.f32 %v1047, %v457
      %v1086 = vmul.f32 %v1052, %v458
      %v1087 = vmul.f32 %v1057, %v459
      %v1088 = vmul.f32 %v1062, %v460
      %v1089 = vmul.f32 %v1067, %v461
      %v1090 = vmul.f32 %v1072, %v462
      %v1091 = vmul.f32 %v1077, %v463
      %v1092 = vmul.f32 %v1080, %v1080
      %v1093 = vmul.f32 %v1081, %v1081
      %v1094 = vmul.f32 %v1082, %v1082
      %v1095 = vmul.f32 %v1083, %v1083
      %v1096 = vmul.f32 %v1084, %v1084
      %v1097 = vmul.f32 %v1085, %v1085
      %v1098 = vmul.f32 %v1086, %v1086
      %v1099 = vmul.f32 %v1087, %v1087
      %v1100 = vmul.f32 %v1088, %v1088
      %v1101 = vmul.f32 %v1089, %v1089
      %v1102 = vmul.f32 %v1090, %v1090
      %v1103 = vmul.f32 %v1091, %v1091
      %1116 = vrot.lane.b32.xlu0 %v1092, 1
      %v1117 = vpop.permute.xlu0 %1116
      %1118 = vrot.lane.b32.xlu0 %v1093, 1
      %v1119 = vpop.permute.xlu0 %1118
      %1120 = vrot.lane.b32.xlu0 %v1094, 1
      %v1121 = vpop.permute.xlu0 %1120
      %1122 = vrot.lane.b32.xlu0 %v1095, 1
      %v1123 = vpop.permute.xlu0 %1122
      %1124 = vrot.lane.b32.xlu0 %v1096, 1
      %v1125 = vpop.permute.xlu0 %1124
      %1126 = vrot.lane.b32.xlu0 %v1097, 1
      %v1127 = vpop.permute.xlu0 %1126
      %1128 = vrot.lane.b32.xlu0 %v1098, 1
      %v1129 = vpop.permute.xlu0 %1128
      %1130 = vrot.lane.b32.xlu0 %v1099, 1
      %v1131 = vpop.permute.xlu0 %1130
      %1132 = vrot.lane.b32.xlu0 %v1100, 1
      %v1133 = vpop.permute.xlu0 %1132
      %1134 = vrot.lane.b32.xlu0 %v1101, 1
      %v1135 = vpop.permute.xlu0 %1134
      %1136 = vrot.lane.b32.xlu0 %v1102, 1
      %v1137 = vpop.permute.xlu0 %1136
      %1138 = vrot.lane.b32.xlu0 %v1103, 1
      %v1139 = vpop.permute.xlu0 %1138
      %v1152 = vsub.f32 %v1080, %v1117
      %v1153 = vsub.f32 %v1081, %v1119
      %v1154 = vsub.f32 %v1082, %v1121
      %v1155 = vsub.f32 %v1083, %v1123
      %v1156 = vsub.f32 %v1084, %v1125
      %v1157 = vsub.f32 %v1085, %v1127
      %v1158 = vsub.f32 %v1086, %v1129
      %v1159 = vsub.f32 %v1087, %v1131
      %v1160 = vsub.f32 %v1088, %v1133
      %v1161 = vsub.f32 %v1089, %v1135
      %v1162 = vsub.f32 %v1090, %v1137
      %v1163 = vsub.f32 %v1091, %v1139
      %1165 = vset.pattern.permute.xlu0 0
      %1166 = vperm.xlu0 %1165, %v1080
      %v1167 = vpop.permute.xlu0 %1166
      %1170 = vset.pattern.permute.xlu0 0
      %1171 = vperm.xlu0 %1170, %v1081
      %v1172 = vpop.permute.xlu0 %1171
      %1175 = vset.pattern.permute.xlu0 0
      %1176 = vperm.xlu0 %1175, %v1082
      %v1177 = vpop.permute.xlu0 %1176
      %1180 = vset.pattern.permute.xlu0 0
      %1181 = vperm.xlu0 %1180, %v1083
      %v1182 = vpop.permute.xlu0 %1181
      %1185 = vset.pattern.permute.xlu0 0
      %1186 = vperm.xlu0 %1185, %v1084
      %v1187 = vpop.permute.xlu0 %1186
      %1190 = vset.pattern.permute.xlu0 0
      %1191 = vperm.xlu0 %1190, %v1085
      %v1192 = vpop.permute.xlu0 %1191
      %1195 = vset.pattern.permute.xlu0 0
      %1196 = vperm.xlu0 %1195, %v1086
      %v1197 = vpop.permute.xlu0 %1196
      %1200 = vset.pattern.permute.xlu0 0
      %1201 = vperm.xlu0 %1200, %v1087
      %v1202 = vpop.permute.xlu0 %1201
      %1205 = vset.pattern.permute.xlu0 0
      %1206 = vperm.xlu0 %1205, %v1088
      %v1207 = vpop.permute.xlu0 %1206
      %1210 = vset.pattern.permute.xlu0 0
      %1211 = vperm.xlu0 %1210, %v1089
      %v1212 = vpop.permute.xlu0 %1211
      %1215 = vset.pattern.permute.xlu0 0
      %1216 = vperm.xlu0 %1215, %v1090
      %v1217 = vpop.permute.xlu0 %1216
      %1220 = vset.pattern.permute.xlu0 0
      %1221 = vperm.xlu0 %1220, %v1091
      %v1222 = vpop.permute.xlu0 %1221
      %v1224 = vsub.f32 %v775, %v1167
      %v1225 = vsub.f32 %v778, %v1172
      %v1226 = vsub.f32 %v783, %v1177
      %v1227 = vsub.f32 %v786, %v1182
      %v1228 = vsub.f32 %v791, %v1187
      %v1229 = vsub.f32 %v794, %v1192
      %v1230 = vsub.f32 %v799, %v1197
      %v1231 = vsub.f32 %v802, %v1202
      %v1232 = vsub.f32 %v807, %v1207
      %v1233 = vsub.f32 %v810, %v1212
      %v1234 = vsub.f32 %v815, %v1217
      %v1235 = vsub.f32 %v818, %v1222
      %v1236 = vadd.f32 %v1152, 1e-05
      %v1237 = vadd.f32 %v1153, 1e-05
      %v1238 = vadd.f32 %v1154, 1e-05
      %v1239 = vadd.f32 %v1155, 1e-05
      %v1240 = vadd.f32 %v1156, 1e-05
      %v1241 = vadd.f32 %v1157, 1e-05
      %v1242 = vadd.f32 %v1158, 1e-05
      %v1243 = vadd.f32 %v1159, 1e-05
      %v1244 = vadd.f32 %v1160, 1e-05
      %v1245 = vadd.f32 %v1161, 1e-05
      %v1246 = vadd.f32 %v1162, 1e-05
      %v1247 = vadd.f32 %v1163, 1e-05
      %v1248 = vrsqrt.pop %v1236
      %v1249 = vrsqrt.pop %v1237
      %v1250 = vrsqrt.pop %v1238
      %v1251 = vrsqrt.pop %v1239
      %v1252 = vrsqrt.pop %v1240
      %v1253 = vrsqrt.pop %v1241
      %v1254 = vrsqrt.pop %v1242
      %v1255 = vrsqrt.pop %v1243
      %v1256 = vrsqrt.pop %v1244
      %v1257 = vrsqrt.pop %v1245
      %v1258 = vrsqrt.pop %v1246
      %v1259 = vrsqrt.pop %v1247
      %1261 = vset.pattern.permute.xlu0 1
      %1262 = vperm.xlu0 %1261, %v1248
      %v1263 = vpop.permute.xlu0 %1262
      %1266 = vset.pattern.permute.xlu0 1
      %1267 = vperm.xlu0 %1266, %v1249
      %v1268 = vpop.permute.xlu0 %1267
      %1271 = vset.pattern.permute.xlu0 1
      %1272 = vperm.xlu0 %1271, %v1250
      %v1273 = vpop.permute.xlu0 %1272
      %1276 = vset.pattern.permute.xlu0 1
      %1277 = vperm.xlu0 %1276, %v1251
      %v1278 = vpop.permute.xlu0 %1277
      %1281 = vset.pattern.permute.xlu0 1
      %1282 = vperm.xlu0 %1281, %v1252
      %v1283 = vpop.permute.xlu0 %1282
      %1286 = vset.pattern.permute.xlu0 1
      %1287 = vperm.xlu0 %1286, %v1253
      %v1288 = vpop.permute.xlu0 %1287
      %1291 = vset.pattern.permute.xlu0 1
      %1292 = vperm.xlu0 %1291, %v1254
      %v1293 = vpop.permute.xlu0 %1292
      %1296 = vset.pattern.permute.xlu0 1
      %1297 = vperm.xlu0 %1296, %v1255
      %v1298 = vpop.permute.xlu0 %1297
      %1301 = vset.pattern.permute.xlu0 1
      %1302 = vperm.xlu0 %1301, %v1256
      %v1303 = vpop.permute.xlu0 %1302
      %1306 = vset.pattern.permute.xlu0 1
      %1307 = vperm.xlu0 %1306, %v1257
      %v1308 = vpop.permute.xlu0 %1307
      %1311 = vset.pattern.permute.xlu0 1
      %1312 = vperm.xlu0 %1311, %v1258
      %v1313 = vpop.permute.xlu0 %1312
      %1316 = vset.pattern.permute.xlu0 1
      %1317 = vperm.xlu0 %1316, %v1259
      %v1318 = vpop.permute.xlu0 %1317
      %v1320 = vmul.f32 %v1224, %v1263
      %v1321 = vmul.f32 %v1225, %v1268
      %v1322 = vmul.f32 %v1226, %v1273
      %v1323 = vmul.f32 %v1227, %v1278
      %v1324 = vmul.f32 %v1228, %v1283
      %v1325 = vmul.f32 %v1229, %v1288
      %v1326 = vmul.f32 %v1230, %v1293
      %v1327 = vmul.f32 %v1231, %v1298
      %v1328 = vmul.f32 %v1232, %v1303
      %v1329 = vmul.f32 %v1233, %v1308
      %v1330 = vmul.f32 %v1234, %v1313
      %v1331 = vmul.f32 %v1235, %v1318
      %1332 = vset.pattern.permute.xlu0 1
      %1333 = vperm.xlu0 %1332, %v331
      %v1334 = vpop.permute.xlu0 %1333
      %1336 = vset.pattern.permute.xlu0 1
      %1337 = vperm.xlu0 %1336, %v332
      %v1338 = vpop.permute.xlu0 %1337
      %1340 = vset.pattern.permute.xlu0 1
      %1341 = vperm.xlu0 %1340, %v333
      %v1342 = vpop.permute.xlu0 %1341
      %1344 = vset.pattern.permute.xlu0 1
      %1345 = vperm.xlu0 %1344, %v334
      %v1346 = vpop.permute.xlu0 %1345
      %1348 = vset.pattern.permute.xlu0 1
      %1349 = vperm.xlu0 %1348, %v335
      %v1350 = vpop.permute.xlu0 %1349
      %1352 = vset.pattern.permute.xlu0 1
      %1353 = vperm.xlu0 %1352, %v336
      %v1354 = vpop.permute.xlu0 %1353
      %1356 = vset.pattern.permute.xlu0 1
      %1357 = vperm.xlu0 %1356, %v337
      %v1358 = vpop.permute.xlu0 %1357
      %1360 = vset.pattern.permute.xlu0 1
      %1361 = vperm.xlu0 %1360, %v338
      %v1362 = vpop.permute.xlu0 %1361
      %1364 = vset.pattern.permute.xlu0 1
      %1365 = vperm.xlu0 %1364, %v339
      %v1366 = vpop.permute.xlu0 %1365
      %1368 = vset.pattern.permute.xlu0 1
      %1369 = vperm.xlu0 %1368, %v340
      %v1370 = vpop.permute.xlu0 %1369
      %1372 = vset.pattern.permute.xlu0 1
      %1373 = vperm.xlu0 %1372, %v341
      %v1374 = vpop.permute.xlu0 %1373
      %1376 = vset.pattern.permute.xlu0 1
      %1377 = vperm.xlu0 %1376, %v342
      %v1378 = vpop.permute.xlu0 %1377
      %v1380 = vmul.f32 %v1320, %v1334
      %v1381 = vmul.f32 %v1321, %v1338
      %v1382 = vmul.f32 %v1322, %v1342
      %v1383 = vmul.f32 %v1323, %v1346
      %v1384 = vmul.f32 %v1324, %v1350
      %v1385 = vmul.f32 %v1325, %v1354
      %v1386 = vmul.f32 %v1326, %v1358
      %v1387 = vmul.f32 %v1327, %v1362
      %v1388 = vmul.f32 %v1328, %v1366
      %v1389 = vmul.f32 %v1329, %v1370
      %v1390 = vmul.f32 %v1330, %v1374
      %v1391 = vmul.f32 %v1331, %v1378
      %1392 = vset.pattern.permute.xlu0 2
      %1393 = vperm.xlu0 %1392, %v331
      %v1394 = vpop.permute.xlu0 %1393
      %1396 = vset.pattern.permute.xlu0 2
      %1397 = vperm.xlu0 %1396, %v332
      %v1398 = vpop.permute.xlu0 %1397
      %1400 = vset.pattern.permute.xlu0 2
      %1401 = vperm.xlu0 %1400, %v333
      %v1402 = vpop.permute.xlu0 %1401
      %1404 = vset.pattern.permute.xlu0 2
      %1405 = vperm.xlu0 %1404, %v334
      %v1406 = vpop.permute.xlu0 %1405
      %1408 = vset.pattern.permute.xlu0 2
      %1409 = vperm.xlu0 %1408, %v335
      %v1410 = vpop.permute.xlu0 %1409
      %1412 = vset.pattern.permute.xlu0 2
      %1413 = vperm.xlu0 %1412, %v336
      %v1414 = vpop.permute.xlu0 %1413
      %1416 = vset.pattern.permute.xlu0 2
      %1417 = vperm.xlu0 %1416, %v337
      %v1418 = vpop.permute.xlu0 %1417
      %1420 = vset.pattern.permute.xlu0 2
      %1421 = vperm.xlu0 %1420, %v338
      %v1422 = vpop.permute.xlu0 %1421
      %1424 = vset.pattern.permute.xlu0 2
      %1425 = vperm.xlu0 %1424, %v339
      %v1426 = vpop.permute.xlu0 %1425
      %1428 = vset.pattern.permute.xlu0 2
      %1429 = vperm.xlu0 %1428, %v340
      %v1430 = vpop.permute.xlu0 %1429
      %1432 = vset.pattern.permute.xlu0 2
      %1433 = vperm.xlu0 %1432, %v341
      %v1434 = vpop.permute.xlu0 %1433
      %1436 = vset.pattern.permute.xlu0 2
      %1437 = vperm.xlu0 %1436, %v342
      %v1438 = vpop.permute.xlu0 %1437
      %v1440 = vadd.f32 %v1380, %v1394
      %v1441 = vadd.f32 %v1381, %v1398
      %v1442 = vadd.f32 %v1382, %v1402
      %v1443 = vadd.f32 %v1383, %v1406
      %v1444 = vadd.f32 %v1384, %v1410
      %v1445 = vadd.f32 %v1385, %v1414
      %v1446 = vadd.f32 %v1386, %v1418
      %v1447 = vadd.f32 %v1387, %v1422
      %v1448 = vadd.f32 %v1388, %v1426
      %v1449 = vadd.f32 %v1389, %v1430
      %v1450 = vadd.f32 %v1390, %v1434
      %v1451 = vadd.f32 %v1391, %v1438
      %v1452 = vmul.f32 %v1440, 0.5
      %v1453 = vmul.f32 %v1441, 0.5
      %v1454 = vmul.f32 %v1442, 0.5
      %v1455 = vmul.f32 %v1443, 0.5
      %v1456 = vmul.f32 %v1444, 0.5
      %v1457 = vmul.f32 %v1445, 0.5
      %v1458 = vmul.f32 %v1446, 0.5
      %v1459 = vmul.f32 %v1447, 0.5
      %v1460 = vmul.f32 %v1448, 0.5
      %v1461 = vmul.f32 %v1449, 0.5
      %v1462 = vmul.f32 %v1450, 0.5
      %v1463 = vmul.f32 %v1451, 0.5
      %v1464 = vmul.f32 %v1440, 0.70710677
      %v1465 = vmul.f32 %v1441, 0.70710677
      %v1466 = vmul.f32 %v1442, 0.70710677
      %v1467 = vmul.f32 %v1443, 0.70710677
      %v1468 = vmul.f32 %v1444, 0.70710677
      %v1469 = vmul.f32 %v1445, 0.70710677
      %v1470 = vmul.f32 %v1446, 0.70710677
      %v1471 = vmul.f32 %v1447, 0.70710677
      %v1472 = vmul.f32 %v1448, 0.70710677
      %v1473 = vmul.f32 %v1449, 0.70710677
      %v1474 = vmul.f32 %v1450, 0.70710677
      %v1475 = vmul.f32 %v1451, 0.70710677
      %v1476 = verf.f32.pop %v1464
      %v1477 = verf.f32.pop %v1465
      %v1478 = verf.f32.pop %v1466
      %v1479 = verf.f32.pop %v1467
      %v1480 = verf.f32.pop %v1468
      %v1481 = verf.f32.pop %v1469
      %v1482 = verf.f32.pop %v1470
      %v1483 = verf.f32.pop %v1471
      %v1484 = verf.f32.pop %v1472
      %v1485 = verf.f32.pop %v1473
      %v1486 = verf.f32.pop %v1474
      %v1487 = verf.f32.pop %v1475
      %v1488 = vadd.f32 %v1476, 1.0
      %v1489 = vadd.f32 %v1477, 1.0
      %v1490 = vadd.f32 %v1478, 1.0
      %v1491 = vadd.f32 %v1479, 1.0
      %v1492 = vadd.f32 %v1480, 1.0
      %v1493 = vadd.f32 %v1481, 1.0
      %v1494 = vadd.f32 %v1482, 1.0
      %v1495 = vadd.f32 %v1483, 1.0
      %v1496 = vadd.f32 %v1484, 1.0
      %v1497 = vadd.f32 %v1485, 1.0
      %v1498 = vadd.f32 %v1486, 1.0
      %v1499 = vadd.f32 %v1487, 1.0
      %v1500 = vmul.f32 %v1452, %v1488
      %v1501 = vmul.f32 %v1453, %v1489
      %v1502 = vmul.f32 %v1454, %v1490
      %v1503 = vmul.f32 %v1455, %v1491
      %v1504 = vmul.f32 %v1456, %v1492
      %v1505 = vmul.f32 %v1457, %v1493
      %v1506 = vmul.f32 %v1458, %v1494
      %v1507 = vmul.f32 %v1459, %v1495
      %v1508 = vmul.f32 %v1460, %v1496
      %v1509 = vmul.f32 %v1461, %v1497
      %v1510 = vmul.f32 %v1462, %v1498
      %v1511 = vmul.f32 %v1463, %v1499
      %v1512 = vsel %vm821, %v1500, 0.0
      %v1513 = vsel %vm822, %v1501, 0.0
      %v1514 = vsel %vm823, %v1502, 0.0
      %v1515 = vsel %vm824, %v1503, 0.0
      %v1516 = vsel %vm825, %v1504, 0.0
      %v1517 = vsel %vm826, %v1505, 0.0
      %v1518 = vsel %vm827, %v1506, 0.0
      %v1519 = vsel %vm828, %v1507, 0.0
      %v1520 = vsel %vm829, %v1508, 0.0
      %v1521 = vsel %vm830, %v1509, 0.0
      %v1522 = vsel %vm831, %v1510, 0.0
      %v1523 = vsel %vm832, %v1511, 0.0
      %v1524 = vpack.c.bf16 %v1513, %v1512
      %v1525 = vpack.c.bf16 %v1515, %v1514
      %v1526 = vpack.c.bf16 %v1517, %v1516
      %v1527 = vpack.c.bf16 %v1519, %v1518
      %v1528 = vpack.c.bf16 %v1521, %v1520
      %v1529 = vpack.c.bf16 %v1523, %v1522
      %1536 = vrot.lane.b32.xlu0 %v1524, 7
      %v1537 = vpop.permute.xlu0 %1536
      %1538 = vrot.lane.b32.xlu0 %v1525, 7
      %v1539 = vpop.permute.xlu0 %1538
      %1540 = vrot.lane.b32.xlu0 %v1526, 7
      %v1541 = vpop.permute.xlu0 %1540
      %1542 = vrot.lane.b32.xlu0 %v1527, 7
      %v1543 = vpop.permute.xlu0 %1542
      %1544 = vrot.lane.b32.xlu0 %v1528, 7
      %v1545 = vpop.permute.xlu0 %1544
      %1546 = vrot.lane.b32.xlu0 %v1529, 7
      %v1547 = vpop.permute.xlu0 %1546
      %vm1554 = vcmask 1047608
      %1555 = vst.msk [vmem:[#allocation3] sm:$0xff] %vm1554, %v1537
      %1556 = vst.msk [vmem:[#allocation3 + $0x8] sm:$0xff] %vm363, %v1537
      %1557 = vst.msk [vmem:[#allocation3 + $0x10] sm:$0xff] %vm1554, %v1539
      %1558 = vst.msk [vmem:[#allocation3 + $0x18] sm:$0xff] %vm363, %v1539
      %1559 = vst.msk [vmem:[#allocation3 + $0x20] sm:$0xff] %vm1554, %v1541
      %1560 = vst.msk [vmem:[#allocation3 + $0x28] sm:$0xff] %vm363, %v1541
      %1561 = vst.msk [vmem:[#allocation3 + $0x30] sm:$0xff] %vm1554, %v1543
      %1562 = vst.msk [vmem:[#allocation3 + $0x38] sm:$0xff] %vm363, %v1543
      %1563 = vst.msk [vmem:[#allocation3 + $0x40] sm:$0xff] %vm1554, %v1545
      %1564 = vst.msk [vmem:[#allocation3 + $0x48] sm:$0xff] %vm363, %v1545
      %1565 = vst.msk [vmem:[#allocation3 + $0x50] sm:$0xff] %vm1554, %v1547
      %1566 = vst.msk [vmem:[#allocation3 + $0x58] sm:$0xff] %vm363, %v1547
      %v1567 = vld [vmem:[#allocation3] sm:$0xff]
      %v1568 = vld [vmem:[#allocation3 + $0x8] sm:$0xff]
      %v1569 = vld [vmem:[#allocation3 + $0x10] sm:$0xff]
      %v1570 = vld [vmem:[#allocation3 + $0x18] sm:$0xff]
      %1575 = vrot.lane.b32.xlu0 %v1567, 127
      %v1576 = vpop.permute.xlu0 %1575
      %1577 = vrot.lane.b32.xlu0 %v1568, 127
      %v1578 = vpop.permute.xlu0 %1577
      %1579 = vrot.lane.b32.xlu0 %v1569, 127
      %v1580 = vpop.permute.xlu0 %1579
      %1581 = vrot.lane.b32.xlu0 %v1570, 127
      %v1582 = vpop.permute.xlu0 %1581
      %vm1583 = vcmask 1039360
      %v1584 = vsel %vm1583, %v1576, %v1578
      %v1585 = vsel %vm1583, %v1580, %v1582
      %1586 = vrot.lane.b32.xlu0 %v1567, 126
      %v1587 = vpop.permute.xlu0 %1586
      %1588 = vrot.lane.b32.xlu0 %v1568, 126
      %v1589 = vpop.permute.xlu0 %1588
      %1590 = vrot.lane.b32.xlu0 %v1569, 126
      %v1591 = vpop.permute.xlu0 %1590
      %1592 = vrot.lane.b32.xlu0 %v1570, 126
      %v1593 = vpop.permute.xlu0 %1592
      %vm1594 = vcmask 1031168
      %v1595 = vsel %vm1594, %v1587, %v1589
      %v1596 = vsel %vm1594, %v1591, %v1593
      %1597 = vrot.lane.b32.xlu0 %v1567, 125
      %v1598 = vpop.permute.xlu0 %1597
      %1599 = vrot.lane.b32.xlu0 %v1568, 125
      %v1600 = vpop.permute.xlu0 %1599
      %1601 = vrot.lane.b32.xlu0 %v1569, 125
      %v1602 = vpop.permute.xlu0 %1601
      %1603 = vrot.lane.b32.xlu0 %v1570, 125
      %v1604 = vpop.permute.xlu0 %1603
      %vm1605 = vcmask 1022976
      %v1606 = vsel %vm1605, %v1598, %v1600
      %v1607 = vsel %vm1605, %v1602, %v1604
      %1608 = vrot.lane.b32.xlu0 %v1567, 124
      %v1609 = vpop.permute.xlu0 %1608
      %1610 = vrot.lane.b32.xlu0 %v1568, 124
      %v1611 = vpop.permute.xlu0 %1610
      %1612 = vrot.lane.b32.xlu0 %v1569, 124
      %v1613 = vpop.permute.xlu0 %1612
      %1614 = vrot.lane.b32.xlu0 %v1570, 124
      %v1615 = vpop.permute.xlu0 %1614
      %vm1616 = vcmask 1014784
      %v1617 = vsel %vm1616, %v1609, %v1611
      %v1618 = vsel %vm1616, %v1613, %v1615
      %v1619 = vld [vmem:[%s2] sm:$0xff]
      %v1620 = vld [vmem:[%s2 + $0x8] sm:$0xff]
      %v1621 = vld [vmem:[%s2 + $0x10] sm:$0xff]
      %v1622 = vld [vmem:[%s2 + $0x18] sm:$0xff]
      %1624 = vset.pattern.permute.xlu0 0
      %1625 = vperm.xlu0 %1624, %v343
      %v1626 = vpop.permute.xlu0 %1625
      %1629 = vset.pattern.permute.xlu0 0
      %1630 = vperm.xlu0 %1629, %v344
      %v1631 = vpop.permute.xlu0 %1630
      %1634 = vset.pattern.permute.xlu0 0
      %1635 = vperm.xlu0 %1634, %v345
      %v1636 = vpop.permute.xlu0 %1635
      %1639 = vset.pattern.permute.xlu0 0
      %1640 = vperm.xlu0 %1639, %v346
      %v1641 = vpop.permute.xlu0 %1640
      %v1647 = vunpack.c.l.b16 %v1619
      %v1648 = vunpack.c.h.b16 %v1619
      %v1649 = vunpack.c.l.b16 %v1620
      %v1650 = vunpack.c.h.b16 %v1620
      %v1651 = vunpack.c.l.b16 %v1621
      %v1652 = vunpack.c.h.b16 %v1621
      %v1653 = vunpack.c.l.b16 %v1622
      %v1654 = vunpack.c.h.b16 %v1622
      %v1655 = vpack.c.b16 %v1649, %v1647
      %v1656 = vpack.c.b16 %v1650, %v1648
      %v1657 = vpack.c.b16 %v1653, %v1651
      %v1658 = vpack.c.b16 %v1654, %v1652
      %1661 = vrot.lane.b32.xlu0 %v1567, 123
      %v1662 = vpop.permute.xlu0 %1661
      %1663 = vrot.lane.b32.xlu0 %v1568, 123
      %v1664 = vpop.permute.xlu0 %1663
      %1665 = vrot.lane.b32.xlu0 %v1569, 123
      %v1666 = vpop.permute.xlu0 %1665
      %1667 = vrot.lane.b32.xlu0 %v1570, 123
      %v1668 = vpop.permute.xlu0 %1667
      %1669 = vrot.lane.b32.xlu0 %v1584, 123
      %v1670 = vpop.permute.xlu0 %1669
      %1671 = vrot.lane.b32.xlu0 %v1578, 123
      %v1672 = vpop.permute.xlu0 %1671
      %1673 = vrot.lane.b32.xlu0 %v1585, 123
      %v1674 = vpop.permute.xlu0 %1673
      %1675 = vrot.lane.b32.xlu0 %v1582, 123
      %v1676 = vpop.permute.xlu0 %1675
      %1677 = vrot.lane.b32.xlu0 %v1595, 123
      %v1678 = vpop.permute.xlu0 %1677
      %1679 = vrot.lane.b32.xlu0 %v1589, 123
      %v1680 = vpop.permute.xlu0 %1679
      %1681 = vrot.lane.b32.xlu0 %v1596, 123
      %v1682 = vpop.permute.xlu0 %1681
      %1683 = vrot.lane.b32.xlu0 %v1593, 123
      %v1684 = vpop.permute.xlu0 %1683
      %1685 = vrot.lane.b32.xlu0 %v1606, 123
      %v1686 = vpop.permute.xlu0 %1685
      %1687 = vrot.lane.b32.xlu0 %v1600, 123
      %v1688 = vpop.permute.xlu0 %1687
      %1689 = vrot.lane.b32.xlu0 %v1607, 123
      %v1690 = vpop.permute.xlu0 %1689
      %1691 = vrot.lane.b32.xlu0 %v1604, 123
      %v1692 = vpop.permute.xlu0 %1691
      %1693 = vrot.lane.b32.xlu0 %v1617, 123
      %v1694 = vpop.permute.xlu0 %1693
      %1695 = vrot.lane.b32.xlu0 %v1611, 123
      %v1696 = vpop.permute.xlu0 %1695
      %1697 = vrot.lane.b32.xlu0 %v1618, 123
      %v1698 = vpop.permute.xlu0 %1697
      %1699 = vrot.lane.b32.xlu0 %v1615, 123
      %v1700 = vpop.permute.xlu0 %1699
      %vm1701 = vcmask 1006592
      %v1702 = vsel %vm1701, %v1662, %v1664
      %v1703 = vsel %vm1701, %v1666, %v1668
      %v1704 = vsel %vm1701, %v1670, %v1672
      %v1705 = vsel %vm1701, %v1674, %v1676
      %v1706 = vsel %vm1701, %v1678, %v1680
      %v1707 = vsel %vm1701, %v1682, %v1684
      %v1708 = vsel %vm1701, %v1686, %v1688
      %v1709 = vsel %vm1701, %v1690, %v1692
      %v1710 = vsel %vm1701, %v1694, %v1696
      %v1711 = vsel %vm1701, %v1698, %v1700
      %vm1722 = vcmask 261120
      %v1724 = vsel %vm1722, %v1656, 0
      %v1727 = vsel %vm1722, %v1658, 0
      %1729 = vmatprep.subr.bf16.mxu0 0
      %1730 = vmatpush1.bf16.msra.mxu0 %v1702
      %1731 = vmatprep.subr.bf16.mxu0 0
      %1732 = vmatpush1.bf16.msra.mxu0 %v1703
      %1733 = vmatprep.subr.bf16.mxu0 0
      %1734 = vmatpush1.bf16.msra.mxu0 %v1704
      %1735 = vmatprep.subr.bf16.mxu0 0
      %1736 = vmatpush1.bf16.msra.mxu0 %v1705
      %1737 = vmatprep.subr.bf16.mxu0 0
      %1738 = vmatpush1.bf16.msra.mxu0 %v1706
      %1739 = vmatprep.subr.bf16.mxu0 0
      %1740 = vmatpush1.bf16.msra.mxu0 %v1707
      %1741 = vmatprep.subr.bf16.mxu0 0
      %1742 = vmatpush1.bf16.msra.mxu0 %v1708
      %1743 = vmatprep.subr.bf16.mxu0 0
      %1744 = vmatpush1.bf16.msra.mxu0 %v1709
      %1745 = vmatprep.subr.bf16.mxu0 0
      %1746 = vmatpush1.bf16.msra.mxu0 %v1710
      %1747 = vmatprep.subr.bf16.mxu0 0
      %1748 = vmatpush1.bf16.msra.mxu0 %v1711
      %1749 = vmatprep.subr.bf16.mxu0 0
      %1750 = vmatpush1.bf16.msra.mxu0 0
      %1751 = vmatprep.subr.bf16.mxu0 0
      %1752 = vmatpush1.bf16.msra.mxu0 0
      %1753 = vmatprep.subr.bf16.mxu0 0
      %1754 = vmatpush1.bf16.msra.mxu0 0
      %1755 = vmatprep.subr.bf16.mxu0 0
      %1756 = vmatpush1.bf16.msra.mxu0 0
      %1757 = vmatprep.subr.bf16.mxu0 0
      %1758 = vmatpush1.bf16.msra.mxu0 0
      %1759 = vmatprep.subr.bf16.mxu0 0
      %1760 = vmatpush1.bf16.msra.mxu0 0
      %1761 = vmatprep.mubr.bf16.mxu0 %v1724
      %1762 = vmatmul.mubr.bf16.gmra.mrb[0].mxu0 %v1655
      %v1763 = vpop.f32.mrb[0].mxu0
      %v1764 = vadd.f32 %v1626, %v1763
      %v1765 = vpop.f32.mrb[0].mxu0
      %v1766 = vpop.f32.mrb[0].mxu0
      %v1767 = vadd.f32 %v1631, %v1766
      %v1768 = vpop.f32.mrb[0].mxu0
      %1769 = vmatprep.mubr.bf16.mxu0 %v1727
      %1770 = vmatmul.mubr.bf16.gmra.mrb[0].mxu0 %v1657
      %v1771 = vpop.f32.mrb[0].mxu0
      %v1772 = vadd.f32 %v1636, %v1771
      %v1773 = vpop.f32.mrb[0].mxu0
      %v1774 = vpop.f32.mrb[0].mxu0
      %v1775 = vadd.f32 %v1641, %v1774
      %v1776 = vpop.f32.mrb[0].mxu0
      %1777 = vdwg.mxu0
      %vm1778 = vcmp.lt.s32.totalorder %v390, 64
      %v1779 = vsel %vm1778, %v1764, 0.0
      %v1780 = vsel %vm1778, %v1767, 0.0
      %v1781 = vsel %vm1778, %v1772, 0.0
      %v1782 = vsel %vm1778, %v1775, 0.0
      %1783 = vadd.xlane.f32.xlu0 %v1779
      %v1784 = vpop.xlane.xlu0 %1783
      %1785 = vadd.xlane.f32.xlu0 %v1780
      %v1786 = vpop.xlane.xlu0 %1785
      %1787 = vadd.xlane.f32.xlu0 %v1781
      %v1788 = vpop.xlane.xlu0 %1787
      %1789 = vadd.xlane.f32.xlu0 %v1782
      %v1790 = vpop.xlane.xlu0 %1789
      %v1791 = vmul.f32 %v1779, %v1779
      %v1792 = vmul.f32 %v1780, %v1780
      %v1793 = vmul.f32 %v1781, %v1781
      %v1794 = vmul.f32 %v1782, %v1782
      %1795 = vadd.xlane.f32.xlu0 %v1791
      %v1796 = vpop.xlane.xlu0 %1795
      %1797 = vadd.xlane.f32.xlu0 %v1792
      %v1798 = vpop.xlane.xlu0 %1797
      %1799 = vadd.xlane.f32.xlu0 %v1793
      %v1800 = vpop.xlane.xlu0 %1799
      %1801 = vadd.xlane.f32.xlu0 %v1794
      %v1802 = vpop.xlane.xlu0 %1801
      %v1803 = vsel %vm905, %v1784, %v1796
      %v1804 = vsel %vm905, %v1786, %v1798
      %v1805 = vsel %vm905, %v1788, %v1800
      %v1806 = vsel %vm905, %v1790, %v1802
      %v1807 = vsel %vm1722, %v347, 0
      %v1809 = vsel %vm1722, %v348, 0
      %v1811 = vsel %vm1722, %v349, 0
      %v1813 = vsel %vm1722, %v350, 0
      %1815 = vmatprep.subr.mxu0 0.0
      %1816 = vmatpush1.msra.mxu0 %v1803
      %1817 = vmatprep.subr.mxu0 0.0
      %1818 = vmatpush1.msra.mxu0 %v1804
      %1819 = vmatprep.subr.mxu0 0.0
      %1820 = vmatpush1.msra.mxu0 %v1805
      %1821 = vmatprep.subr.mxu0 0.0
      %1822 = vmatpush1.msra.mxu0 %v1806
      %1823 = vmatprep.subr.mxu0 0.0
      %1824 = vmatpush1.msra.mxu0 0.0
      %1825 = vmatprep.subr.mxu0 0.0
      %1826 = vmatpush1.msra.mxu0 0.0
      %1827 = vmatprep.subr.mxu0 0.0
      %1828 = vmatpush1.msra.mxu0 0.0
      %1829 = vmatprep.subr.mxu0 0.0
      %1830 = vmatpush1.msra.mxu0 0.0
      %1831 = vmatprep.subr.mxu0 0.0
      %1832 = vmatpush1.msra.mxu0 0.0
      %1833 = vmatprep.subr.mxu0 0.0
      %1834 = vmatpush1.msra.mxu0 0.0
      %1835 = vmatprep.subr.mxu0 0.0
      %1836 = vmatpush1.msra.mxu0 0.0
      %1837 = vmatprep.subr.mxu0 0.0
      %1838 = vmatpush1.msra.mxu0 0.0
      %1839 = vmatprep.subr.mxu0 0.0
      %1840 = vmatpush1.msra.mxu0 0.0
      %1841 = vmatprep.subr.mxu0 0.0
      %1842 = vmatpush1.msra.mxu0 0.0
      %1843 = vmatprep.subr.mxu0 0.0
      %1844 = vmatpush1.msra.mxu0 0.0
      %1845 = vmatprep.subr.mxu0 0.0
      %1846 = vmatpush1.msra.mxu0 0.0
      %1847 = vmatprep.subr.mxu0 0.0
      %1848 = vmatpush1.msra.mxu0 0.0
      %1849 = vmatprep.subr.mxu0 0.0
      %1850 = vmatpush1.msra.mxu0 0.0
      %1851 = vmatprep.subr.mxu0 0.0
      %1852 = vmatpush1.msra.mxu0 0.0
      %1853 = vmatprep.subr.mxu0 0.0
      %1854 = vmatpush1.msra.mxu0 0.0
      %1855 = vmatprep.subr.mxu0 0.0
      %1856 = vmatpush1.msra.mxu0 0.0
      %1857 = vmatprep.subr.mxu0 0.0
      %1858 = vmatpush1.msra.mxu0 0.0
      %1859 = vmatprep.subr.mxu0 0.0
      %1860 = vmatpush1.msra.mxu0 0.0
      %1861 = vmatprep.subr.mxu0 0.0
      %1862 = vmatpush1.msra.mxu0 0.0
      %1863 = vmatprep.subr.mxu0 0.0
      %1864 = vmatpush1.msra.mxu0 0.0
      %1865 = vmatprep.subr.mxu0 0.0
      %1866 = vmatpush1.msra.mxu0 0.0
      %1867 = vmatprep.subr.mxu0 0.0
      %1868 = vmatpush1.msra.mxu0 0.0
      %1869 = vmatprep.subr.mxu0 0.0
      %1870 = vmatpush1.msra.mxu0 0.0
      %1871 = vmatprep.subr.mxu0 0.0
      %1872 = vmatpush1.msra.mxu0 0.0
      %1873 = vmatprep.subr.mxu0 0.0
      %1874 = vmatpush1.msra.mxu0 0.0
      %1875 = vmatprep.subr.mxu0 0.0
      %1876 = vmatpush1.msra.mxu0 0.0
      %1877 = vmatprep.subr.mxu0 0.0
      %1878 = vmatpush1.msra.mxu0 0.0
      %1879 = vmatprep.mubr.f32.mxu0 0.0
      %1880 = vmatmul.mubr.f32.gmra.mrb[0].mxu0 %v1807
      %v1881 = vpop.f32.mrb[0].mxu0
      %v1882 = vadd.f32 0.0, %v1881
      %v1883 = vpop.f32.mrb[0].mxu0
      %1884 = vmatprep.mubr.f32.mxu0 0.0
      %1885 = vmatmul.mubr.f32.gmra.mrb[0].mxu0 %v1809
      %v1886 = vpop.f32.mrb[0].mxu0
      %v1887 = vadd.f32 0.0, %v1886
      %v1888 = vpop.f32.mrb[0].mxu0
      %1889 = vmatprep.mubr.f32.mxu0 0.0
      %1890 = vmatmul.mubr.f32.gmra.mrb[0].mxu0 %v1811
      %v1891 = vpop.f32.mrb[0].mxu0
      %v1892 = vadd.f32 0.0, %v1891
      %v1893 = vpop.f32.mrb[0].mxu0
      %1894 = vmatprep.mubr.f32.mxu0 0.0
      %1895 = vmatmul.mubr.f32.gmra.mrb[0].mxu0 %v1813
      %v1896 = vpop.f32.mrb[0].mxu0
      %v1897 = vadd.f32 0.0, %v1896
      %v1898 = vpop.f32.mrb[0].mxu0
      %1899 = vdwg.mxu0
      %v1900 = vmul.f32 %v1882, 0.00390625
      %v1901 = vmul.f32 %v1887, 0.00390625
      %v1902 = vmul.f32 %v1892, 0.00390625
      %v1903 = vmul.f32 %v1897, 0.00390625
      %v1904 = vmul.f32 %v1900, %v1900
      %v1905 = vmul.f32 %v1901, %v1901
      %v1906 = vmul.f32 %v1902, %v1902
      %v1907 = vmul.f32 %v1903, %v1903
      %1912 = vrot.lane.b32.xlu0 %v1904, 1
      %v1913 = vpop.permute.xlu0 %1912
      %1914 = vrot.lane.b32.xlu0 %v1905, 1
      %v1915 = vpop.permute.xlu0 %1914
      %1916 = vrot.lane.b32.xlu0 %v1906, 1
      %v1917 = vpop.permute.xlu0 %1916
      %1918 = vrot.lane.b32.xlu0 %v1907, 1
      %v1919 = vpop.permute.xlu0 %1918
      %v1924 = vsub.f32 %v1900, %v1913
      %v1925 = vsub.f32 %v1901, %v1915
      %v1926 = vsub.f32 %v1902, %v1917
      %v1927 = vsub.f32 %v1903, %v1919
      %1929 = vset.pattern.permute.xlu0 0
      %1930 = vperm.xlu0 %1929, %v1900
      %v1931 = vpop.permute.xlu0 %1930
      %1934 = vset.pattern.permute.xlu0 0
      %1935 = vperm.xlu0 %1934, %v1901
      %v1936 = vpop.permute.xlu0 %1935
      %1939 = vset.pattern.permute.xlu0 0
      %1940 = vperm.xlu0 %1939, %v1902
      %v1941 = vpop.permute.xlu0 %1940
      %1944 = vset.pattern.permute.xlu0 0
      %1945 = vperm.xlu0 %1944, %v1903
      %v1946 = vpop.permute.xlu0 %1945
      %v1948 = vsub.f32 %v1764, %v1931
      %v1949 = vsub.f32 %v1767, %v1936
      %v1950 = vsub.f32 %v1772, %v1941
      %v1951 = vsub.f32 %v1775, %v1946
      %v1952 = vadd.f32 %v1924, 1e-05
      %v1953 = vadd.f32 %v1925, 1e-05
      %v1954 = vadd.f32 %v1926, 1e-05
      %v1955 = vadd.f32 %v1927, 1e-05
      %v1956 = vrsqrt.pop %v1952
      %v1957 = vrsqrt.pop %v1953
      %v1958 = vrsqrt.pop %v1954
      %v1959 = vrsqrt.pop %v1955
      %1961 = vset.pattern.permute.xlu0 1
      %1962 = vperm.xlu0 %1961, %v1956
      %v1963 = vpop.permute.xlu0 %1962
      %1966 = vset.pattern.permute.xlu0 1
      %1967 = vperm.xlu0 %1966, %v1957
      %v1968 = vpop.permute.xlu0 %1967
      %1971 = vset.pattern.permute.xlu0 1
      %1972 = vperm.xlu0 %1971, %v1958
      %v1973 = vpop.permute.xlu0 %1972
      %1976 = vset.pattern.permute.xlu0 1
      %1977 = vperm.xlu0 %1976, %v1959
      %v1978 = vpop.permute.xlu0 %1977
      %v1980 = vmul.f32 %v1948, %v1963
      %v1981 = vmul.f32 %v1949, %v1968
      %v1982 = vmul.f32 %v1950, %v1973
      %v1983 = vmul.f32 %v1951, %v1978
      %1984 = vset.pattern.permute.xlu0 1
      %1985 = vperm.xlu0 %1984, %v343
      %v1986 = vpop.permute.xlu0 %1985
      %1988 = vset.pattern.permute.xlu0 1
      %1989 = vperm.xlu0 %1988, %v344
      %v1990 = vpop.permute.xlu0 %1989
      %1992 = vset.pattern.permute.xlu0 1
      %1993 = vperm.xlu0 %1992, %v345
      %v1994 = vpop.permute.xlu0 %1993
      %1996 = vset.pattern.permute.xlu0 1
      %1997 = vperm.xlu0 %1996, %v346
      %v1998 = vpop.permute.xlu0 %1997
      %v2000 = vmul.f32 %v1980, %v1986
      %v2001 = vmul.f32 %v1981, %v1990
      %v2002 = vmul.f32 %v1982, %v1994
      %v2003 = vmul.f32 %v1983, %v1998
      %2004 = vset.pattern.permute.xlu0 2
      %2005 = vperm.xlu0 %2004, %v343
      %v2006 = vpop.permute.xlu0 %2005
      %2008 = vset.pattern.permute.xlu0 2
      %2009 = vperm.xlu0 %2008, %v344
      %v2010 = vpop.permute.xlu0 %2009
      %2012 = vset.pattern.permute.xlu0 2
      %2013 = vperm.xlu0 %2012, %v345
      %v2014 = vpop.permute.xlu0 %2013
      %2016 = vset.pattern.permute.xlu0 2
      %2017 = vperm.xlu0 %2016, %v346
      %v2018 = vpop.permute.xlu0 %2017
      %v2020 = vadd.f32 %v2000, %v2006
      %v2021 = vadd.f32 %v2001, %v2010
      %v2022 = vadd.f32 %v2002, %v2014
      %v2023 = vadd.f32 %v2003, %v2018
      %v2024 = vmul.f32 %v2020, 0.5
      %v2025 = vmul.f32 %v2021, 0.5
      %v2026 = vmul.f32 %v2022, 0.5
      %v2027 = vmul.f32 %v2023, 0.5
      %v2028 = vmul.f32 %v2020, 0.70710677
      %v2029 = vmul.f32 %v2021, 0.70710677
      %v2030 = vmul.f32 %v2022, 0.70710677
      %v2031 = vmul.f32 %v2023, 0.70710677
      %v2032 = verf.f32.pop %v2028
      %v2033 = verf.f32.pop %v2029
      %v2034 = verf.f32.pop %v2030
      %v2035 = verf.f32.pop %v2031
      %v2036 = vadd.f32 %v2032, 1.0
      %v2037 = vadd.f32 %v2033, 1.0
      %v2038 = vadd.f32 %v2034, 1.0
      %v2039 = vadd.f32 %v2035, 1.0
      %v2040 = vmul.f32 %v2024, %v2036
      %v2041 = vmul.f32 %v2025, %v2037
      %v2042 = vmul.f32 %v2026, %v2038
      %v2043 = vmul.f32 %v2027, %v2039
      %v2044 = vpack.c.bf16 %v2041, %v2040
      %v2045 = vpack.c.bf16 %v2043, %v2042
      %v2046 = vld [vmem:[#allocation3 + $0x20] sm:$0xff]
      %v2047 = vld [vmem:[#allocation3 + $0x28] sm:$0xff]
      %v2048 = vld [vmem:[#allocation3 + $0x30] sm:$0xff]
      %v2049 = vld [vmem:[#allocation3 + $0x38] sm:$0xff]
      %2054 = vrot.lane.b32.xlu0 %v2046, 125
      %v2055 = vpop.permute.xlu0 %2054
      %2056 = vrot.lane.b32.xlu0 %v2047, 125
      %v2057 = vpop.permute.xlu0 %2056
      %2058 = vrot.lane.b32.xlu0 %v2048, 125
      %v2059 = vpop.permute.xlu0 %2058
      %2060 = vrot.lane.b32.xlu0 %v2049, 125
      %v2061 = vpop.permute.xlu0 %2060
      %v2062 = vsel %vm1605, %v2055, %v2057
      %v2063 = vsel %vm1605, %v2059, %v2061
      %2064 = vrot.lane.b32.xlu0 %v2046, 122
      %v2065 = vpop.permute.xlu0 %2064
      %2066 = vrot.lane.b32.xlu0 %v2047, 122
      %v2067 = vpop.permute.xlu0 %2066
      %2068 = vrot.lane.b32.xlu0 %v2048, 122
      %v2069 = vpop.permute.xlu0 %2068
      %2070 = vrot.lane.b32.xlu0 %v2049, 122
      %v2071 = vpop.permute.xlu0 %2070
      %vm2072 = vcmask 998400
      %v2073 = vsel %vm2072, %v2065, %v2067
      %v2074 = vsel %vm2072, %v2069, %v2071
      %2075 = vrot.lane.b32.xlu0 %v2046, 119
      %v2076 = vpop.permute.xlu0 %2075
      %2077 = vrot.lane.b32.xlu0 %v2047, 119
      %v2078 = vpop.permute.xlu0 %2077
      %2079 = vrot.lane.b32.xlu0 %v2048, 119
      %v2080 = vpop.permute.xlu0 %2079
      %2081 = vrot.lane.b32.xlu0 %v2049, 119
      %v2082 = vpop.permute.xlu0 %2081
      %vm2083 = vcmask 973824
      %v2084 = vsel %vm2083, %v2076, %v2078
      %v2085 = vsel %vm2083, %v2080, %v2082
      %2086 = vrot.lane.b32.xlu0 %v2046, 116
      %v2087 = vpop.permute.xlu0 %2086
      %2088 = vrot.lane.b32.xlu0 %v2047, 116
      %v2089 = vpop.permute.xlu0 %2088
      %2090 = vrot.lane.b32.xlu0 %v2048, 116
      %v2091 = vpop.permute.xlu0 %2090
      %2092 = vrot.lane.b32.xlu0 %v2049, 116
      %v2093 = vpop.permute.xlu0 %2092
      %vm2094 = vcmask 949248
      %v2095 = vsel %vm2094, %v2087, %v2089
      %v2096 = vsel %vm2094, %v2091, %v2093
      %2097 = vrot.lane.b32.xlu0 %v2046, 113
      %v2098 = vpop.permute.xlu0 %2097
      %2099 = vrot.lane.b32.xlu0 %v2047, 113
      %v2100 = vpop.permute.xlu0 %2099
      %2101 = vrot.lane.b32.xlu0 %v2048, 113
      %v2102 = vpop.permute.xlu0 %2101
      %2103 = vrot.lane.b32.xlu0 %v2049, 113
      %v2104 = vpop.permute.xlu0 %2103
      %vm2105 = vcmask 924672
      %v2106 = vsel %vm2105, %v2098, %v2100
      %v2107 = vsel %vm2105, %v2102, %v2104
      %2108 = vrot.lane.b32.xlu0 %v2046, 110
      %v2109 = vpop.permute.xlu0 %2108
      %2110 = vrot.lane.b32.xlu0 %v2047, 110
      %v2111 = vpop.permute.xlu0 %2110
      %2112 = vrot.lane.b32.xlu0 %v2048, 110
      %v2113 = vpop.permute.xlu0 %2112
      %2114 = vrot.lane.b32.xlu0 %v2049, 110
      %v2115 = vpop.permute.xlu0 %2114
      %vm2116 = vcmask 900096
      %v2117 = vsel %vm2116, %v2109, %v2111
      %v2118 = vsel %vm2116, %v2113, %v2115
      %2119 = vrot.lane.b32.xlu0 %v2046, 107
      %v2120 = vpop.permute.xlu0 %2119
      %2121 = vrot.lane.b32.xlu0 %v2047, 107
      %v2122 = vpop.permute.xlu0 %2121
      %2123 = vrot.lane.b32.xlu0 %v2048, 107
      %v2124 = vpop.permute.xlu0 %2123
      %2125 = vrot.lane.b32.xlu0 %v2049, 107
      %v2126 = vpop.permute.xlu0 %2125
      %vm2127 = vcmask 875520
      %v2128 = vsel %vm2127, %v2120, %v2122
      %v2129 = vsel %vm2127, %v2124, %v2126
      %2130 = vrot.lane.b32.xlu0 %v2046, 104
      %v2131 = vpop.permute.xlu0 %2130
      %2132 = vrot.lane.b32.xlu0 %v2047, 104
      %v2133 = vpop.permute.xlu0 %2132
      %2134 = vrot.lane.b32.xlu0 %v2048, 104
      %v2135 = vpop.permute.xlu0 %2134
      %2136 = vrot.lane.b32.xlu0 %v2049, 104
      %v2137 = vpop.permute.xlu0 %2136
      %vm2138 = vcmask 850944
      %v2139 = vsel %vm2138, %v2131, %v2133
      %v2140 = vsel %vm2138, %v2135, %v2137
      %2141 = vrot.lane.b32.xlu0 %v2046, 101
      %v2142 = vpop.permute.xlu0 %2141
      %2143 = vrot.lane.b32.xlu0 %v2047, 101
      %v2144 = vpop.permute.xlu0 %2143
      %2145 = vrot.lane.b32.xlu0 %v2048, 101
      %v2146 = vpop.permute.xlu0 %2145
      %2147 = vrot.lane.b32.xlu0 %v2049, 101
      %v2148 = vpop.permute.xlu0 %2147
      %vm2149 = vcmask 826368
      %v2150 = vsel %vm2149, %v2142, %v2144
      %v2151 = vsel %vm2149, %v2146, %v2148
      %2152 = vrot.lane.b32.xlu0 %v2046, 98
      %v2153 = vpop.permute.xlu0 %2152
      %2154 = vrot.lane.b32.xlu0 %v2047, 98
      %v2155 = vpop.permute.xlu0 %2154
      %2156 = vrot.lane.b32.xlu0 %v2048, 98
      %v2157 = vpop.permute.xlu0 %2156
      %2158 = vrot.lane.b32.xlu0 %v2049, 98
      %v2159 = vpop.permute.xlu0 %2158
      %vm2160 = vcmask 801792
      %v2161 = vsel %vm2160, %v2153, %v2155
      %v2162 = vsel %vm2160, %v2157, %v2159
      %v2163 = vld [vmem:[%s3] sm:$0xff]
      %v2164 = vld [vmem:[%s3 + $0x8] sm:$0xf]
      %v2165 = vld [vmem:[%s3 + $0xc] sm:$0xff]
      %v2166 = vld [vmem:[%s3 + $0x14] sm:$0xf]
      %v2167 = vld [vmem:[%s3 + $0x18] sm:$0xff]
      %v2168 = vld [vmem:[%s3 + $0x20] sm:$0xf]
      %v2169 = vld [vmem:[%s3 + $0x24] sm:$0xff]
      %v2170 = vld [vmem:[%s3 + $0x2c] sm:$0xf]
      %2171 = vset.pattern.permute.xlu0 3
      %2172 = vperm.xlu0 %2171, %v343
      %v2173 = vpop.permute.xlu0 %2172
      %2175 = vset.pattern.permute.xlu0 3
      %2176 = vperm.xlu0 %2175, %v344
      %v2177 = vpop.permute.xlu0 %2176
      %2179 = vset.pattern.permute.xlu0 3
      %2180 = vperm.xlu0 %2179, %v345
      %v2181 = vpop.permute.xlu0 %2180
      %2183 = vset.pattern.permute.xlu0 3
      %2184 = vperm.xlu0 %2183, %v346
      %v2185 = vpop.permute.xlu0 %2184
      %v2195 = vunpack.c.l.b16 %v2163
      %v2196 = vunpack.c.h.b16 %v2163
      %v2197 = vunpack.c.l.b16 %v2164
      %v2198 = vunpack.c.l.b16 %v2165
      %v2199 = vunpack.c.h.b16 %v2165
      %v2200 = vunpack.c.l.b16 %v2166
      %v2201 = vunpack.c.l.b16 %v2167
      %v2202 = vunpack.c.h.b16 %v2167
      %v2203 = vunpack.c.l.b16 %v2168
      %v2204 = vunpack.c.l.b16 %v2169
      %v2205 = vunpack.c.h.b16 %v2169
      %v2206 = vunpack.c.l.b16 %v2170
      %v2207 = vpack.c.b16 %v2198, %v2195
      %v2208 = vpack.c.b16 %v2199, %v2196
      %v2209 = vpack.c.b16 %v2200, %v2197
      %v2210 = vpack.c.b16 %v2204, %v2201
      %v2211 = vpack.c.b16 %v2205, %v2202
      %v2212 = vpack.c.b16 %v2206, %v2203
      %2217 = vrot.lane.b32.xlu0 %v2046, 126
      %v2218 = vpop.permute.xlu0 %2217
      %2219 = vrot.lane.b32.xlu0 %v2047, 126
      %v2220 = vpop.permute.xlu0 %2219
      %2221 = vrot.lane.b32.xlu0 %v2048, 126
      %v2222 = vpop.permute.xlu0 %2221
      %2223 = vrot.lane.b32.xlu0 %v2049, 126
      %v2224 = vpop.permute.xlu0 %2223
      %2225 = vrot.lane.b32.xlu0 %v2062, 126
      %v2226 = vpop.permute.xlu0 %2225
      %2227 = vrot.lane.b32.xlu0 %v2057, 126
      %v2228 = vpop.permute.xlu0 %2227
      %2229 = vrot.lane.b32.xlu0 %v2063, 126
      %v2230 = vpop.permute.xlu0 %2229
      %2231 = vrot.lane.b32.xlu0 %v2061, 126
      %v2232 = vpop.permute.xlu0 %2231
      %2233 = vrot.lane.b32.xlu0 %v2073, 126
      %v2234 = vpop.permute.xlu0 %2233
      %2235 = vrot.lane.b32.xlu0 %v2067, 126
      %v2236 = vpop.permute.xlu0 %2235
      %2237 = vrot.lane.b32.xlu0 %v2074, 126
      %v2238 = vpop.permute.xlu0 %2237
      %2239 = vrot.lane.b32.xlu0 %v2071, 126
      %v2240 = vpop.permute.xlu0 %2239
      %2241 = vrot.lane.b32.xlu0 %v2084, 126
      %v2242 = vpop.permute.xlu0 %2241
      %2243 = vrot.lane.b32.xlu0 %v2078, 126
      %v2244 = vpop.permute.xlu0 %2243
      %2245 = vrot.lane.b32.xlu0 %v2085, 126
      %v2246 = vpop.permute.xlu0 %2245
      %2247 = vrot.lane.b32.xlu0 %v2082, 126
      %v2248 = vpop.permute.xlu0 %2247
      %2249 = vrot.lane.b32.xlu0 %v2095, 126
      %v2250 = vpop.permute.xlu0 %2249
      %2251 = vrot.lane.b32.xlu0 %v2089, 126
      %v2252 = vpop.permute.xlu0 %2251
      %2253 = vrot.lane.b32.xlu0 %v2096, 126
      %v2254 = vpop.permute.xlu0 %2253
      %2255 = vrot.lane.b32.xlu0 %v2093, 126
      %v2256 = vpop.permute.xlu0 %2255
      %2257 = vrot.lane.b32.xlu0 %v2106, 126
      %v2258 = vpop.permute.xlu0 %2257
      %2259 = vrot.lane.b32.xlu0 %v2100, 126
      %v2260 = vpop.permute.xlu0 %2259
      %2261 = vrot.lane.b32.xlu0 %v2107, 126
      %v2262 = vpop.permute.xlu0 %2261
      %2263 = vrot.lane.b32.xlu0 %v2104, 126
      %v2264 = vpop.permute.xlu0 %2263
      %2265 = vrot.lane.b32.xlu0 %v2117, 126
      %v2266 = vpop.permute.xlu0 %2265
      %2267 = vrot.lane.b32.xlu0 %v2111, 126
      %v2268 = vpop.permute.xlu0 %2267
      %2269 = vrot.lane.b32.xlu0 %v2118, 126
      %v2270 = vpop.permute.xlu0 %2269
      %2271 = vrot.lane.b32.xlu0 %v2115, 126
      %v2272 = vpop.permute.xlu0 %2271
      %2273 = vrot.lane.b32.xlu0 %v2128, 126
      %v2274 = vpop.permute.xlu0 %2273
      %2275 = vrot.lane.b32.xlu0 %v2122, 126
      %v2276 = vpop.permute.xlu0 %2275
      %2277 = vrot.lane.b32.xlu0 %v2129, 126
      %v2278 = vpop.permute.xlu0 %2277
      %2279 = vrot.lane.b32.xlu0 %v2126, 126
      %v2280 = vpop.permute.xlu0 %2279
      %2281 = vrot.lane.b32.xlu0 %v2139, 126
      %v2282 = vpop.permute.xlu0 %2281
      %2283 = vrot.lane.b32.xlu0 %v2133, 126
      %v2284 = vpop.permute.xlu0 %2283
      %2285 = vrot.lane.b32.xlu0 %v2140, 126
      %v2286 = vpop.permute.xlu0 %2285
      %2287 = vrot.lane.b32.xlu0 %v2137, 126
      %v2288 = vpop.permute.xlu0 %2287
      %2289 = vrot.lane.b32.xlu0 %v2150, 126
      %v2290 = vpop.permute.xlu0 %2289
      %2291 = vrot.lane.b32.xlu0 %v2144, 126
      %v2292 = vpop.permute.xlu0 %2291
      %2293 = vrot.lane.b32.xlu0 %v2151, 126
      %v2294 = vpop.permute.xlu0 %2293
      %2295 = vrot.lane.b32.xlu0 %v2148, 126
      %v2296 = vpop.permute.xlu0 %2295
      %2297 = vrot.lane.b32.xlu0 %v2161, 126
      %v2298 = vpop.permute.xlu0 %2297
      %2299 = vrot.lane.b32.xlu0 %v2155, 126
      %v2300 = vpop.permute.xlu0 %2299
      %2301 = vrot.lane.b32.xlu0 %v2162, 126
      %v2302 = vpop.permute.xlu0 %2301
      %2303 = vrot.lane.b32.xlu0 %v2159, 126
      %v2304 = vpop.permute.xlu0 %2303
      %v2305 = vsel %vm1594, %v2218, %v2220
      %v2306 = vsel %vm1594, %v2222, %v2224
      %v2307 = vsel %vm1594, %v2226, %v2228
      %v2308 = vsel %vm1594, %v2230, %v2232
      %v2309 = vsel %vm1594, %v2234, %v2236
      %v2310 = vsel %vm1594, %v2238, %v2240
      %v2311 = vsel %vm1594, %v2242, %v2244
      %v2312 = vsel %vm1594, %v2246, %v2248
      %v2313 = vsel %vm1594, %v2250, %v2252
      %v2314 = vsel %vm1594, %v2254, %v2256
      %v2315 = vsel %vm1594, %v2258, %v2260
      %v2316 = vsel %vm1594, %v2262, %v2264
      %v2317 = vsel %vm1594, %v2266, %v2268
      %v2318 = vsel %vm1594, %v2270, %v2272
      %v2319 = vsel %vm1594, %v2274, %v2276
      %v2320 = vsel %vm1594, %v2278, %v2280
      %v2321 = vsel %vm1594, %v2282, %v2284
      %v2322 = vsel %vm1594, %v2286, %v2288
      %v2323 = vsel %vm1594, %v2290, %v2292
      %v2324 = vsel %vm1594, %v2294, %v2296
      %v2325 = vsel %vm1594, %v2298, %v2300
      %v2326 = vsel %vm1594, %v2302, %v2304
      %v2350 = vsel %vm918, %v2209, 0
      %v2353 = vsel %vm918, %v2212, 0
      %2355 = vmatprep.subr.bf16.mxu0 0
      %2356 = vmatpush1.bf16.msra.mxu0 %v2305
      %2357 = vmatprep.subr.bf16.mxu0 0
      %2358 = vmatpush1.bf16.msra.mxu0 %v2306
      %2359 = vmatprep.subr.bf16.mxu0 0
      %2360 = vmatpush1.bf16.msra.mxu0 %v2307
      %2361 = vmatprep.subr.bf16.mxu0 0
      %2362 = vmatpush1.bf16.msra.mxu0 %v2308
      %2363 = vmatprep.subr.bf16.mxu0 0
      %2364 = vmatpush1.bf16.msra.mxu0 %v2309
      %2365 = vmatprep.subr.bf16.mxu0 0
      %2366 = vmatpush1.bf16.msra.mxu0 %v2310
      %2367 = vmatprep.subr.bf16.mxu0 0
      %2368 = vmatpush1.bf16.msra.mxu0 %v2311
      %2369 = vmatprep.subr.bf16.mxu0 0
      %2370 = vmatpush1.bf16.msra.mxu0 %v2312
      %2371 = vmatprep.subr.bf16.mxu0 0
      %2372 = vmatpush1.bf16.msra.mxu0 %v2313
      %2373 = vmatprep.subr.bf16.mxu0 0
      %2374 = vmatpush1.bf16.msra.mxu0 %v2314
      %2375 = vmatprep.subr.bf16.mxu0 0
      %2376 = vmatpush1.bf16.msra.mxu0 %v2315
      %2377 = vmatprep.subr.bf16.mxu0 0
      %2378 = vmatpush1.bf16.msra.mxu0 %v2316
      %2379 = vmatprep.subr.bf16.mxu0 0
      %2380 = vmatpush1.bf16.msra.mxu0 %v2317
      %2381 = vmatprep.subr.bf16.mxu0 0
      %2382 = vmatpush1.bf16.msra.mxu0 %v2318
      %2383 = vmatprep.subr.bf16.mxu0 0
      %2384 = vmatpush1.bf16.msra.mxu0 %v2319
      %2385 = vmatprep.subr.bf16.mxu0 0
      %2386 = vmatpush1.bf16.msra.mxu0 %v2320
      %2387 = vmatprep.mubr.bf16.mxu0 %v2208
      %2388 = vmatmul.mubr.bf16.gmra.mrb[0].mxu0 %v2207
      %v2389 = vpop.f32.mrb[0].mxu0
      %v2390 = vadd.f32 %v2173, %v2389
      %v2391 = vpop.f32.mrb[0].mxu0
      %v2392 = vpop.f32.mrb[0].mxu0
      %v2393 = vadd.f32 %v2177, %v2392
      %v2394 = vpop.f32.mrb[0].mxu0
      %2395 = vmatprep.mubr.bf16.mxu0 %v2211
      %2396 = vmatmul.mubr.bf16.gmra.mrb[0].mxu0 %v2210
      %v2397 = vpop.f32.mrb[0].mxu0
      %v2398 = vadd.f32 %v2181, %v2397
      %v2399 = vpop.f32.mrb[0].mxu0
      %v2400 = vpop.f32.mrb[0].mxu0
      %v2401 = vadd.f32 %v2185, %v2400
      %v2402 = vpop.f32.mrb[0].mxu0
      %2403 = vdwg.mxu0
      %2404 = vmatprep.subr.bf16.mxu0 0
      %2405 = vmatpush1.bf16.msra.mxu0 %v2321
      %2406 = vmatprep.subr.bf16.mxu0 0
      %2407 = vmatpush1.bf16.msra.mxu0 %v2322
      %2408 = vmatprep.subr.bf16.mxu0 0
      %2409 = vmatpush1.bf16.msra.mxu0 %v2323
      %2410 = vmatprep.subr.bf16.mxu0 0
      %2411 = vmatpush1.bf16.msra.mxu0 %v2324
      %2412 = vmatprep.subr.bf16.mxu0 0
      %2413 = vmatpush1.bf16.msra.mxu0 %v2325
      %2414 = vmatprep.subr.bf16.mxu0 0
      %2415 = vmatpush1.bf16.msra.mxu0 %v2326
      %2416 = vmatprep.subr.bf16.mxu0 0
      %2417 = vmatpush1.bf16.msra.mxu0 0
      %2418 = vmatprep.subr.bf16.mxu0 0
      %2419 = vmatpush1.bf16.msra.mxu0 0
      %2420 = vmatprep.subr.bf16.mxu0 0
      %2421 = vmatpush1.bf16.msra.mxu0 0
      %2422 = vmatprep.subr.bf16.mxu0 0
      %2423 = vmatpush1.bf16.msra.mxu0 0
      %2424 = vmatprep.subr.bf16.mxu0 0
      %2425 = vmatpush1.bf16.msra.mxu0 0
      %2426 = vmatprep.subr.bf16.mxu0 0
      %2427 = vmatpush1.bf16.msra.mxu0 0
      %2428 = vmatprep.subr.bf16.mxu0 0
      %2429 = vmatpush1.bf16.msra.mxu0 0
      %2430 = vmatprep.subr.bf16.mxu0 0
      %2431 = vmatpush1.bf16.msra.mxu0 0
      %2432 = vmatprep.subr.bf16.mxu0 0
      %2433 = vmatpush1.bf16.msra.mxu0 0
      %2434 = vmatprep.subr.bf16.mxu0 0
      %2435 = vmatpush1.bf16.msra.mxu0 0
      %2436 = vmatprep.mubr.bf16.mxu0 0
      %2437 = vmatmul.mubr.bf16.gmra.mrb[0].mxu0 %v2350
      %v2438 = vpop.f32.mrb[0].mxu0
      %v2439 = vadd.f32 %v2390, %v2438
      %v2440 = vpop.f32.mrb[0].mxu0
      %v2441 = vpop.f32.mrb[0].mxu0
      %v2442 = vadd.f32 %v2393, %v2441
      %v2443 = vpop.f32.mrb[0].mxu0
      %2444 = vmatprep.mubr.bf16.mxu0 0
      %2445 = vmatmul.mubr.bf16.gmra.mrb[0].mxu0 %v2353
      %v2446 = vpop.f32.mrb[0].mxu0
      %v2447 = vadd.f32 %v2398, %v2446
      %v2448 = vpop.f32.mrb[0].mxu0
      %v2449 = vpop.f32.mrb[0].mxu0
      %v2450 = vadd.f32 %v2401, %v2449
      %v2451 = vpop.f32.mrb[0].mxu0
      %2452 = vdwg.mxu0
      %vm2453 = vcmp.lt.s32.totalorder %v390, 30
      %v2454 = vsel %vm2453, %v2439, 0.0
      %v2455 = vsel %vm2453, %v2442, 0.0
      %v2456 = vsel %vm2453, %v2447, 0.0
      %v2457 = vsel %vm2453, %v2450, 0.0
      %2458 = vadd.xlane.f32.xlu0 %v2454
      %v2459 = vpop.xlane.xlu0 %2458
      %2460 = vadd.xlane.f32.xlu0 %v2455
      %v2461 = vpop.xlane.xlu0 %2460
      %2462 = vadd.xlane.f32.xlu0 %v2456
      %v2463 = vpop.xlane.xlu0 %2462
      %2464 = vadd.xlane.f32.xlu0 %v2457
      %v2465 = vpop.xlane.xlu0 %2464
      %v2466 = vmul.f32 %v2454, %v2454
      %v2467 = vmul.f32 %v2455, %v2455
      %v2468 = vmul.f32 %v2456, %v2456
      %v2469 = vmul.f32 %v2457, %v2457
      %2470 = vadd.xlane.f32.xlu0 %v2466
      %v2471 = vpop.xlane.xlu0 %2470
      %2472 = vadd.xlane.f32.xlu0 %v2467
      %v2473 = vpop.xlane.xlu0 %2472
      %2474 = vadd.xlane.f32.xlu0 %v2468
      %v2475 = vpop.xlane.xlu0 %2474
      %2476 = vadd.xlane.f32.xlu0 %v2469
      %v2477 = vpop.xlane.xlu0 %2476
      %v2478 = vsel %vm905, %v2459, %v2471
      %v2479 = vsel %vm905, %v2461, %v2473
      %v2480 = vsel %vm905, %v2463, %v2475
      %v2481 = vsel %vm905, %v2465, %v2477
      %2482 = vmatprep.subr.mxu0 0.0
      %2483 = vmatpush1.msra.mxu0 %v2478
      %2484 = vmatprep.subr.mxu0 0.0
      %2485 = vmatpush1.msra.mxu0 %v2479
      %2486 = vmatprep.subr.mxu0 0.0
      %2487 = vmatpush1.msra.mxu0 %v2480
      %2488 = vmatprep.subr.mxu0 0.0
      %2489 = vmatpush1.msra.mxu0 %v2481
      %2490 = vmatprep.subr.mxu0 0.0
      %2491 = vmatpush1.msra.mxu0 0.0
      %2492 = vmatprep.subr.mxu0 0.0
      %2493 = vmatpush1.msra.mxu0 0.0
      %2494 = vmatprep.subr.mxu0 0.0
      %2495 = vmatpush1.msra.mxu0 0.0
      %2496 = vmatprep.subr.mxu0 0.0
      %2497 = vmatpush1.msra.mxu0 0.0
      %2498 = vmatprep.subr.mxu0 0.0
      %2499 = vmatpush1.msra.mxu0 0.0
      %2500 = vmatprep.subr.mxu0 0.0
      %2501 = vmatpush1.msra.mxu0 0.0
      %2502 = vmatprep.subr.mxu0 0.0
      %2503 = vmatpush1.msra.mxu0 0.0
      %2504 = vmatprep.subr.mxu0 0.0
      %2505 = vmatpush1.msra.mxu0 0.0
      %2506 = vmatprep.subr.mxu0 0.0
      %2507 = vmatpush1.msra.mxu0 0.0
      %2508 = vmatprep.subr.mxu0 0.0
      %2509 = vmatpush1.msra.mxu0 0.0
      %2510 = vmatprep.subr.mxu0 0.0
      %2511 = vmatpush1.msra.mxu0 0.0
      %2512 = vmatprep.subr.mxu0 0.0
      %2513 = vmatpush1.msra.mxu0 0.0
      %2514 = vmatprep.subr.mxu0 0.0
      %2515 = vmatpush1.msra.mxu0 0.0
      %2516 = vmatprep.subr.mxu0 0.0
      %2517 = vmatpush1.msra.mxu0 0.0
      %2518 = vmatprep.subr.mxu0 0.0
      %2519 = vmatpush1.msra.mxu0 0.0
      %2520 = vmatprep.subr.mxu0 0.0
      %2521 = vmatpush1.msra.mxu0 0.0
      %2522 = vmatprep.subr.mxu0 0.0
      %2523 = vmatpush1.msra.mxu0 0.0
      %2524 = vmatprep.subr.mxu0 0.0
      %2525 = vmatpush1.msra.mxu0 0.0
      %2526 = vmatprep.subr.mxu0 0.0
      %2527 = vmatpush1.msra.mxu0 0.0
      %2528 = vmatprep.subr.mxu0 0.0
      %2529 = vmatpush1.msra.mxu0 0.0
      %2530 = vmatprep.subr.mxu0 0.0
      %2531 = vmatpush1.msra.mxu0 0.0
      %2532 = vmatprep.subr.mxu0 0.0
      %2533 = vmatpush1.msra.mxu0 0.0
      %2534 = vmatprep.subr.mxu0 0.0
      %2535 = vmatpush1.msra.mxu0 0.0
      %2536 = vmatprep.subr.mxu0 0.0
      %2537 = vmatpush1.msra.mxu0 0.0
      %2538 = vmatprep.subr.mxu0 0.0
      %2539 = vmatpush1.msra.mxu0 0.0
      %2540 = vmatprep.subr.mxu0 0.0
      %2541 = vmatpush1.msra.mxu0 0.0
      %2542 = vmatprep.subr.mxu0 0.0
      %2543 = vmatpush1.msra.mxu0 0.0
      %2544 = vmatprep.subr.mxu0 0.0
      %2545 = vmatpush1.msra.mxu0 0.0
      %2546 = vmatprep.mubr.f32.mxu0 0.0
      %2547 = vmatmul.mubr.f32.gmra.mrb[0].mxu0 %v1807
      %v2548 = vpop.f32.mrb[0].mxu0
      %v2549 = vadd.f32 0.0, %v2548
      %v2550 = vpop.f32.mrb[0].mxu0
      %2551 = vmatprep.mubr.f32.mxu0 0.0
      %2552 = vmatmul.mubr.f32.gmra.mrb[0].mxu0 %v1809
      %v2553 = vpop.f32.mrb[0].mxu0
      %v2554 = vadd.f32 0.0, %v2553
      %v2555 = vpop.f32.mrb[0].mxu0
      %2556 = vmatprep.mubr.f32.mxu0 0.0
      %2557 = vmatmul.mubr.f32.gmra.mrb[0].mxu0 %v1811
      %v2558 = vpop.f32.mrb[0].mxu0
      %v2559 = vadd.f32 0.0, %v2558
      %v2560 = vpop.f32.mrb[0].mxu0
      %2561 = vmatprep.mubr.f32.mxu0 0.0
      %2562 = vmatmul.mubr.f32.gmra.mrb[0].mxu0 %v1813
      %v2563 = vpop.f32.mrb[0].mxu0
      %v2564 = vadd.f32 0.0, %v2563
      %v2565 = vpop.f32.mrb[0].mxu0
      %2566 = vdwg.mxu0
      %v2567 = vmul.f32 %v2549, 0.008333334
      %v2568 = vmul.f32 %v2554, 0.008333334
      %v2569 = vmul.f32 %v2559, 0.008333334
      %v2570 = vmul.f32 %v2564, 0.008333334
      %v2571 = vmul.f32 %v2567, %v2567
      %v2572 = vmul.f32 %v2568, %v2568
      %v2573 = vmul.f32 %v2569, %v2569
      %v2574 = vmul.f32 %v2570, %v2570
      %2579 = vrot.lane.b32.xlu0 %v2571, 1
      %v2580 = vpop.permute.xlu0 %2579
      %2581 = vrot.lane.b32.xlu0 %v2572, 1
      %v2582 = vpop.permute.xlu0 %2581
      %2583 = vrot.lane.b32.xlu0 %v2573, 1
      %v2584 = vpop.permute.xlu0 %2583
      %2585 = vrot.lane.b32.xlu0 %v2574, 1
      %v2586 = vpop.permute.xlu0 %2585
      %v2591 = vsub.f32 %v2567, %v2580
      %v2592 = vsub.f32 %v2568, %v2582
      %v2593 = vsub.f32 %v2569, %v2584
      %v2594 = vsub.f32 %v2570, %v2586
      %2596 = vset.pattern.permute.xlu0 0
      %2597 = vperm.xlu0 %2596, %v2567
      %v2598 = vpop.permute.xlu0 %2597
      %2601 = vset.pattern.permute.xlu0 0
      %2602 = vperm.xlu0 %2601, %v2568
      %v2603 = vpop.permute.xlu0 %2602
      %2606 = vset.pattern.permute.xlu0 0
      %2607 = vperm.xlu0 %2606, %v2569
      %v2608 = vpop.permute.xlu0 %2607
      %2611 = vset.pattern.permute.xlu0 0
      %2612 = vperm.xlu0 %2611, %v2570
      %v2613 = vpop.permute.xlu0 %2612
      %v2615 = vsub.f32 %v2439, %v2598
      %v2616 = vsub.f32 %v2442, %v2603
      %v2617 = vsub.f32 %v2447, %v2608
      %v2618 = vsub.f32 %v2450, %v2613
      %v2619 = vadd.f32 %v2591, 1e-05
      %v2620 = vadd.f32 %v2592, 1e-05
      %v2621 = vadd.f32 %v2593, 1e-05
      %v2622 = vadd.f32 %v2594, 1e-05
      %v2623 = vrsqrt.pop %v2619
      %v2624 = vrsqrt.pop %v2620
      %v2625 = vrsqrt.pop %v2621
      %v2626 = vrsqrt.pop %v2622
      %2628 = vset.pattern.permute.xlu0 1
      %2629 = vperm.xlu0 %2628, %v2623
      %v2630 = vpop.permute.xlu0 %2629
      %2633 = vset.pattern.permute.xlu0 1
      %2634 = vperm.xlu0 %2633, %v2624
      %v2635 = vpop.permute.xlu0 %2634
      %2638 = vset.pattern.permute.xlu0 1
      %2639 = vperm.xlu0 %2638, %v2625
      %v2640 = vpop.permute.xlu0 %2639
      %2643 = vset.pattern.permute.xlu0 1
      %2644 = vperm.xlu0 %2643, %v2626
      %v2645 = vpop.permute.xlu0 %2644
      %v2647 = vmul.f32 %v2615, %v2630
      %v2648 = vmul.f32 %v2616, %v2635
      %v2649 = vmul.f32 %v2617, %v2640
      %v2650 = vmul.f32 %v2618, %v2645
      %2651 = vset.pattern.permute.xlu0 4
      %2652 = vperm.xlu0 %2651, %v343
      %v2653 = vpop.permute.xlu0 %2652
      %2655 = vset.pattern.permute.xlu0 4
      %2656 = vperm.xlu0 %2655, %v344
      %v2657 = vpop.permute.xlu0 %2656
      %2659 = vset.pattern.permute.xlu0 4
      %2660 = vperm.xlu0 %2659, %v345
      %v2661 = vpop.permute.xlu0 %2660
      %2663 = vset.pattern.permute.xlu0 4
      %2664 = vperm.xlu0 %2663, %v346
      %v2665 = vpop.permute.xlu0 %2664
      %v2667 = vmul.f32 %v2647, %v2653
      %v2668 = vmul.f32 %v2648, %v2657
      %v2669 = vmul.f32 %v2649, %v2661
      %v2670 = vmul.f32 %v2650, %v2665
      %2671 = vset.pattern.permute.xlu0 5
      %2672 = vperm.xlu0 %2671, %v343
      %v2673 = vpop.permute.xlu0 %2672
      %2675 = vset.pattern.permute.xlu0 5
      %2676 = vperm.xlu0 %2675, %v344
      %v2677 = vpop.permute.xlu0 %2676
      %2679 = vset.pattern.permute.xlu0 5
      %2680 = vperm.xlu0 %2679, %v345
      %v2681 = vpop.permute.xlu0 %2680
      %2683 = vset.pattern.permute.xlu0 5
      %2684 = vperm.xlu0 %2683, %v346
      %v2685 = vpop.permute.xlu0 %2684
      %v2687 = vadd.f32 %v2667, %v2673
      %v2688 = vadd.f32 %v2668, %v2677
      %v2689 = vadd.f32 %v2669, %v2681
      %v2690 = vadd.f32 %v2670, %v2685
      %v2691 = vmul.f32 %v2687, 0.5
      %v2692 = vmul.f32 %v2688, 0.5
      %v2693 = vmul.f32 %v2689, 0.5
      %v2694 = vmul.f32 %v2690, 0.5
      %v2695 = vmul.f32 %v2687, 0.70710677
      %v2696 = vmul.f32 %v2688, 0.70710677
      %v2697 = vmul.f32 %v2689, 0.70710677
      %v2698 = vmul.f32 %v2690, 0.70710677
      %v2699 = verf.f32.pop %v2695
      %v2700 = verf.f32.pop %v2696
      %v2701 = verf.f32.pop %v2697
      %v2702 = verf.f32.pop %v2698
      %v2703 = vadd.f32 %v2699, 1.0
      %v2704 = vadd.f32 %v2700, 1.0
      %v2705 = vadd.f32 %v2701, 1.0
      %v2706 = vadd.f32 %v2702, 1.0
      %v2707 = vmul.f32 %v2691, %v2703
      %v2708 = vmul.f32 %v2692, %v2704
      %v2709 = vmul.f32 %v2693, %v2705
      %v2710 = vmul.f32 %v2694, %v2706
      %v2711 = vpack.c.bf16 %v2708, %v2707
      %v2712 = vpack.c.bf16 %v2710, %v2709
      %v2717 = vunpack.c.l.b16 %v359
      %v2718 = vunpack.c.l.b16 %v360
      %v2719 = vunpack.c.l.b16 %v361
      %v2720 = vunpack.c.l.b16 %v362
      %v2721 = vpack.c.b16 %v2718, %v2717
      %v2722 = vpack.c.b16 %v2720, %v2719
      %2723 = vrot.lane.b32.xlu0 %v2721, 96
      %v2724 = vpop.permute.xlu0 %2723
      %2725 = vrot.lane.b32.xlu0 %v2722, 96
      %v2726 = vpop.permute.xlu0 %2725
      %v2728 = vsel %vm1722, %v2724, 0
      %v2731 = vsel %vm1722, %v2726, 0
      %2733 = vmatprep.subr.bf16.mxu0 0
      %2734 = vmatpush1.bf16.msra.mxu0 %v2711
      %2735 = vmatprep.subr.bf16.mxu0 0
      %2736 = vmatpush1.bf16.msra.mxu0 %v2712
      %2737 = vmatprep.subr.bf16.mxu0 0
      %2738 = vmatpush1.bf16.msra.mxu0 0
      %2739 = vmatprep.subr.bf16.mxu0 0
      %2740 = vmatpush1.bf16.msra.mxu0 0
      %2741 = vmatprep.subr.bf16.mxu0 0
      %2742 = vmatpush1.bf16.msra.mxu0 0
      %2743 = vmatprep.subr.bf16.mxu0 0
      %2744 = vmatpush1.bf16.msra.mxu0 0
      %2745 = vmatprep.subr.bf16.mxu0 0
      %2746 = vmatpush1.bf16.msra.mxu0 0
      %2747 = vmatprep.subr.bf16.mxu0 0
      %2748 = vmatpush1.bf16.msra.mxu0 0
      %2749 = vmatprep.subr.bf16.mxu0 0
      %2750 = vmatpush1.bf16.msra.mxu0 0
      %2751 = vmatprep.subr.bf16.mxu0 0
      %2752 = vmatpush1.bf16.msra.mxu0 0
      %2753 = vmatprep.subr.bf16.mxu0 0
      %2754 = vmatpush1.bf16.msra.mxu0 0
      %2755 = vmatprep.subr.bf16.mxu0 0
      %2756 = vmatpush1.bf16.msra.mxu0 0
      %2757 = vmatprep.subr.bf16.mxu0 0
      %2758 = vmatpush1.bf16.msra.mxu0 0
      %2759 = vmatprep.subr.bf16.mxu0 0
      %2760 = vmatpush1.bf16.msra.mxu0 0
      %2761 = vmatprep.subr.bf16.mxu0 0
      %2762 = vmatpush1.bf16.msra.mxu0 0
      %2763 = vmatprep.subr.bf16.mxu0 0
      %2764 = vmatpush1.bf16.msra.mxu0 0
      %2765 = vmatprep.mubr.bf16.mxu0 0
      %2766 = vmatmul.mubr.bf16.gmra.mrb[0].mxu0 %v2728
      %v2767 = vpop.f32.mrb[0].mxu0
      %v2768 = vadd.f32 0.0, %v2767
      %v2769 = vpop.f32.mrb[0].mxu0
      %v2770 = vpop.f32.mrb[0].mxu0
      %v2771 = vadd.f32 0.0, %v2770
      %v2772 = vpop.f32.mrb[0].mxu0
      %2773 = vmatprep.mubr.bf16.mxu0 0
      %2774 = vmatmul.mubr.bf16.gmra.mrb[0].mxu0 %v2731
      %v2775 = vpop.f32.mrb[0].mxu0
      %v2776 = vadd.f32 0.0, %v2775
      %v2777 = vpop.f32.mrb[0].mxu0
      %v2778 = vpop.f32.mrb[0].mxu0
      %v2779 = vadd.f32 0.0, %v2778
      %v2780 = vpop.f32.mrb[0].mxu0
      %2781 = vdwg.mxu0
      %v2783 = vsel %vm1722, %v2721, 0
      %v2786 = vsel %vm1722, %v2722, 0
      %2788 = vmatprep.subr.bf16.mxu0 0
      %2789 = vmatpush1.bf16.msra.mxu0 %v2044
      %2790 = vmatprep.subr.bf16.mxu0 0
      %2791 = vmatpush1.bf16.msra.mxu0 %v2045
      %2792 = vmatprep.subr.bf16.mxu0 0
      %2793 = vmatpush1.bf16.msra.mxu0 0
      %2794 = vmatprep.subr.bf16.mxu0 0
      %2795 = vmatpush1.bf16.msra.mxu0 0
      %2796 = vmatprep.subr.bf16.mxu0 0
      %2797 = vmatpush1.bf16.msra.mxu0 0
      %2798 = vmatprep.subr.bf16.mxu0 0
      %2799 = vmatpush1.bf16.msra.mxu0 0
      %2800 = vmatprep.subr.bf16.mxu0 0
      %2801 = vmatpush1.bf16.msra.mxu0 0
      %2802 = vmatprep.subr.bf16.mxu0 0
      %2803 = vmatpush1.bf16.msra.mxu0 0
      %2804 = vmatprep.subr.bf16.mxu0 0
      %2805 = vmatpush1.bf16.msra.mxu0 0
      %2806 = vmatprep.subr.bf16.mxu0 0
      %2807 = vmatpush1.bf16.msra.mxu0 0
      %2808 = vmatprep.subr.bf16.mxu0 0
      %2809 = vmatpush1.bf16.msra.mxu0 0
      %2810 = vmatprep.subr.bf16.mxu0 0
      %2811 = vmatpush1.bf16.msra.mxu0 0
      %2812 = vmatprep.subr.bf16.mxu0 0
      %2813 = vmatpush1.bf16.msra.mxu0 0
      %2814 = vmatprep.subr.bf16.mxu0 0
      %2815 = vmatpush1.bf16.msra.mxu0 0
      %2816 = vmatprep.subr.bf16.mxu0 0
      %2817 = vmatpush1.bf16.msra.mxu0 0
      %2818 = vmatprep.subr.bf16.mxu0 0
      %2819 = vmatpush1.bf16.msra.mxu0 0
      %2820 = vmatprep.mubr.bf16.mxu0 0
      %2821 = vmatmul.mubr.bf16.gmra.mrb[0].mxu0 %v2783
      %v2822 = vpop.f32.mrb[0].mxu0
      %v2823 = vadd.f32 %v2768, %v2822
      %v2824 = vpop.f32.mrb[0].mxu0
      %v2825 = vpop.f32.mrb[0].mxu0
      %v2826 = vadd.f32 %v2771, %v2825
      %v2827 = vpop.f32.mrb[0].mxu0
      %2828 = vmatprep.mubr.bf16.mxu0 0
      %2829 = vmatmul.mubr.bf16.gmra.mrb[0].mxu0 %v2786
      %v2830 = vpop.f32.mrb[0].mxu0
      %v2831 = vadd.f32 %v2776, %v2830
      %v2832 = vpop.f32.mrb[0].mxu0
      %v2833 = vpop.f32.mrb[0].mxu0
      %v2834 = vadd.f32 %v2779, %v2833
      %v2835 = vpop.f32.mrb[0].mxu0
      %2836 = vdwg.mxu0
      %v2837 = vld [vmem:[#allocation3 + $0x40] sm:$0xff]
      %v2838 = vld [vmem:[#allocation3 + $0x48] sm:$0xff]
      %v2839 = vld [vmem:[#allocation3 + $0x50] sm:$0xff]
      %v2840 = vld [vmem:[#allocation3 + $0x58] sm:$0xff]
      %2845 = vrot.lane.b32.xlu0 %v2837, 127
      %v2846 = vpop.permute.xlu0 %2845
      %2847 = vrot.lane.b32.xlu0 %v2838, 127
      %v2848 = vpop.permute.xlu0 %2847
      %2849 = vrot.lane.b32.xlu0 %v2839, 127
      %v2850 = vpop.permute.xlu0 %2849
      %2851 = vrot.lane.b32.xlu0 %v2840, 127
      %v2852 = vpop.permute.xlu0 %2851
      %v2853 = vsel %vm1583, %v2846, %v2848
      %v2854 = vsel %vm1583, %v2850, %v2852
      %2855 = vrot.lane.b32.xlu0 %v2837, 126
      %v2856 = vpop.permute.xlu0 %2855
      %2857 = vrot.lane.b32.xlu0 %v2838, 126
      %v2858 = vpop.permute.xlu0 %2857
      %2859 = vrot.lane.b32.xlu0 %v2839, 126
      %v2860 = vpop.permute.xlu0 %2859
      %2861 = vrot.lane.b32.xlu0 %v2840, 126
      %v2862 = vpop.permute.xlu0 %2861
      %v2863 = vsel %vm1594, %v2856, %v2858
      %v2864 = vsel %vm1594, %v2860, %v2862
      %v2865 = vld [vmem:[%s4] sm:$0xf]
      %v2866 = vld [vmem:[%s4 + $0x4] sm:$0xf]
      %v2867 = vld [vmem:[%s4 + $0x8] sm:$0xf]
      %v2868 = vld [vmem:[%s4 + $0xc] sm:$0xf]
      %2869 = vset.pattern.permute.xlu0 6
      %2870 = vperm.xlu0 %2869, %v343
      %v2871 = vpop.permute.xlu0 %2870
      %2873 = vset.pattern.permute.xlu0 6
      %2874 = vperm.xlu0 %2873, %v344
      %v2875 = vpop.permute.xlu0 %2874
      %2877 = vset.pattern.permute.xlu0 6
      %2878 = vperm.xlu0 %2877, %v345
      %v2879 = vpop.permute.xlu0 %2878
      %2881 = vset.pattern.permute.xlu0 6
      %2882 = vperm.xlu0 %2881, %v346
      %v2883 = vpop.permute.xlu0 %2882
      %v2889 = vunpack.c.l.b16 %v2865
      %v2890 = vunpack.c.l.b16 %v2866
      %v2891 = vunpack.c.l.b16 %v2867
      %v2892 = vunpack.c.l.b16 %v2868
      %v2893 = vpack.c.b16 %v2890, %v2889
      %v2894 = vpack.c.b16 %v2892, %v2891
      %2895 = vrot.lane.b32.xlu0 %v2837, 122
      %v2896 = vpop.permute.xlu0 %2895
      %2897 = vrot.lane.b32.xlu0 %v2838, 122
      %v2898 = vpop.permute.xlu0 %2897
      %2899 = vrot.lane.b32.xlu0 %v2839, 122
      %v2900 = vpop.permute.xlu0 %2899
      %2901 = vrot.lane.b32.xlu0 %v2840, 122
      %v2902 = vpop.permute.xlu0 %2901
      %2903 = vrot.lane.b32.xlu0 %v2853, 122
      %v2904 = vpop.permute.xlu0 %2903
      %2905 = vrot.lane.b32.xlu0 %v2848, 122
      %v2906 = vpop.permute.xlu0 %2905
      %2907 = vrot.lane.b32.xlu0 %v2854, 122
      %v2908 = vpop.permute.xlu0 %2907
      %2909 = vrot.lane.b32.xlu0 %v2852, 122
      %v2910 = vpop.permute.xlu0 %2909
      %2911 = vrot.lane.b32.xlu0 %v2863, 122
      %v2912 = vpop.permute.xlu0 %2911
      %2913 = vrot.lane.b32.xlu0 %v2858, 122
      %v2914 = vpop.permute.xlu0 %2913
      %2915 = vrot.lane.b32.xlu0 %v2864, 122
      %v2916 = vpop.permute.xlu0 %2915
      %2917 = vrot.lane.b32.xlu0 %v2862, 122
      %v2918 = vpop.permute.xlu0 %2917
      %v2919 = vsel %vm2072, %v2896, %v2898
      %v2920 = vsel %vm2072, %v2900, %v2902
      %v2921 = vsel %vm2072, %v2904, %v2906
      %v2922 = vsel %vm2072, %v2908, %v2910
      %v2923 = vsel %vm2072, %v2912, %v2914
      %v2924 = vsel %vm2072, %v2916, %v2918
      %v2932 = vsel %vm918, %v2893, 0
      %v2935 = vsel %vm918, %v2894, 0
      %2937 = vmatprep.subr.bf16.mxu0 0
      %2938 = vmatpush1.bf16.msra.mxu0 %v2919
      %2939 = vmatprep.subr.bf16.mxu0 0
      %2940 = vmatpush1.bf16.msra.mxu0 %v2920
      %2941 = vmatprep.subr.bf16.mxu0 0
      %2942 = vmatpush1.bf16.msra.mxu0 %v2921
      %2943 = vmatprep.subr.bf16.mxu0 0
      %2944 = vmatpush1.bf16.msra.mxu0 %v2922
      %2945 = vmatprep.subr.bf16.mxu0 0
      %2946 = vmatpush1.bf16.msra.mxu0 %v2923
      %2947 = vmatprep.subr.bf16.mxu0 0
      %2948 = vmatpush1.bf16.msra.mxu0 %v2924
      %2949 = vmatprep.subr.bf16.mxu0 0
      %2950 = vmatpush1.bf16.msra.mxu0 0
      %2951 = vmatprep.subr.bf16.mxu0 0
      %2952 = vmatpush1.bf16.msra.mxu0 0
      %2953 = vmatprep.subr.bf16.mxu0 0
      %2954 = vmatpush1.bf16.msra.mxu0 0
      %2955 = vmatprep.subr.bf16.mxu0 0
      %2956 = vmatpush1.bf16.msra.mxu0 0
      %2957 = vmatprep.subr.bf16.mxu0 0
      %2958 = vmatpush1.bf16.msra.mxu0 0
      %2959 = vmatprep.subr.bf16.mxu0 0
      %2960 = vmatpush1.bf16.msra.mxu0 0
      %2961 = vmatprep.subr.bf16.mxu0 0
      %2962 = vmatpush1.bf16.msra.mxu0 0
      %2963 = vmatprep.subr.bf16.mxu0 0
      %2964 = vmatpush1.bf16.msra.mxu0 0
      %2965 = vmatprep.subr.bf16.mxu0 0
      %2966 = vmatpush1.bf16.msra.mxu0 0
      %2967 = vmatprep.subr.bf16.mxu0 0
      %2968 = vmatpush1.bf16.msra.mxu0 0
      %2969 = vmatprep.mubr.bf16.mxu0 0
      %2970 = vmatmul.mubr.bf16.gmra.mrb[0].mxu0 %v2932
      %v2971 = vpop.f32.mrb[0].mxu0
      %v2972 = vadd.f32 %v2871, %v2971
      %v2973 = vpop.f32.mrb[0].mxu0
      %v2974 = vpop.f32.mrb[0].mxu0
      %v2975 = vadd.f32 %v2875, %v2974
      %v2976 = vpop.f32.mrb[0].mxu0
      %2977 = vmatprep.mubr.bf16.mxu0 0
      %2978 = vmatmul.mubr.bf16.gmra.mrb[0].mxu0 %v2935
      %v2979 = vpop.f32.mrb[0].mxu0
      %v2980 = vadd.f32 %v2879, %v2979
      %v2981 = vpop.f32.mrb[0].mxu0
      %v2982 = vpop.f32.mrb[0].mxu0
      %v2983 = vadd.f32 %v2883, %v2982
      %v2984 = vpop.f32.mrb[0].mxu0
      %2985 = vdwg.mxu0
      %v2986 = vsel %vm1778, %v2972, 0.0
      %v2987 = vsel %vm1778, %v2975, 0.0
      %v2988 = vsel %vm1778, %v2980, 0.0
      %v2989 = vsel %vm1778, %v2983, 0.0
      %2990 = vadd.xlane.f32.xlu0 %v2986
      %v2991 = vpop.xlane.xlu0 %2990
      %2992 = vadd.xlane.f32.xlu0 %v2987
      %v2993 = vpop.xlane.xlu0 %2992
      %2994 = vadd.xlane.f32.xlu0 %v2988
      %v2995 = vpop.xlane.xlu0 %2994
      %2996 = vadd.xlane.f32.xlu0 %v2989
      %v2997 = vpop.xlane.xlu0 %2996
      %v2998 = vmul.f32 %v2986, %v2986
      %v2999 = vmul.f32 %v2987, %v2987
      %v3000 = vmul.f32 %v2988, %v2988
      %v3001 = vmul.f32 %v2989, %v2989
      %3002 = vadd.xlane.f32.xlu0 %v2998
      %v3003 = vpop.xlane.xlu0 %3002
      %3004 = vadd.xlane.f32.xlu0 %v2999
      %v3005 = vpop.xlane.xlu0 %3004
      %3006 = vadd.xlane.f32.xlu0 %v3000
      %v3007 = vpop.xlane.xlu0 %3006
      %3008 = vadd.xlane.f32.xlu0 %v3001
      %v3009 = vpop.xlane.xlu0 %3008
      %v3010 = vsel %vm905, %v2991, %v3003
      %v3011 = vsel %vm905, %v2993, %v3005
      %v3012 = vsel %vm905, %v2995, %v3007
      %v3013 = vsel %vm905, %v2997, %v3009
      %3014 = vmatprep.subr.mxu0 0.0
      %3015 = vmatpush1.msra.mxu0 %v3010
      %3016 = vmatprep.subr.mxu0 0.0
      %3017 = vmatpush1.msra.mxu0 %v3011
      %3018 = vmatprep.subr.mxu0 0.0
      %3019 = vmatpush1.msra.mxu0 %v3012
      %3020 = vmatprep.subr.mxu0 0.0
      %3021 = vmatpush1.msra.mxu0 %v3013
      %3022 = vmatprep.subr.mxu0 0.0
      %3023 = vmatpush1.msra.mxu0 0.0
      %3024 = vmatprep.subr.mxu0 0.0
      %3025 = vmatpush1.msra.mxu0 0.0
      %3026 = vmatprep.subr.mxu0 0.0
      %3027 = vmatpush1.msra.mxu0 0.0
      %3028 = vmatprep.subr.mxu0 0.0
      %3029 = vmatpush1.msra.mxu0 0.0
      %3030 = vmatprep.subr.mxu0 0.0
      %3031 = vmatpush1.msra.mxu0 0.0
      %3032 = vmatprep.subr.mxu0 0.0
      %3033 = vmatpush1.msra.mxu0 0.0
      %3034 = vmatprep.subr.mxu0 0.0
      %3035 = vmatpush1.msra.mxu0 0.0
      %3036 = vmatprep.subr.mxu0 0.0
      %3037 = vmatpush1.msra.mxu0 0.0
      %3038 = vmatprep.subr.mxu0 0.0
      %3039 = vmatpush1.msra.mxu0 0.0
      %3040 = vmatprep.subr.mxu0 0.0
      %3041 = vmatpush1.msra.mxu0 0.0
      %3042 = vmatprep.subr.mxu0 0.0
      %3043 = vmatpush1.msra.mxu0 0.0
      %3044 = vmatprep.subr.mxu0 0.0
      %3045 = vmatpush1.msra.mxu0 0.0
      %3046 = vmatprep.subr.mxu0 0.0
      %3047 = vmatpush1.msra.mxu0 0.0
      %3048 = vmatprep.subr.mxu0 0.0
      %3049 = vmatpush1.msra.mxu0 0.0
      %3050 = vmatprep.subr.mxu0 0.0
      %3051 = vmatpush1.msra.mxu0 0.0
      %3052 = vmatprep.subr.mxu0 0.0
      %3053 = vmatpush1.msra.mxu0 0.0
      %3054 = vmatprep.subr.mxu0 0.0
      %3055 = vmatpush1.msra.mxu0 0.0
      %3056 = vmatprep.subr.mxu0 0.0
      %3057 = vmatpush1.msra.mxu0 0.0
      %3058 = vmatprep.subr.mxu0 0.0
      %3059 = vmatpush1.msra.mxu0 0.0
      %3060 = vmatprep.subr.mxu0 0.0
      %3061 = vmatpush1.msra.mxu0 0.0
      %3062 = vmatprep.subr.mxu0 0.0
      %3063 = vmatpush1.msra.mxu0 0.0
      %3064 = vmatprep.subr.mxu0 0.0
      %3065 = vmatpush1.msra.mxu0 0.0
      %3066 = vmatprep.subr.mxu0 0.0
      %3067 = vmatpush1.msra.mxu0 0.0
      %3068 = vmatprep.subr.mxu0 0.0
      %3069 = vmatpush1.msra.mxu0 0.0
      %3070 = vmatprep.subr.mxu0 0.0
      %3071 = vmatpush1.msra.mxu0 0.0
      %3072 = vmatprep.subr.mxu0 0.0
      %3073 = vmatpush1.msra.mxu0 0.0
      %3074 = vmatprep.subr.mxu0 0.0
      %3075 = vmatpush1.msra.mxu0 0.0
      %3076 = vmatprep.subr.mxu0 0.0
      %3077 = vmatpush1.msra.mxu0 0.0
      %3078 = vmatprep.mubr.f32.mxu0 0.0
      %3079 = vmatmul.mubr.f32.gmra.mrb[0].mxu0 %v1807
      %v3080 = vpop.f32.mrb[0].mxu0
      %v3081 = vadd.f32 0.0, %v3080
      %v3082 = vpop.f32.mrb[0].mxu0
      %3083 = vmatprep.mubr.f32.mxu0 0.0
      %3084 = vmatmul.mubr.f32.gmra.mrb[0].mxu0 %v1809
      %v3085 = vpop.f32.mrb[0].mxu0
      %v3086 = vadd.f32 0.0, %v3085
      %v3087 = vpop.f32.mrb[0].mxu0
      %3088 = vmatprep.mubr.f32.mxu0 0.0
      %3089 = vmatmul.mubr.f32.gmra.mrb[0].mxu0 %v1811
      %v3090 = vpop.f32.mrb[0].mxu0
      %v3091 = vadd.f32 0.0, %v3090
      %v3092 = vpop.f32.mrb[0].mxu0
      %3093 = vmatprep.mubr.f32.mxu0 0.0
      %3094 = vmatmul.mubr.f32.gmra.mrb[0].mxu0 %v1813
      %v3095 = vpop.f32.mrb[0].mxu0
      %v3096 = vadd.f32 0.0, %v3095
      %v3097 = vpop.f32.mrb[0].mxu0
      %3098 = vdwg.mxu0
      %v3099 = vmul.f32 %v3081, 0.00390625
      %v3100 = vmul.f32 %v3086, 0.00390625
      %v3101 = vmul.f32 %v3091, 0.00390625
      %v3102 = vmul.f32 %v3096, 0.00390625
      %v3103 = vmul.f32 %v3099, %v3099
      %v3104 = vmul.f32 %v3100, %v3100
      %v3105 = vmul.f32 %v3101, %v3101
      %v3106 = vmul.f32 %v3102, %v3102
      %3111 = vrot.lane.b32.xlu0 %v3103, 1
      %v3112 = vpop.permute.xlu0 %3111
      %3113 = vrot.lane.b32.xlu0 %v3104, 1
      %v3114 = vpop.permute.xlu0 %3113
      %3115 = vrot.lane.b32.xlu0 %v3105, 1
      %v3116 = vpop.permute.xlu0 %3115
      %3117 = vrot.lane.b32.xlu0 %v3106, 1
      %v3118 = vpop.permute.xlu0 %3117
      %v3123 = vsub.f32 %v3099, %v3112
      %v3124 = vsub.f32 %v3100, %v3114
      %v3125 = vsub.f32 %v3101, %v3116
      %v3126 = vsub.f32 %v3102, %v3118
      %3128 = vset.pattern.permute.xlu0 0
      %3129 = vperm.xlu0 %3128, %v3099
      %v3130 = vpop.permute.xlu0 %3129
      %3133 = vset.pattern.permute.xlu0 0
      %3134 = vperm.xlu0 %3133, %v3100
      %v3135 = vpop.permute.xlu0 %3134
      %3138 = vset.pattern.permute.xlu0 0
      %3139 = vperm.xlu0 %3138, %v3101
      %v3140 = vpop.permute.xlu0 %3139
      %3143 = vset.pattern.permute.xlu0 0
      %3144 = vperm.xlu0 %3143, %v3102
      %v3145 = vpop.permute.xlu0 %3144
      %v3147 = vsub.f32 %v2972, %v3130
      %v3148 = vsub.f32 %v2975, %v3135
      %v3149 = vsub.f32 %v2980, %v3140
      %v3150 = vsub.f32 %v2983, %v3145
      %v3151 = vadd.f32 %v3123, 1e-05
      %v3152 = vadd.f32 %v3124, 1e-05
      %v3153 = vadd.f32 %v3125, 1e-05
      %v3154 = vadd.f32 %v3126, 1e-05
      %v3155 = vrsqrt.pop %v3151
      %v3156 = vrsqrt.pop %v3152
      %v3157 = vrsqrt.pop %v3153
      %v3158 = vrsqrt.pop %v3154
      %3160 = vset.pattern.permute.xlu0 1
      %3161 = vperm.xlu0 %3160, %v3155
      %v3162 = vpop.permute.xlu0 %3161
      %3165 = vset.pattern.permute.xlu0 1
      %3166 = vperm.xlu0 %3165, %v3156
      %v3167 = vpop.permute.xlu0 %3166
      %3170 = vset.pattern.permute.xlu0 1
      %3171 = vperm.xlu0 %3170, %v3157
      %v3172 = vpop.permute.xlu0 %3171
      %3175 = vset.pattern.permute.xlu0 1
      %3176 = vperm.xlu0 %3175, %v3158
      %v3177 = vpop.permute.xlu0 %3176
      %v3179 = vmul.f32 %v3147, %v3162
      %v3180 = vmul.f32 %v3148, %v3167
      %v3181 = vmul.f32 %v3149, %v3172
      %v3182 = vmul.f32 %v3150, %v3177
      %3183 = vset.pattern.permute.xlu0 7
      %3184 = vperm.xlu0 %3183, %v343
      %v3185 = vpop.permute.xlu0 %3184
      %3187 = vset.pattern.permute.xlu0 7
      %3188 = vperm.xlu0 %3187, %v344
      %v3189 = vpop.permute.xlu0 %3188
      %3191 = vset.pattern.permute.xlu0 7
      %3192 = vperm.xlu0 %3191, %v345
      %v3193 = vpop.permute.xlu0 %3192
      %3195 = vset.pattern.permute.xlu0 7
      %3196 = vperm.xlu0 %3195, %v346
      %v3197 = vpop.permute.xlu0 %3196
      %v3199 = vmul.f32 %v3179, %v3185
      %v3200 = vmul.f32 %v3180, %v3189
      %v3201 = vmul.f32 %v3181, %v3193
      %v3202 = vmul.f32 %v3182, %v3197
      %3203 = vset.pattern.permute.xlu0 8
      %3204 = vperm.xlu0 %3203, %v343
      %v3205 = vpop.permute.xlu0 %3204
      %3207 = vset.pattern.permute.xlu0 8
      %3208 = vperm.xlu0 %3207, %v344
      %v3209 = vpop.permute.xlu0 %3208
      %3211 = vset.pattern.permute.xlu0 8
      %3212 = vperm.xlu0 %3211, %v345
      %v3213 = vpop.permute.xlu0 %3212
      %3215 = vset.pattern.permute.xlu0 8
      %3216 = vperm.xlu0 %3215, %v346
      %v3217 = vpop.permute.xlu0 %3216
      %v3219 = vadd.f32 %v3199, %v3205
      %v3220 = vadd.f32 %v3200, %v3209
      %v3221 = vadd.f32 %v3201, %v3213
      %v3222 = vadd.f32 %v3202, %v3217
      %v3223 = vmul.f32 %v3219, 0.5
      %v3224 = vmul.f32 %v3220, 0.5
      %v3225 = vmul.f32 %v3221, 0.5
      %v3226 = vmul.f32 %v3222, 0.5
      %v3227 = vmul.f32 %v3219, 0.70710677
      %v3228 = vmul.f32 %v3220, 0.70710677
      %v3229 = vmul.f32 %v3221, 0.70710677
      %v3230 = vmul.f32 %v3222, 0.70710677
      %v3231 = verf.f32.pop %v3227
      %v3232 = verf.f32.pop %v3228
      %v3233 = verf.f32.pop %v3229
      %v3234 = verf.f32.pop %v3230
      %v3235 = vadd.f32 %v3231, 1.0
      %v3236 = vadd.f32 %v3232, 1.0
      %v3237 = vadd.f32 %v3233, 1.0
      %v3238 = vadd.f32 %v3234, 1.0
      %v3239 = vmul.f32 %v3223, %v3235
      %v3240 = vmul.f32 %v3224, %v3236
      %v3241 = vmul.f32 %v3225, %v3237
      %v3242 = vmul.f32 %v3226, %v3238
      %v3243 = vpack.c.bf16 %v3240, %v3239
      %v3244 = vpack.c.bf16 %v3242, %v3241
      %3245 = vrot.lane.b32.xlu0 %v2721, 64
      %v3246 = vpop.permute.xlu0 %3245
      %3247 = vrot.lane.b32.xlu0 %v2722, 64
      %v3248 = vpop.permute.xlu0 %3247
      %v3250 = vsel %vm1722, %v3246, 0
      %v3253 = vsel %vm1722, %v3248, 0
      %3255 = vmatprep.subr.bf16.mxu0 0
      %3256 = vmatpush1.bf16.msra.mxu0 %v3243
      %3257 = vmatprep.subr.bf16.mxu0 0
      %3258 = vmatpush1.bf16.msra.mxu0 %v3244
      %3259 = vmatprep.subr.bf16.mxu0 0
      %3260 = vmatpush1.bf16.msra.mxu0 0
      %3261 = vmatprep.subr.bf16.mxu0 0
      %3262 = vmatpush1.bf16.msra.mxu0 0
      %3263 = vmatprep.subr.bf16.mxu0 0
      %3264 = vmatpush1.bf16.msra.mxu0 0
      %3265 = vmatprep.subr.bf16.mxu0 0
      %3266 = vmatpush1.bf16.msra.mxu0 0
      %3267 = vmatprep.subr.bf16.mxu0 0
      %3268 = vmatpush1.bf16.msra.mxu0 0
      %3269 = vmatprep.subr.bf16.mxu0 0
      %3270 = vmatpush1.bf16.msra.mxu0 0
      %3271 = vmatprep.subr.bf16.mxu0 0
      %3272 = vmatpush1.bf16.msra.mxu0 0
      %3273 = vmatprep.subr.bf16.mxu0 0
      %3274 = vmatpush1.bf16.msra.mxu0 0
      %3275 = vmatprep.subr.bf16.mxu0 0
      %3276 = vmatpush1.bf16.msra.mxu0 0
      %3277 = vmatprep.subr.bf16.mxu0 0
      %3278 = vmatpush1.bf16.msra.mxu0 0
      %3279 = vmatprep.subr.bf16.mxu0 0
      %3280 = vmatpush1.bf16.msra.mxu0 0
      %3281 = vmatprep.subr.bf16.mxu0 0
      %3282 = vmatpush1.bf16.msra.mxu0 0
      %3283 = vmatprep.subr.bf16.mxu0 0
      %3284 = vmatpush1.bf16.msra.mxu0 0
      %3285 = vmatprep.subr.bf16.mxu0 0
      %3286 = vmatpush1.bf16.msra.mxu0 0
      %3287 = vmatprep.mubr.bf16.mxu0 0
      %3288 = vmatmul.mubr.bf16.gmra.mrb[0].mxu0 %v3250
      %v3289 = vpop.f32.mrb[0].mxu0
      %v3290 = vadd.f32 0.0, %v3289
      %v3291 = vpop.f32.mrb[0].mxu0
      %v3292 = vpop.f32.mrb[0].mxu0
      %v3293 = vadd.f32 0.0, %v3292
      %v3294 = vpop.f32.mrb[0].mxu0
      %3295 = vmatprep.mubr.bf16.mxu0 0
      %3296 = vmatmul.mubr.bf16.gmra.mrb[0].mxu0 %v3253
      %v3297 = vpop.f32.mrb[0].mxu0
      %v3298 = vadd.f32 0.0, %v3297
      %v3299 = vpop.f32.mrb[0].mxu0
      %v3300 = vpop.f32.mrb[0].mxu0
      %v3301 = vadd.f32 0.0, %v3300
      %v3302 = vpop.f32.mrb[0].mxu0
      %3303 = vdwg.mxu0
      %v3304 = vadd.f32 %v2823, %v3290
      %v3305 = vadd.f32 %v2826, %v3293
      %v3306 = vadd.f32 %v2831, %v3298
      %v3307 = vadd.f32 %v2834, %v3301
      %3308 = vset.pattern.permute.xlu0 9
      %3309 = vperm.xlu0 %3308, %v343
      %v3310 = vpop.permute.xlu0 %3309
      %3312 = vset.pattern.permute.xlu0 9
      %3313 = vperm.xlu0 %3312, %v344
      %v3314 = vpop.permute.xlu0 %3313
      %3316 = vset.pattern.permute.xlu0 9
      %3317 = vperm.xlu0 %3316, %v345
      %v3318 = vpop.permute.xlu0 %3317
      %3320 = vset.pattern.permute.xlu0 9
      %3321 = vperm.xlu0 %3320, %v346
      %v3322 = vpop.permute.xlu0 %3321
      %v3324 = vadd.f32 %v3304, %v3310
      %v3325 = vadd.f32 %v3305, %v3314
      %v3326 = vadd.f32 %v3306, %v3318
      %v3327 = vadd.f32 %v3307, %v3322
      %3328 = vst [vmem:[%s329] sm:$0xff] %v3324
      %3329 = vst [vmem:[%s329 + $0x8] sm:$0xff] %v3325
      %3330 = vst [vmem:[%s329 + $0x10] sm:$0xff] %v3326
      %3331 = vst [vmem:[%s329 + $0x18] sm:$0xff] %v3327
      %p3332 = scmp.lt.s32.totalorder %s20, 1
      %s3333 = scalar_select %p3332, %s20, 1
      %s3334 = smul.addr %s3333, 4
      %s3335 = smul.addr %s3334, 8
      %s3336 = scalar_lea.vmem %s9, %s3335
      // Predicated region
      $region57: #{music_feature_extractor.1} parent=55 // pred_check
        %p3337 = pneg %p232
      $region58: #{music_feature_extractor.1} parent=55 // pred_check_branch
        %3339 = sbr.rel (%p3337) target = $region60
      $region59: #{music_feature_extractor.1} parent=55 // pred_region
        _
      $region60: #{music_feature_extractor.1} parent=55 // pred_fallthru
        _
    $region56: #{music_feature_extractor.1} parent=5 // pred_fallthru
      _
    %p3340 = scmp.le.s32.totalorder 2, %s15
    // Predicated region
    $region61: #{music_feature_extractor.1} parent=5 // pred_check
      %p3341 = pneg %p3340
    $region62: #{music_feature_extractor.1} parent=5 // pred_check_branch
      %3343 = sbr.rel (%p3341) target = $region64
    $region63: #{music_feature_extractor.1} parent=5 // pred_region
      %s3344 = ssub.s32 %s15, 2
      // Predicated region
      $region65: #{music_feature_extractor.1} parent=63 // pred_check
        %p3345 = pneg %p238
      $region66: #{music_feature_extractor.1} parent=63 // pred_check_branch
        %3347 = sbr.rel (%p3345) target = $region68
      $region67: #{music_feature_extractor.1} parent=63 // pred_region
        %p3348 = scmp.lt.s32.totalorder %s21, 1
        %s3349 = scalar_select %p3348, %s21, 1
        %s3350 = smul.addr %s3349, 4
        %s3351 = smul.addr %s3350, 8
        %s3352 = scalar_lea.vmem %s9, %s3351
      $region68: #{music_feature_extractor.1} parent=63 // pred_fallthru
        _
    $region64: #{music_feature_extractor.1} parent=5 // pred_fallthru
      _
  $region6: #{music_feature_extractor.1} parent=0 // loop_footer
    %s19 = sadd.s32 1, %s15
  $region7: #{music_feature_extractor.1} parent=0 // loop_footer_branch
    %14 = sbr.rel target = $region3
  $region8: #{music_feature_extractor.1} parent=0 // loop_exit
    _

</llo_original>
